<compile_context>
chip_gen: v7x
topology: tpu7x:2x2x1
jax: 0.10.0
libtpu: 0.0.40
codegen_flags: <defaults>
</compile_context>

<pallas_src>
import functools
import numpy as np
import jax
import jax.numpy as jnp
from jax.experimental import pallas as pl
from jax.experimental.pallas import tpu as pltpu

# ---------------- tiny T5 config ----------------
VOCAB = 128
D_MODEL = 32
N_HEADS = 2
D_KV = 16
D_FF = 64
REL_BUCKETS = 32
REL_MAX_DIST = 128
PAD_ID = 0
DEC_START_ID = 0
EPS = 1e-6
NEG = -1e9


# ---------------- fused whole-forward Pallas kernel ----------------
def _t5_forward_kernel(
        # activations / metadata
        x_enc_ref, y_dec_ref, enc_mask_ref, enc_pos_ref, dec_pos_ref,
        labels_ref, emb_ref,
        # encoder layer + final norm
        e_ln1, e_wq, e_wkv, e_wo, e_ln2, e_wi, e_wo_ff, e_fln,
        # decoder layer + final norm
        d_ln1, d_swq, d_swkv, d_swo, d_ln2,
        d_cwq, d_cwkv, d_cwo, d_ln3, d_wi, d_wo_ff, d_fln,
        # outputs
        logits_ref, loss_ref,
        *, B, Ts, Tt):
    HD = N_HEADS * D_KV

    def rms(x, w_ref):
        # T5 RMSNorm: no mean subtraction, no bias, f32 math.
        var = jnp.mean(x * x, axis=-1, keepdims=True)
        return x * jax.lax.rsqrt(var + EPS) * w_ref[...]

    def mha(q_src, kv_src, wq_ref, wkv_ref, wo_ref, Tq, Tk, pos_bias, mask_bias):
        # q_src: (B*Tq, D); kv_src: (B*Tk, D).  Fused QKV / per-head attn / O.
        q = jnp.dot(q_src, wq_ref[...], preferred_element_type=jnp.float32)
        kv = jnp.dot(kv_src, wkv_ref[...], preferred_element_type=jnp.float32)
        q3 = q.reshape(B, Tq, HD)
        kv3 = kv.reshape(B, Tk, 2 * HD)
        wo = wo_ref[...]
        out = jnp.zeros((B * Tq, D_MODEL), jnp.float32)
        for h in range(N_HEADS):                      # static loop over heads
            qh = q3[:, :, h * D_KV:(h + 1) * D_KV]    # (B, Tq, d_kv)
            kh = kv3[:, :, h * D_KV:(h + 1) * D_KV]   # (B, Tk, d_kv)
            vh = kv3[:, :, HD + h * D_KV:HD + (h + 1) * D_KV]
            # T5: no 1/sqrt(d) scaling.
            s = jnp.einsum('bqd,bkd->bqk', qh, kh,
                           preferred_element_type=jnp.float32)
            if pos_bias is not None:
                s = s + pos_bias[h][None]             # (1, Tq, Tk) broadcast
            if mask_bias is not None:
                s = s + mask_bias                     # (B, 1, Tk) broadcast
            s = s - jnp.max(s, axis=-1, keepdims=True)
            p = jnp.exp(s)
            p = p * pl.reciprocal(jnp.sum(p, axis=-1, keepdims=True),
                                  approx=False)
            oh = jnp.einsum('bqk,bkd->bqd', p, vh,
                            preferred_element_type=jnp.float32)
            out = out + jnp.dot(oh.reshape(B * Tq, D_KV),
                                wo[h * D_KV:(h + 1) * D_KV, :],
                                preferred_element_type=jnp.float32)
        return out

    def ffn(x, wi_ref, wo_ref):
        hmid = jnp.maximum(
            jnp.dot(x, wi_ref[...], preferred_element_type=jnp.float32), 0.0)
        return jnp.dot(hmid, wo_ref[...], preferred_element_type=jnp.float32)

    # ----- biases built in-kernel (VPU broadcast, no HBM blow-up) -----
    enc_mask = enc_mask_ref[...]                            # (B, Ts)
    enc_mask_bias = (1.0 - enc_mask)[:, None, :] * NEG      # (B, 1, Ts)
    enc_pos = enc_pos_ref[...]                              # (H, Ts, Ts)
    dec_pos = dec_pos_ref[...]                              # (H, Tt, Tt) incl. causal

    # ----- encoder: 1 layer + final RMSNorm -----
    x = x_enc_ref[...]                                      # (B*Ts, D)
    h = rms(x, e_ln1)
    x = x + mha(h, h, e_wq, e_wkv, e_wo, Ts, Ts, enc_pos, enc_mask_bias)
    h = rms(x, e_ln2)
    x = x + ffn(h, e_wi, e_wo_ff)
    enc_out = rms(x, e_fln)                                 # (B*Ts, D)

    # ----- decoder: 1 layer + final RMSNorm -----
    y = y_dec_ref[...]                                      # (B*Tt, D)
    h = rms(y, d_ln1)
    y = y + mha(h, h, d_swq, d_swkv, d_swo, Tt, Tt, dec_pos, None)
    h = rms(y, d_ln2)
    y = y + mha(h, enc_out, d_cwq, d_cwkv, d_cwo, Tt, Ts, None, enc_mask_bias)
    h = rms(y, d_ln3)
    y = y + ffn(h, d_wi, d_wo_ff)
    y = rms(y, d_fln)

    # ----- tied LM head (contract on D of emb, no transpose) + CE -----
    yf = y * (D_MODEL ** -0.5)                              # tie_word_embeddings
    logits = jax.lax.dot_general(
        yf, emb_ref[...], (((1,), (1,)), ((), ())),
        preferred_element_type=jnp.float32)                 # (B*Tt, V), V=128 lanes
    logits_ref[...] = logits

    labels = labels_ref[...]                                # (B*Tt, 1) int32
    m = jnp.max(logits, axis=-1, keepdims=True)
    lse = jnp.log(jnp.sum(jnp.exp(logits - m), axis=-1, keepdims=True)) + m
    vocab_ids = jax.lax.broadcasted_iota(jnp.int32, logits.shape, 1)
    tgt = jnp.sum(jnp.where(vocab_ids == labels, logits, 0.0),
                  axis=-1, keepdims=True)
    valid = (labels >= 0).astype(jnp.float32)               # ignore_index = -100
    tok = (lse - tgt) * valid                               # (B*Tt, 1)
    num = jnp.sum(tok, axis=0, keepdims=True)               # (1, 1)
    den = jnp.maximum(jnp.sum(valid, axis=0, keepdims=True), 1.0)
    loss_ref[...] = num / den


# ---------------- JAX glue (T5 plumbing) ----------------
def _rel_bucket(rel_pos, bidirectional):
    num_buckets = REL_BUCKETS
    ret = jnp.zeros_like(rel_pos)
    if bidirectional:
        num_buckets //= 2
        ret = ret + (rel_pos > 0).astype(jnp.int32) * num_buckets
        n = jnp.abs(rel_pos)
    else:
        n = -jnp.minimum(rel_pos, 0)
    max_exact = num_buckets // 2
    is_small = n < max_exact
    n_safe = jnp.maximum(n, 1).astype(jnp.float32)
    val_large = max_exact + (
        jnp.log(n_safe / max_exact) / np.log(REL_MAX_DIST / max_exact)
        * (num_buckets - max_exact)).astype(jnp.int32)
    val_large = jnp.minimum(val_large, num_buckets - 1)
    return ret + jnp.where(is_small, n, val_large)


def compute_pos_bias(table, Tq, Tk, bidirectional):
    ctx = jnp.arange(Tq)[:, None]
    mem = jnp.arange(Tk)[None, :]
    buckets = _rel_bucket(mem - ctx, bidirectional)      # (Tq, Tk)
    bias = jnp.take(table, buckets, axis=0)              # (Tq, Tk, H)
    return bias.transpose(2, 0, 1)                       # (H, Tq, Tk)


def shift_right(labels):
    B = labels.shape[0]
    dec = jnp.concatenate(
        [jnp.full((B, 1), DEC_START_ID, labels.dtype), labels[:, :-1]], axis=1)
    return jnp.where(dec == -100, PAD_ID, dec)


def t5_forward(params, input_ids, attention_mask, labels):
    B, Ts = input_ids.shape
    _, Tt = labels.shape
    emb = params["embed"]                                           # (V, D)

    # Embedding gathers + label shift stay as JAX glue.
    x_enc = jnp.take(emb, input_ids, axis=0).reshape(B * Ts, D_MODEL)
    dec_ids = shift_right(labels)
    y_dec = jnp.take(emb, dec_ids, axis=0).reshape(B * Tt, D_MODEL)

    # Relative-position biases: (H, T, T) only — never broadcast over B in HBM.
    enc_pos = compute_pos_bias(params["enc_rel_bias"], Ts, Ts, True)
    causal = (jnp.arange(Tt)[None, :] <= jnp.arange(Tt)[:, None]).astype(jnp.float32)
    dec_pos = (compute_pos_bias(params["dec_rel_bias"], Tt, Tt, False)
               + (1.0 - causal)[None] * NEG)

    labels_col = labels.reshape(B * Tt, 1).astype(jnp.int32)
    enc_mask = attention_mask.astype(jnp.float32)                   # (B, Ts)

    enc = params["enc0"]
    dec = params["dec0"]
    inputs = (
        x_enc, y_dec, enc_mask, enc_pos, dec_pos, labels_col, emb,
        enc["ln1"], enc["sa"]["wq"], enc["sa"]["wkv"], enc["sa"]["wo"],
        enc["ln2"], enc["wi"], enc["wo_ff"], params["enc_final_ln"],
        dec["ln1"], dec["sa"]["wq"], dec["sa"]["wkv"], dec["sa"]["wo"],
        dec["ln2"], dec["ca"]["wq"], dec["ca"]["wkv"], dec["ca"]["wo"],
        dec["ln3"], dec["wi"], dec["wo_ff"], params["dec_final_ln"],
    )

    kernel = functools.partial(_t5_forward_kernel, B=B, Ts=Ts, Tt=Tt)
    vmem = pl.BlockSpec(memory_space=pltpu.MemorySpace.VMEM)
    logits2d, loss2d = pl.pallas_call(
        kernel,
        out_shape=(jax.ShapeDtypeStruct((B * Tt, VOCAB), jnp.float32),
                   jax.ShapeDtypeStruct((1, 1), jnp.float32)),
        in_specs=[vmem] * len(inputs),
        out_specs=(vmem, vmem),
        compiler_params=pltpu.CompilerParams(vmem_limit_bytes=32 * 1024 * 1024),
    )(*inputs)

    return {"loss": loss2d[0, 0], "logits": logits2d.reshape(B, Tt, VOCAB)}


# ---------------- deterministic parameter init ----------------
def init_params(key):
    keys = jax.random.split(key, 32)
    it = iter(keys)

    def nrm(shape, scale=0.05):
        return jax.random.normal(next(it), shape, jnp.float32) * scale

    def attn_p():
        return {"wq": nrm((D_MODEL, N_HEADS * D_KV)),
                "wkv": nrm((D_MODEL, 2 * N_HEADS * D_KV)),
                "wo": nrm((N_HEADS * D_KV, D_MODEL))}

    ones_d = lambda: jnp.ones((1, D_MODEL), jnp.float32)

    return {
        "embed": nrm((VOCAB, D_MODEL), 1.0),
        "enc_rel_bias": nrm((REL_BUCKETS, N_HEADS)),
        "dec_rel_bias": nrm((REL_BUCKETS, N_HEADS)),
        "enc0": {"ln1": ones_d(), "ln2": ones_d(), "sa": attn_p(),
                 "wi": nrm((D_MODEL, D_FF)), "wo_ff": nrm((D_FF, D_MODEL))},
        "enc_final_ln": ones_d(),
        "dec0": {"ln1": ones_d(), "ln2": ones_d(), "ln3": ones_d(),
                 "sa": attn_p(), "ca": attn_p(),
                 "wi": nrm((D_MODEL, D_FF)), "wo_ff": nrm((D_FF, D_MODEL))},
        "dec_final_ln": ones_d(),
    }


if __name__ == "__main__":
    key = jax.random.PRNGKey(0)
    pkey, ikey, lkey = jax.random.split(key, 3)
    params = init_params(pkey)

    B, Ts, Tt = 2, 8, 8
    input_ids = jax.random.randint(ikey, (B, Ts), 1, VOCAB, dtype=jnp.int32)
    attention_mask = jnp.ones((B, Ts), jnp.int32).at[1, 6:].set(0)
    labels = jax.random.randint(lkey, (B, Tt), 1, VOCAB, dtype=jnp.int32)
    labels = labels.at[1, 5:].set(-100)   # ignore_index positions

    fwd = jax.jit(t5_forward)
    out = fwd(params, input_ids, attention_mask, labels)
    jax.block_until_ready(out)
    assert out["logits"].shape == (B, Tt, VOCAB)
    assert bool(jnp.isfinite(out["loss"]))
    print("KERNEL_OK")
</pallas_src>

<mosaic_0001>
module attributes {stable_mosaic.version = 11 : i64} {
  func.func @_t5_forward_kernel(%arg0: memref<16x32xf32, #tpu.memory_space<vmem>>, %arg1: memref<16x32xf32, #tpu.memory_space<vmem>>, %arg2: memref<2x8xf32, #tpu.memory_space<vmem>>, %arg3: memref<2x8x8xf32, #tpu.memory_space<vmem>>, %arg4: memref<2x8x8xf32, #tpu.memory_space<vmem>>, %arg5: memref<16x1xi32, #tpu.memory_space<vmem>>, %arg6: memref<128x32xf32, #tpu.memory_space<vmem>>, %arg7: memref<1x32xf32, #tpu.memory_space<vmem>>, %arg8: memref<32x32xf32, #tpu.memory_space<vmem>>, %arg9: memref<32x64xf32, #tpu.memory_space<vmem>>, %arg10: memref<32x32xf32, #tpu.memory_space<vmem>>, %arg11: memref<1x32xf32, #tpu.memory_space<vmem>>, %arg12: memref<32x64xf32, #tpu.memory_space<vmem>>, %arg13: memref<64x32xf32, #tpu.memory_space<vmem>>, %arg14: memref<1x32xf32, #tpu.memory_space<vmem>>, %arg15: memref<1x32xf32, #tpu.memory_space<vmem>>, %arg16: memref<32x32xf32, #tpu.memory_space<vmem>>, %arg17: memref<32x64xf32, #tpu.memory_space<vmem>>, %arg18: memref<32x32xf32, #tpu.memory_space<vmem>>, %arg19: memref<1x32xf32, #tpu.memory_space<vmem>>, %arg20: memref<32x32xf32, #tpu.memory_space<vmem>>, %arg21: memref<32x64xf32, #tpu.memory_space<vmem>>, %arg22: memref<32x32xf32, #tpu.memory_space<vmem>>, %arg23: memref<1x32xf32, #tpu.memory_space<vmem>>, %arg24: memref<32x64xf32, #tpu.memory_space<vmem>>, %arg25: memref<64x32xf32, #tpu.memory_space<vmem>>, %arg26: memref<1x32xf32, #tpu.memory_space<vmem>>, %arg27: memref<16x128xf32, #tpu.memory_space<vmem>>, %arg28: memref<1x1xf32, #tpu.memory_space<vmem>>) attributes {dimension_semantics = [], scalar_prefetch = 0 : i64, scratch_operands = 0 : i64, tpu.core_type = #tpu.core_type<tc>} {
    %c0 = arith.constant 0 : index
    %c0_0 = arith.constant 0 : index
    %0 = vector.load %arg2[%c0, %c0_0] : memref<2x8xf32, #tpu.memory_space<vmem>>, vector<2x8xf32>
    %cst = arith.constant 1.000000e+00 : f32
    %1 = vector.broadcast %cst : f32 to vector<2x8xf32>
    %2 = arith.subf %1, %0 : vector<2x8xf32>
    %3 = vector.shape_cast %2 : vector<2x8xf32> to vector<2x1x8xf32>
    %cst_1 = arith.constant -1.000000e+09 : f32
    %4 = vector.broadcast %cst_1 : f32 to vector<2x1x8xf32>
    %5 = arith.mulf %3, %4 : vector<2x1x8xf32>
    %c0_2 = arith.constant 0 : index
    %c0_3 = arith.constant 0 : index
    %c0_4 = arith.constant 0 : index
    %6 = vector.load %arg3[%c0_2, %c0_3, %c0_4] : memref<2x8x8xf32, #tpu.memory_space<vmem>>, vector<2x8x8xf32>
    %c0_5 = arith.constant 0 : index
    %c0_6 = arith.constant 0 : index
    %c0_7 = arith.constant 0 : index
    %7 = vector.load %arg4[%c0_5, %c0_6, %c0_7] : memref<2x8x8xf32, #tpu.memory_space<vmem>>, vector<2x8x8xf32>
    %c0_8 = arith.constant 0 : index
    %c0_9 = arith.constant 0 : index
    %8 = vector.load %arg0[%c0_8, %c0_9] : memref<16x32xf32, #tpu.memory_space<vmem>>, vector<16x32xf32>
    %9 = arith.mulf %8, %8 : vector<16x32xf32>
    %cst_10 = arith.constant dense<0.000000e+00> : vector<16xf32>
    %10 = vector.multi_reduction <add>, %9, %cst_10 [1] : vector<16x32xf32> to vector<16xf32>
    %11 = vector.shape_cast %10 : vector<16xf32> to vector<16x1xf32>
    %cst_11 = arith.constant 3.200000e+01 : f32
    %12 = vector.broadcast %cst_11 : f32 to vector<16x1xf32>
    %13 = arith.divf %11, %12 : vector<16x1xf32>
    %cst_12 = arith.constant 9.99999997E-7 : f32
    %14 = vector.broadcast %cst_12 : f32 to vector<16x1xf32>
    %15 = arith.addf %13, %14 : vector<16x1xf32>
    %16 = math.rsqrt %15 : vector<16x1xf32>
    %17 = vector.broadcast %16 : vector<16x1xf32> to vector<16x32xf32>
    %18 = arith.mulf %8, %17 : vector<16x32xf32>
    %c0_13 = arith.constant 0 : index
    %c0_14 = arith.constant 0 : index
    %19 = vector.load %arg7[%c0_13, %c0_14] : memref<1x32xf32, #tpu.memory_space<vmem>>, vector<1x32xf32>
    %20 = vector.broadcast %19 : vector<1x32xf32> to vector<16x32xf32>
    %21 = arith.mulf %18, %20 : vector<16x32xf32>
    %c0_15 = arith.constant 0 : index
    %c0_16 = arith.constant 0 : index
    %22 = vector.load %arg8[%c0_15, %c0_16] : memref<32x32xf32, #tpu.memory_space<vmem>>, vector<32x32xf32>
    %cst_17 = arith.constant dense<0.000000e+00> : vector<16x32xf32>
    %23 = tpu.matmul %21, %22, %cst_17 {dimension_numbers = #tpu.dot_dimension_numbers<[1], [0], [0], [1], [0, 0, 1, 1], [], []>} : vector<16x32xf32>, vector<32x32xf32>, vector<16x32xf32> -> vector<16x32xf32>
    %c0_18 = arith.constant 0 : index
    %c0_19 = arith.constant 0 : index
    %24 = vector.load %arg9[%c0_18, %c0_19] : memref<32x64xf32, #tpu.memory_space<vmem>>, vector<32x64xf32>
    %cst_20 = arith.constant dense<0.000000e+00> : vector<16x64xf32>
    %25 = tpu.matmul %21, %24, %cst_20 {dimension_numbers = #tpu.dot_dimension_numbers<[1], [0], [0], [1], [0, 0, 1, 1], [], []>} : vector<16x32xf32>, vector<32x64xf32>, vector<16x64xf32> -> vector<16x64xf32>
    %26 = vector.shape_cast %23 : vector<16x32xf32> to vector<2x8x32xf32>
    %27 = vector.shape_cast %25 : vector<16x64xf32> to vector<2x8x64xf32>
    %c0_21 = arith.constant 0 : index
    %c0_22 = arith.constant 0 : index
    %28 = vector.load %arg10[%c0_21, %c0_22] : memref<32x32xf32, #tpu.memory_space<vmem>>, vector<32x32xf32>
    %cst_23 = arith.constant 0.000000e+00 : f32
    %29 = vector.broadcast %cst_23 : f32 to vector<16x32xf32>
    %30 = vector.extract_strided_slice %26 {offsets = [0, 0, 0], sizes = [2, 8, 16], strides = [1, 1, 1]} : vector<2x8x32xf32> to vector<2x8x16xf32>
    %31 = vector.extract_strided_slice %27 {offsets = [0, 0, 0], sizes = [2, 8, 16], strides = [1, 1, 1]} : vector<2x8x64xf32> to vector<2x8x16xf32>
    %32 = vector.extract_strided_slice %27 {offsets = [0, 0, 32], sizes = [2, 8, 16], strides = [1, 1, 1]} : vector<2x8x64xf32> to vector<2x8x16xf32>
    "tpu.trace_start"() <{level = 10 : i32, message = "bqd,bkd->bqk"}> : () -> ()
    %cst_24 = arith.constant dense<0.000000e+00> : vector<2x8x8xf32>
    %33 = tpu.matmul %30, %31, %cst_24 {dimension_numbers = #tpu.dot_dimension_numbers<[2], [2], [1], [1], [0, 0, 0, 1, 1, 1], [0], [0]>} : vector<2x8x16xf32>, vector<2x8x16xf32>, vector<2x8x8xf32> -> vector<2x8x8xf32>
    "tpu.trace_stop"() : () -> ()
    %34 = vector.extract_strided_slice %6 {offsets = [0, 0, 0], sizes = [1, 8, 8], strides = [1, 1, 1]} : vector<2x8x8xf32> to vector<1x8x8xf32>
    %35 = vector.shape_cast %34 : vector<1x8x8xf32> to vector<8x8xf32>
    %36 = vector.shape_cast %35 : vector<8x8xf32> to vector<1x8x8xf32>
    %37 = vector.broadcast %36 : vector<1x8x8xf32> to vector<2x8x8xf32>
    %38 = arith.addf %33, %37 : vector<2x8x8xf32>
    %39 = vector.broadcast %5 : vector<2x1x8xf32> to vector<2x8x8xf32>
    %40 = arith.addf %38, %39 : vector<2x8x8xf32>
    %cst_25 = arith.constant dense<0xFF800000> : vector<2x8xf32>
    %41 = vector.multi_reduction <maximumf>, %40, %cst_25 [2] : vector<2x8x8xf32> to vector<2x8xf32>
    %42 = vector.shape_cast %41 : vector<2x8xf32> to vector<2x8x1xf32>
    %43 = vector.broadcast %42 : vector<2x8x1xf32> to vector<2x8x8xf32>
    %44 = arith.subf %40, %43 : vector<2x8x8xf32>
    %45 = math.exp %44 : vector<2x8x8xf32>
    %cst_26 = arith.constant dense<0.000000e+00> : vector<2x8xf32>
    %46 = vector.multi_reduction <add>, %45, %cst_26 [2] : vector<2x8x8xf32> to vector<2x8xf32>
    %47 = vector.shape_cast %46 : vector<2x8xf32> to vector<2x8x1xf32>
    %48 = tpu.reciprocal %47 : vector<2x8x1xf32> -> vector<2x8x1xf32>
    %49 = vector.broadcast %48 : vector<2x8x1xf32> to vector<2x8x8xf32>
    %50 = arith.mulf %45, %49 : vector<2x8x8xf32>
    "tpu.trace_start"() <{level = 10 : i32, message = "bqk,bkd->bqd"}> : () -> ()
    %cst_27 = arith.constant dense<0.000000e+00> : vector<2x8x16xf32>
    %51 = tpu.matmul %50, %32, %cst_27 {dimension_numbers = #tpu.dot_dimension_numbers<[2], [1], [1], [2], [0, 0, 0, 1, 1, 2], [0], [0]>} : vector<2x8x8xf32>, vector<2x8x16xf32>, vector<2x8x16xf32> -> vector<2x8x16xf32>
    "tpu.trace_stop"() : () -> ()
    %52 = vector.shape_cast %51 : vector<2x8x16xf32> to vector<16x16xf32>
    %53 = vector.extract_strided_slice %28 {offsets = [0, 0], sizes = [16, 32], strides = [1, 1]} : vector<32x32xf32> to vector<16x32xf32>
    %cst_28 = arith.constant dense<0.000000e+00> : vector<16x32xf32>
    %54 = tpu.matmul %52, %53, %cst_28 {dimension_numbers = #tpu.dot_dimension_numbers<[1], [0], [0], [1], [0, 0, 1, 1], [], []>} : vector<16x16xf32>, vector<16x32xf32>, vector<16x32xf32> -> vector<16x32xf32>
    %55 = arith.addf %29, %54 : vector<16x32xf32>
    %56 = vector.extract_strided_slice %26 {offsets = [0, 0, 16], sizes = [2, 8, 16], strides = [1, 1, 1]} : vector<2x8x32xf32> to vector<2x8x16xf32>
    %57 = vector.extract_strided_slice %27 {offsets = [0, 0, 16], sizes = [2, 8, 16], strides = [1, 1, 1]} : vector<2x8x64xf32> to vector<2x8x16xf32>
    %58 = vector.extract_strided_slice %27 {offsets = [0, 0, 48], sizes = [2, 8, 16], strides = [1, 1, 1]} : vector<2x8x64xf32> to vector<2x8x16xf32>
    "tpu.trace_start"() <{level = 10 : i32, message = "bqd,bkd->bqk"}> : () -> ()
    %cst_29 = arith.constant dense<0.000000e+00> : vector<2x8x8xf32>
    %59 = tpu.matmul %56, %57, %cst_29 {dimension_numbers = #tpu.dot_dimension_numbers<[2], [2], [1], [1], [0, 0, 0, 1, 1, 1], [0], [0]>} : vector<2x8x16xf32>, vector<2x8x16xf32>, vector<2x8x8xf32> -> vector<2x8x8xf32>
    "tpu.trace_stop"() : () -> ()
    %60 = vector.extract_strided_slice %6 {offsets = [1, 0, 0], sizes = [1, 8, 8], strides = [1, 1, 1]} : vector<2x8x8xf32> to vector<1x8x8xf32>
    %61 = vector.shape_cast %60 : vector<1x8x8xf32> to vector<8x8xf32>
    %62 = vector.shape_cast %61 : vector<8x8xf32> to vector<1x8x8xf32>
    %63 = vector.broadcast %62 : vector<1x8x8xf32> to vector<2x8x8xf32>
    %64 = arith.addf %59, %63 : vector<2x8x8xf32>
    %65 = vector.broadcast %5 : vector<2x1x8xf32> to vector<2x8x8xf32>
    %66 = arith.addf %64, %65 : vector<2x8x8xf32>
    %cst_30 = arith.constant dense<0xFF800000> : vector<2x8xf32>
    %67 = vector.multi_reduction <maximumf>, %66, %cst_30 [2] : vector<2x8x8xf32> to vector<2x8xf32>
    %68 = vector.shape_cast %67 : vector<2x8xf32> to vector<2x8x1xf32>
    %69 = vector.broadcast %68 : vector<2x8x1xf32> to vector<2x8x8xf32>
    %70 = arith.subf %66, %69 : vector<2x8x8xf32>
    %71 = math.exp %70 : vector<2x8x8xf32>
    %cst_31 = arith.constant dense<0.000000e+00> : vector<2x8xf32>
    %72 = vector.multi_reduction <add>, %71, %cst_31 [2] : vector<2x8x8xf32> to vector<2x8xf32>
    %73 = vector.shape_cast %72 : vector<2x8xf32> to vector<2x8x1xf32>
    %74 = tpu.reciprocal %73 : vector<2x8x1xf32> -> vector<2x8x1xf32>
    %75 = vector.broadcast %74 : vector<2x8x1xf32> to vector<2x8x8xf32>
    %76 = arith.mulf %71, %75 : vector<2x8x8xf32>
    "tpu.trace_start"() <{level = 10 : i32, message = "bqk,bkd->bqd"}> : () -> ()
    %cst_32 = arith.constant dense<0.000000e+00> : vector<2x8x16xf32>
    %77 = tpu.matmul %76, %58, %cst_32 {dimension_numbers = #tpu.dot_dimension_numbers<[2], [1], [1], [2], [0, 0, 0, 1, 1, 2], [0], [0]>} : vector<2x8x8xf32>, vector<2x8x16xf32>, vector<2x8x16xf32> -> vector<2x8x16xf32>
    "tpu.trace_stop"() : () -> ()
    %78 = vector.shape_cast %77 : vector<2x8x16xf32> to vector<16x16xf32>
    %79 = vector.extract_strided_slice %28 {offsets = [16, 0], sizes = [16, 32], strides = [1, 1]} : vector<32x32xf32> to vector<16x32xf32>
    %cst_33 = arith.constant dense<0.000000e+00> : vector<16x32xf32>
    %80 = tpu.matmul %78, %79, %cst_33 {dimension_numbers = #tpu.dot_dimension_numbers<[1], [0], [0], [1], [0, 0, 1, 1], [], []>} : vector<16x16xf32>, vector<16x32xf32>, vector<16x32xf32> -> vector<16x32xf32>
    %81 = arith.addf %55, %80 : vector<16x32xf32>
    %82 = arith.addf %8, %81 : vector<16x32xf32>
    %83 = arith.mulf %82, %82 : vector<16x32xf32>
    %cst_34 = arith.constant dense<0.000000e+00> : vector<16xf32>
    %84 = vector.multi_reduction <add>, %83, %cst_34 [1] : vector<16x32xf32> to vector<16xf32>
    %85 = vector.shape_cast %84 : vector<16xf32> to vector<16x1xf32>
    %cst_35 = arith.constant 3.200000e+01 : f32
    %86 = vector.broadcast %cst_35 : f32 to vector<16x1xf32>
    %87 = arith.divf %85, %86 : vector<16x1xf32>
    %cst_36 = arith.constant 9.99999997E-7 : f32
    %88 = vector.broadcast %cst_36 : f32 to vector<16x1xf32>
    %89 = arith.addf %87, %88 : vector<16x1xf32>
    %90 = math.rsqrt %89 : vector<16x1xf32>
    %91 = vector.broadcast %90 : vector<16x1xf32> to vector<16x32xf32>
    %92 = arith.mulf %82, %91 : vector<16x32xf32>
    %c0_37 = arith.constant 0 : index
    %c0_38 = arith.constant 0 : index
    %93 = vector.load %arg11[%c0_37, %c0_38] : memref<1x32xf32, #tpu.memory_space<vmem>>, vector<1x32xf32>
    %94 = vector.broadcast %93 : vector<1x32xf32> to vector<16x32xf32>
    %95 = arith.mulf %92, %94 : vector<16x32xf32>
    %c0_39 = arith.constant 0 : index
    %c0_40 = arith.constant 0 : index
    %96 = vector.load %arg12[%c0_39, %c0_40] : memref<32x64xf32, #tpu.memory_space<vmem>>, vector<32x64xf32>
    %cst_41 = arith.constant dense<0.000000e+00> : vector<16x64xf32>
    %97 = tpu.matmul %95, %96, %cst_41 {dimension_numbers = #tpu.dot_dimension_numbers<[1], [0], [0], [1], [0, 0, 1, 1], [], []>} : vector<16x32xf32>, vector<32x64xf32>, vector<16x64xf32> -> vector<16x64xf32>
    %cst_42 = arith.constant 0.000000e+00 : f32
    %98 = vector.broadcast %cst_42 : f32 to vector<16x64xf32>
    %99 = arith.maximumf %97, %98 : vector<16x64xf32>
    %c0_43 = arith.constant 0 : index
    %c0_44 = arith.constant 0 : index
    %100 = vector.load %arg13[%c0_43, %c0_44] : memref<64x32xf32, #tpu.memory_space<vmem>>, vector<64x32xf32>
    %cst_45 = arith.constant dense<0.000000e+00> : vector<16x32xf32>
    %101 = tpu.matmul %99, %100, %cst_45 {dimension_numbers = #tpu.dot_dimension_numbers<[1], [0], [0], [1], [0, 0, 1, 1], [], []>} : vector<16x64xf32>, vector<64x32xf32>, vector<16x32xf32> -> vector<16x32xf32>
    %102 = arith.addf %82, %101 : vector<16x32xf32>
    %103 = arith.mulf %102, %102 : vector<16x32xf32>
    %cst_46 = arith.constant dense<0.000000e+00> : vector<16xf32>
    %104 = vector.multi_reduction <add>, %103, %cst_46 [1] : vector<16x32xf32> to vector<16xf32>
    %105 = vector.shape_cast %104 : vector<16xf32> to vector<16x1xf32>
    %cst_47 = arith.constant 3.200000e+01 : f32
    %106 = vector.broadcast %cst_47 : f32 to vector<16x1xf32>
    %107 = arith.divf %105, %106 : vector<16x1xf32>
    %cst_48 = arith.constant 9.99999997E-7 : f32
    %108 = vector.broadcast %cst_48 : f32 to vector<16x1xf32>
    %109 = arith.addf %107, %108 : vector<16x1xf32>
    %110 = math.rsqrt %109 : vector<16x1xf32>
    %111 = vector.broadcast %110 : vector<16x1xf32> to vector<16x32xf32>
    %112 = arith.mulf %102, %111 : vector<16x32xf32>
    %c0_49 = arith.constant 0 : index
    %c0_50 = arith.constant 0 : index
    %113 = vector.load %arg14[%c0_49, %c0_50] : memref<1x32xf32, #tpu.memory_space<vmem>>, vector<1x32xf32>
    %114 = vector.broadcast %113 : vector<1x32xf32> to vector<16x32xf32>
    %115 = arith.mulf %112, %114 : vector<16x32xf32>
    %c0_51 = arith.constant 0 : index
    %c0_52 = arith.constant 0 : index
    %116 = vector.load %arg1[%c0_51, %c0_52] : memref<16x32xf32, #tpu.memory_space<vmem>>, vector<16x32xf32>
    %117 = arith.mulf %116, %116 : vector<16x32xf32>
    %cst_53 = arith.constant dense<0.000000e+00> : vector<16xf32>
    %118 = vector.multi_reduction <add>, %117, %cst_53 [1] : vector<16x32xf32> to vector<16xf32>
    %119 = vector.shape_cast %118 : vector<16xf32> to vector<16x1xf32>
    %cst_54 = arith.constant 3.200000e+01 : f32
    %120 = vector.broadcast %cst_54 : f32 to vector<16x1xf32>
    %121 = arith.divf %119, %120 : vector<16x1xf32>
    %cst_55 = arith.constant 9.99999997E-7 : f32
    %122 = vector.broadcast %cst_55 : f32 to vector<16x1xf32>
    %123 = arith.addf %121, %122 : vector<16x1xf32>
    %124 = math.rsqrt %123 : vector<16x1xf32>
    %125 = vector.broadcast %124 : vector<16x1xf32> to vector<16x32xf32>
    %126 = arith.mulf %116, %125 : vector<16x32xf32>
    %c0_56 = arith.constant 0 : index
    %c0_57 = arith.constant 0 : index
    %127 = vector.load %arg15[%c0_56, %c0_57] : memref<1x32xf32, #tpu.memory_space<vmem>>, vector<1x32xf32>
    %128 = vector.broadcast %127 : vector<1x32xf32> to vector<16x32xf32>
    %129 = arith.mulf %126, %128 : vector<16x32xf32>
    %c0_58 = arith.constant 0 : index
    %c0_59 = arith.constant 0 : index
    %130 = vector.load %arg16[%c0_58, %c0_59] : memref<32x32xf32, #tpu.memory_space<vmem>>, vector<32x32xf32>
    %cst_60 = arith.constant dense<0.000000e+00> : vector<16x32xf32>
    %131 = tpu.matmul %129, %130, %cst_60 {dimension_numbers = #tpu.dot_dimension_numbers<[1], [0], [0], [1], [0, 0, 1, 1], [], []>} : vector<16x32xf32>, vector<32x32xf32>, vector<16x32xf32> -> vector<16x32xf32>
    %c0_61 = arith.constant 0 : index
    %c0_62 = arith.constant 0 : index
    %132 = vector.load %arg17[%c0_61, %c0_62] : memref<32x64xf32, #tpu.memory_space<vmem>>, vector<32x64xf32>
    %cst_63 = arith.constant dense<0.000000e+00> : vector<16x64xf32>
    %133 = tpu.matmul %129, %132, %cst_63 {dimension_numbers = #tpu.dot_dimension_numbers<[1], [0], [0], [1], [0, 0, 1, 1], [], []>} : vector<16x32xf32>, vector<32x64xf32>, vector<16x64xf32> -> vector<16x64xf32>
    %134 = vector.shape_cast %131 : vector<16x32xf32> to vector<2x8x32xf32>
    %135 = vector.shape_cast %133 : vector<16x64xf32> to vector<2x8x64xf32>
    %c0_64 = arith.constant 0 : index
    %c0_65 = arith.constant 0 : index
    %136 = vector.load %arg18[%c0_64, %c0_65] : memref<32x32xf32, #tpu.memory_space<vmem>>, vector<32x32xf32>
    %cst_66 = arith.constant 0.000000e+00 : f32
    %137 = vector.broadcast %cst_66 : f32 to vector<16x32xf32>
    %138 = vector.extract_strided_slice %134 {offsets = [0, 0, 0], sizes = [2, 8, 16], strides = [1, 1, 1]} : vector<2x8x32xf32> to vector<2x8x16xf32>
    %139 = vector.extract_strided_slice %135 {offsets = [0, 0, 0], sizes = [2, 8, 16], strides = [1, 1, 1]} : vector<2x8x64xf32> to vector<2x8x16xf32>
    %140 = vector.extract_strided_slice %135 {offsets = [0, 0, 32], sizes = [2, 8, 16], strides = [1, 1, 1]} : vector<2x8x64xf32> to vector<2x8x16xf32>
    "tpu.trace_start"() <{level = 10 : i32, message = "bqd,bkd->bqk"}> : () -> ()
    %cst_67 = arith.constant dense<0.000000e+00> : vector<2x8x8xf32>
    %141 = tpu.matmul %138, %139, %cst_67 {dimension_numbers = #tpu.dot_dimension_numbers<[2], [2], [1], [1], [0, 0, 0, 1, 1, 1], [0], [0]>} : vector<2x8x16xf32>, vector<2x8x16xf32>, vector<2x8x8xf32> -> vector<2x8x8xf32>
    "tpu.trace_stop"() : () -> ()
    %142 = vector.extract_strided_slice %7 {offsets = [0, 0, 0], sizes = [1, 8, 8], strides = [1, 1, 1]} : vector<2x8x8xf32> to vector<1x8x8xf32>
    %143 = vector.shape_cast %142 : vector<1x8x8xf32> to vector<8x8xf32>
    %144 = vector.shape_cast %143 : vector<8x8xf32> to vector<1x8x8xf32>
    %145 = vector.broadcast %144 : vector<1x8x8xf32> to vector<2x8x8xf32>
    %146 = arith.addf %141, %145 : vector<2x8x8xf32>
    %cst_68 = arith.constant dense<0xFF800000> : vector<2x8xf32>
    %147 = vector.multi_reduction <maximumf>, %146, %cst_68 [2] : vector<2x8x8xf32> to vector<2x8xf32>
    %148 = vector.shape_cast %147 : vector<2x8xf32> to vector<2x8x1xf32>
    %149 = vector.broadcast %148 : vector<2x8x1xf32> to vector<2x8x8xf32>
    %150 = arith.subf %146, %149 : vector<2x8x8xf32>
    %151 = math.exp %150 : vector<2x8x8xf32>
    %cst_69 = arith.constant dense<0.000000e+00> : vector<2x8xf32>
    %152 = vector.multi_reduction <add>, %151, %cst_69 [2] : vector<2x8x8xf32> to vector<2x8xf32>
    %153 = vector.shape_cast %152 : vector<2x8xf32> to vector<2x8x1xf32>
    %154 = tpu.reciprocal %153 : vector<2x8x1xf32> -> vector<2x8x1xf32>
    %155 = vector.broadcast %154 : vector<2x8x1xf32> to vector<2x8x8xf32>
    %156 = arith.mulf %151, %155 : vector<2x8x8xf32>
    "tpu.trace_start"() <{level = 10 : i32, message = "bqk,bkd->bqd"}> : () -> ()
    %cst_70 = arith.constant dense<0.000000e+00> : vector<2x8x16xf32>
    %157 = tpu.matmul %156, %140, %cst_70 {dimension_numbers = #tpu.dot_dimension_numbers<[2], [1], [1], [2], [0, 0, 0, 1, 1, 2], [0], [0]>} : vector<2x8x8xf32>, vector<2x8x16xf32>, vector<2x8x16xf32> -> vector<2x8x16xf32>
    "tpu.trace_stop"() : () -> ()
    %158 = vector.shape_cast %157 : vector<2x8x16xf32> to vector<16x16xf32>
    %159 = vector.extract_strided_slice %136 {offsets = [0, 0], sizes = [16, 32], strides = [1, 1]} : vector<32x32xf32> to vector<16x32xf32>
    %cst_71 = arith.constant dense<0.000000e+00> : vector<16x32xf32>
    %160 = tpu.matmul %158, %159, %cst_71 {dimension_numbers = #tpu.dot_dimension_numbers<[1], [0], [0], [1], [0, 0, 1, 1], [], []>} : vector<16x16xf32>, vector<16x32xf32>, vector<16x32xf32> -> vector<16x32xf32>
    %161 = arith.addf %137, %160 : vector<16x32xf32>
    %162 = vector.extract_strided_slice %134 {offsets = [0, 0, 16], sizes = [2, 8, 16], strides = [1, 1, 1]} : vector<2x8x32xf32> to vector<2x8x16xf32>
    %163 = vector.extract_strided_slice %135 {offsets = [0, 0, 16], sizes = [2, 8, 16], strides = [1, 1, 1]} : vector<2x8x64xf32> to vector<2x8x16xf32>
    %164 = vector.extract_strided_slice %135 {offsets = [0, 0, 48], sizes = [2, 8, 16], strides = [1, 1, 1]} : vector<2x8x64xf32> to vector<2x8x16xf32>
    "tpu.trace_start"() <{level = 10 : i32, message = "bqd,bkd->bqk"}> : () -> ()
    %cst_72 = arith.constant dense<0.000000e+00> : vector<2x8x8xf32>
    %165 = tpu.matmul %162, %163, %cst_72 {dimension_numbers = #tpu.dot_dimension_numbers<[2], [2], [1], [1], [0, 0, 0, 1, 1, 1], [0], [0]>} : vector<2x8x16xf32>, vector<2x8x16xf32>, vector<2x8x8xf32> -> vector<2x8x8xf32>
    "tpu.trace_stop"() : () -> ()
    %166 = vector.extract_strided_slice %7 {offsets = [1, 0, 0], sizes = [1, 8, 8], strides = [1, 1, 1]} : vector<2x8x8xf32> to vector<1x8x8xf32>
    %167 = vector.shape_cast %166 : vector<1x8x8xf32> to vector<8x8xf32>
    %168 = vector.shape_cast %167 : vector<8x8xf32> to vector<1x8x8xf32>
    %169 = vector.broadcast %168 : vector<1x8x8xf32> to vector<2x8x8xf32>
    %170 = arith.addf %165, %169 : vector<2x8x8xf32>
    %cst_73 = arith.constant dense<0xFF800000> : vector<2x8xf32>
    %171 = vector.multi_reduction <maximumf>, %170, %cst_73 [2] : vector<2x8x8xf32> to vector<2x8xf32>
    %172 = vector.shape_cast %171 : vector<2x8xf32> to vector<2x8x1xf32>
    %173 = vector.broadcast %172 : vector<2x8x1xf32> to vector<2x8x8xf32>
    %174 = arith.subf %170, %173 : vector<2x8x8xf32>
    %175 = math.exp %174 : vector<2x8x8xf32>
    %cst_74 = arith.constant dense<0.000000e+00> : vector<2x8xf32>
    %176 = vector.multi_reduction <add>, %175, %cst_74 [2] : vector<2x8x8xf32> to vector<2x8xf32>
    %177 = vector.shape_cast %176 : vector<2x8xf32> to vector<2x8x1xf32>
    %178 = tpu.reciprocal %177 : vector<2x8x1xf32> -> vector<2x8x1xf32>
    %179 = vector.broadcast %178 : vector<2x8x1xf32> to vector<2x8x8xf32>
    %180 = arith.mulf %175, %179 : vector<2x8x8xf32>
    "tpu.trace_start"() <{level = 10 : i32, message = "bqk,bkd->bqd"}> : () -> ()
    %cst_75 = arith.constant dense<0.000000e+00> : vector<2x8x16xf32>
    %181 = tpu.matmul %180, %164, %cst_75 {dimension_numbers = #tpu.dot_dimension_numbers<[2], [1], [1], [2], [0, 0, 0, 1, 1, 2], [0], [0]>} : vector<2x8x8xf32>, vector<2x8x16xf32>, vector<2x8x16xf32> -> vector<2x8x16xf32>
    "tpu.trace_stop"() : () -> ()
    %182 = vector.shape_cast %181 : vector<2x8x16xf32> to vector<16x16xf32>
    %183 = vector.extract_strided_slice %136 {offsets = [16, 0], sizes = [16, 32], strides = [1, 1]} : vector<32x32xf32> to vector<16x32xf32>
    %cst_76 = arith.constant dense<0.000000e+00> : vector<16x32xf32>
    %184 = tpu.matmul %182, %183, %cst_76 {dimension_numbers = #tpu.dot_dimension_numbers<[1], [0], [0], [1], [0, 0, 1, 1], [], []>} : vector<16x16xf32>, vector<16x32xf32>, vector<16x32xf32> -> vector<16x32xf32>
    %185 = arith.addf %161, %184 : vector<16x32xf32>
    %186 = arith.addf %116, %185 : vector<16x32xf32>
    %187 = arith.mulf %186, %186 : vector<16x32xf32>
    %cst_77 = arith.constant dense<0.000000e+00> : vector<16xf32>
    %188 = vector.multi_reduction <add>, %187, %cst_77 [1] : vector<16x32xf32> to vector<16xf32>
    %189 = vector.shape_cast %188 : vector<16xf32> to vector<16x1xf32>
    %cst_78 = arith.constant 3.200000e+01 : f32
    %190 = vector.broadcast %cst_78 : f32 to vector<16x1xf32>
    %191 = arith.divf %189, %190 : vector<16x1xf32>
    %cst_79 = arith.constant 9.99999997E-7 : f32
    %192 = vector.broadcast %cst_79 : f32 to vector<16x1xf32>
    %193 = arith.addf %191, %192 : vector<16x1xf32>
    %194 = math.rsqrt %193 : vector<16x1xf32>
    %195 = vector.broadcast %194 : vector<16x1xf32> to vector<16x32xf32>
    %196 = arith.mulf %186, %195 : vector<16x32xf32>
    %c0_80 = arith.constant 0 : index
    %c0_81 = arith.constant 0 : index
    %197 = vector.load %arg19[%c0_80, %c0_81] : memref<1x32xf32, #tpu.memory_space<vmem>>, vector<1x32xf32>
    %198 = vector.broadcast %197 : vector<1x32xf32> to vector<16x32xf32>
    %199 = arith.mulf %196, %198 : vector<16x32xf32>
    %c0_82 = arith.constant 0 : index
    %c0_83 = arith.constant 0 : index
    %200 = vector.load %arg20[%c0_82, %c0_83] : memref<32x32xf32, #tpu.memory_space<vmem>>, vector<32x32xf32>
    %cst_84 = arith.constant dense<0.000000e+00> : vector<16x32xf32>
    %201 = tpu.matmul %199, %200, %cst_84 {dimension_numbers = #tpu.dot_dimension_numbers<[1], [0], [0], [1], [0, 0, 1, 1], [], []>} : vector<16x32xf32>, vector<32x32xf32>, vector<16x32xf32> -> vector<16x32xf32>
    %c0_85 = arith.constant 0 : index
    %c0_86 = arith.constant 0 : index
    %202 = vector.load %arg21[%c0_85, %c0_86] : memref<32x64xf32, #tpu.memory_space<vmem>>, vector<32x64xf32>
    %cst_87 = arith.constant dense<0.000000e+00> : vector<16x64xf32>
    %203 = tpu.matmul %115, %202, %cst_87 {dimension_numbers = #tpu.dot_dimension_numbers<[1], [0], [0], [1], [0, 0, 1, 1], [], []>} : vector<16x32xf32>, vector<32x64xf32>, vector<16x64xf32> -> vector<16x64xf32>
    %204 = vector.shape_cast %201 : vector<16x32xf32> to vector<2x8x32xf32>
    %205 = vector.shape_cast %203 : vector<16x64xf32> to vector<2x8x64xf32>
    %c0_88 = arith.constant 0 : index
    %c0_89 = arith.constant 0 : index
    %206 = vector.load %arg22[%c0_88, %c0_89] : memref<32x32xf32, #tpu.memory_space<vmem>>, vector<32x32xf32>
    %cst_90 = arith.constant 0.000000e+00 : f32
    %207 = vector.broadcast %cst_90 : f32 to vector<16x32xf32>
    %208 = vector.extract_strided_slice %204 {offsets = [0, 0, 0], sizes = [2, 8, 16], strides = [1, 1, 1]} : vector<2x8x32xf32> to vector<2x8x16xf32>
    %209 = vector.extract_strided_slice %205 {offsets = [0, 0, 0], sizes = [2, 8, 16], strides = [1, 1, 1]} : vector<2x8x64xf32> to vector<2x8x16xf32>
    %210 = vector.extract_strided_slice %205 {offsets = [0, 0, 32], sizes = [2, 8, 16], strides = [1, 1, 1]} : vector<2x8x64xf32> to vector<2x8x16xf32>
    "tpu.trace_start"() <{level = 10 : i32, message = "bqd,bkd->bqk"}> : () -> ()
    %cst_91 = arith.constant dense<0.000000e+00> : vector<2x8x8xf32>
    %211 = tpu.matmul %208, %209, %cst_91 {dimension_numbers = #tpu.dot_dimension_numbers<[2], [2], [1], [1], [0, 0, 0, 1, 1, 1], [0], [0]>} : vector<2x8x16xf32>, vector<2x8x16xf32>, vector<2x8x8xf32> -> vector<2x8x8xf32>
    "tpu.trace_stop"() : () -> ()
    %212 = vector.broadcast %5 : vector<2x1x8xf32> to vector<2x8x8xf32>
    %213 = arith.addf %211, %212 : vector<2x8x8xf32>
    %cst_92 = arith.constant dense<0xFF800000> : vector<2x8xf32>
    %214 = vector.multi_reduction <maximumf>, %213, %cst_92 [2] : vector<2x8x8xf32> to vector<2x8xf32>
    %215 = vector.shape_cast %214 : vector<2x8xf32> to vector<2x8x1xf32>
    %216 = vector.broadcast %215 : vector<2x8x1xf32> to vector<2x8x8xf32>
    %217 = arith.subf %213, %216 : vector<2x8x8xf32>
    %218 = math.exp %217 : vector<2x8x8xf32>
    %cst_93 = arith.constant dense<0.000000e+00> : vector<2x8xf32>
    %219 = vector.multi_reduction <add>, %218, %cst_93 [2] : vector<2x8x8xf32> to vector<2x8xf32>
    %220 = vector.shape_cast %219 : vector<2x8xf32> to vector<2x8x1xf32>
    %221 = tpu.reciprocal %220 : vector<2x8x1xf32> -> vector<2x8x1xf32>
    %222 = vector.broadcast %221 : vector<2x8x1xf32> to vector<2x8x8xf32>
    %223 = arith.mulf %218, %222 : vector<2x8x8xf32>
    "tpu.trace_start"() <{level = 10 : i32, message = "bqk,bkd->bqd"}> : () -> ()
    %cst_94 = arith.constant dense<0.000000e+00> : vector<2x8x16xf32>
    %224 = tpu.matmul %223, %210, %cst_94 {dimension_numbers = #tpu.dot_dimension_numbers<[2], [1], [1], [2], [0, 0, 0, 1, 1, 2], [0], [0]>} : vector<2x8x8xf32>, vector<2x8x16xf32>, vector<2x8x16xf32> -> vector<2x8x16xf32>
    "tpu.trace_stop"() : () -> ()
    %225 = vector.shape_cast %224 : vector<2x8x16xf32> to vector<16x16xf32>
    %226 = vector.extract_strided_slice %206 {offsets = [0, 0], sizes = [16, 32], strides = [1, 1]} : vector<32x32xf32> to vector<16x32xf32>
    %cst_95 = arith.constant dense<0.000000e+00> : vector<16x32xf32>
    %227 = tpu.matmul %225, %226, %cst_95 {dimension_numbers = #tpu.dot_dimension_numbers<[1], [0], [0], [1], [0, 0, 1, 1], [], []>} : vector<16x16xf32>, vector<16x32xf32>, vector<16x32xf32> -> vector<16x32xf32>
    %228 = arith.addf %207, %227 : vector<16x32xf32>
    %229 = vector.extract_strided_slice %204 {offsets = [0, 0, 16], sizes = [2, 8, 16], strides = [1, 1, 1]} : vector<2x8x32xf32> to vector<2x8x16xf32>
    %230 = vector.extract_strided_slice %205 {offsets = [0, 0, 16], sizes = [2, 8, 16], strides = [1, 1, 1]} : vector<2x8x64xf32> to vector<2x8x16xf32>
    %231 = vector.extract_strided_slice %205 {offsets = [0, 0, 48], sizes = [2, 8, 16], strides = [1, 1, 1]} : vector<2x8x64xf32> to vector<2x8x16xf32>
    "tpu.trace_start"() <{level = 10 : i32, message = "bqd,bkd->bqk"}> : () -> ()
    %cst_96 = arith.constant dense<0.000000e+00> : vector<2x8x8xf32>
    %232 = tpu.matmul %229, %230, %cst_96 {dimension_numbers = #tpu.dot_dimension_numbers<[2], [2], [1], [1], [0, 0, 0, 1, 1, 1], [0], [0]>} : vector<2x8x16xf32>, vector<2x8x16xf32>, vector<2x8x8xf32> -> vector<2x8x8xf32>
    "tpu.trace_stop"() : () -> ()
    %233 = vector.broadcast %5 : vector<2x1x8xf32> to vector<2x8x8xf32>
    %234 = arith.addf %232, %233 : vector<2x8x8xf32>
    %cst_97 = arith.constant dense<0xFF800000> : vector<2x8xf32>
    %235 = vector.multi_reduction <maximumf>, %234, %cst_97 [2] : vector<2x8x8xf32> to vector<2x8xf32>
    %236 = vector.shape_cast %235 : vector<2x8xf32> to vector<2x8x1xf32>
    %237 = vector.broadcast %236 : vector<2x8x1xf32> to vector<2x8x8xf32>
    %238 = arith.subf %234, %237 : vector<2x8x8xf32>
    %239 = math.exp %238 : vector<2x8x8xf32>
    %cst_98 = arith.constant dense<0.000000e+00> : vector<2x8xf32>
    %240 = vector.multi_reduction <add>, %239, %cst_98 [2] : vector<2x8x8xf32> to vector<2x8xf32>
    %241 = vector.shape_cast %240 : vector<2x8xf32> to vector<2x8x1xf32>
    %242 = tpu.reciprocal %241 : vector<2x8x1xf32> -> vector<2x8x1xf32>
    %243 = vector.broadcast %242 : vector<2x8x1xf32> to vector<2x8x8xf32>
    %244 = arith.mulf %239, %243 : vector<2x8x8xf32>
    "tpu.trace_start"() <{level = 10 : i32, message = "bqk,bkd->bqd"}> : () -> ()
    %cst_99 = arith.constant dense<0.000000e+00> : vector<2x8x16xf32>
    %245 = tpu.matmul %244, %231, %cst_99 {dimension_numbers = #tpu.dot_dimension_numbers<[2], [1], [1], [2], [0, 0, 0, 1, 1, 2], [0], [0]>} : vector<2x8x8xf32>, vector<2x8x16xf32>, vector<2x8x16xf32> -> vector<2x8x16xf32>
    "tpu.trace_stop"() : () -> ()
    %246 = vector.shape_cast %245 : vector<2x8x16xf32> to vector<16x16xf32>
    %247 = vector.extract_strided_slice %206 {offsets = [16, 0], sizes = [16, 32], strides = [1, 1]} : vector<32x32xf32> to vector<16x32xf32>
    %cst_100 = arith.constant dense<0.000000e+00> : vector<16x32xf32>
    %248 = tpu.matmul %246, %247, %cst_100 {dimension_numbers = #tpu.dot_dimension_numbers<[1], [0], [0], [1], [0, 0, 1, 1], [], []>} : vector<16x16xf32>, vector<16x32xf32>, vector<16x32xf32> -> vector<16x32xf32>
    %249 = arith.addf %228, %248 : vector<16x32xf32>
    %250 = arith.addf %186, %249 : vector<16x32xf32>
    %251 = arith.mulf %250, %250 : vector<16x32xf32>
    %cst_101 = arith.constant dense<0.000000e+00> : vector<16xf32>
    %252 = vector.multi_reduction <add>, %251, %cst_101 [1] : vector<16x32xf32> to vector<16xf32>
    %253 = vector.shape_cast %252 : vector<16xf32> to vector<16x1xf32>
    %cst_102 = arith.constant 3.200000e+01 : f32
    %254 = vector.broadcast %cst_102 : f32 to vector<16x1xf32>
    %255 = arith.divf %253, %254 : vector<16x1xf32>
    %cst_103 = arith.constant 9.99999997E-7 : f32
    %256 = vector.broadcast %cst_103 : f32 to vector<16x1xf32>
    %257 = arith.addf %255, %256 : vector<16x1xf32>
    %258 = math.rsqrt %257 : vector<16x1xf32>
    %259 = vector.broadcast %258 : vector<16x1xf32> to vector<16x32xf32>
    %260 = arith.mulf %250, %259 : vector<16x32xf32>
    %c0_104 = arith.constant 0 : index
    %c0_105 = arith.constant 0 : index
    %261 = vector.load %arg23[%c0_104, %c0_105] : memref<1x32xf32, #tpu.memory_space<vmem>>, vector<1x32xf32>
    %262 = vector.broadcast %261 : vector<1x32xf32> to vector<16x32xf32>
    %263 = arith.mulf %260, %262 : vector<16x32xf32>
    %c0_106 = arith.constant 0 : index
    %c0_107 = arith.constant 0 : index
    %264 = vector.load %arg24[%c0_106, %c0_107] : memref<32x64xf32, #tpu.memory_space<vmem>>, vector<32x64xf32>
    %cst_108 = arith.constant dense<0.000000e+00> : vector<16x64xf32>
    %265 = tpu.matmul %263, %264, %cst_108 {dimension_numbers = #tpu.dot_dimension_numbers<[1], [0], [0], [1], [0, 0, 1, 1], [], []>} : vector<16x32xf32>, vector<32x64xf32>, vector<16x64xf32> -> vector<16x64xf32>
    %cst_109 = arith.constant 0.000000e+00 : f32
    %266 = vector.broadcast %cst_109 : f32 to vector<16x64xf32>
    %267 = arith.maximumf %265, %266 : vector<16x64xf32>
    %c0_110 = arith.constant 0 : index
    %c0_111 = arith.constant 0 : index
    %268 = vector.load %arg25[%c0_110, %c0_111] : memref<64x32xf32, #tpu.memory_space<vmem>>, vector<64x32xf32>
    %cst_112 = arith.constant dense<0.000000e+00> : vector<16x32xf32>
    %269 = tpu.matmul %267, %268, %cst_112 {dimension_numbers = #tpu.dot_dimension_numbers<[1], [0], [0], [1], [0, 0, 1, 1], [], []>} : vector<16x64xf32>, vector<64x32xf32>, vector<16x32xf32> -> vector<16x32xf32>
    %270 = arith.addf %250, %269 : vector<16x32xf32>
    %271 = arith.mulf %270, %270 : vector<16x32xf32>
    %cst_113 = arith.constant dense<0.000000e+00> : vector<16xf32>
    %272 = vector.multi_reduction <add>, %271, %cst_113 [1] : vector<16x32xf32> to vector<16xf32>
    %273 = vector.shape_cast %272 : vector<16xf32> to vector<16x1xf32>
    %cst_114 = arith.constant 3.200000e+01 : f32
    %274 = vector.broadcast %cst_114 : f32 to vector<16x1xf32>
    %275 = arith.divf %273, %274 : vector<16x1xf32>
    %cst_115 = arith.constant 9.99999997E-7 : f32
    %276 = vector.broadcast %cst_115 : f32 to vector<16x1xf32>
    %277 = arith.addf %275, %276 : vector<16x1xf32>
    %278 = math.rsqrt %277 : vector<16x1xf32>
    %279 = vector.broadcast %278 : vector<16x1xf32> to vector<16x32xf32>
    %280 = arith.mulf %270, %279 : vector<16x32xf32>
    %c0_116 = arith.constant 0 : index
    %c0_117 = arith.constant 0 : index
    %281 = vector.load %arg26[%c0_116, %c0_117] : memref<1x32xf32, #tpu.memory_space<vmem>>, vector<1x32xf32>
    %282 = vector.broadcast %281 : vector<1x32xf32> to vector<16x32xf32>
    %283 = arith.mulf %280, %282 : vector<16x32xf32>
    %cst_118 = arith.constant 0.176776692 : f32
    %284 = vector.broadcast %cst_118 : f32 to vector<16x32xf32>
    %285 = arith.mulf %283, %284 : vector<16x32xf32>
    %c0_119 = arith.constant 0 : index
    %c0_120 = arith.constant 0 : index
    %286 = vector.load %arg6[%c0_119, %c0_120] : memref<128x32xf32, #tpu.memory_space<vmem>>, vector<128x32xf32>
    %cst_121 = arith.constant dense<0.000000e+00> : vector<16x128xf32>
    %287 = tpu.matmul %285, %286, %cst_121 {dimension_numbers = #tpu.dot_dimension_numbers<[1], [1], [0], [0], [0, 0, 1, 0], [], []>} : vector<16x32xf32>, vector<128x32xf32>, vector<16x128xf32> -> vector<16x128xf32>
    %c0_122 = arith.constant 0 : index
    %c0_123 = arith.constant 0 : index
    %288 = vector.load %arg27[%c0_122, %c0_123] : memref<16x128xf32, #tpu.memory_space<vmem>>, vector<16x128xf32>
    tpu.vector_store %arg27[%c0_122, %c0_123], %287 {strides = array<i32>} : memref<16x128xf32, #tpu.memory_space<vmem>>, vector<16x128xf32>,
    %c0_124 = arith.constant 0 : index
    %c0_125 = arith.constant 0 : index
    %289 = vector.load %arg5[%c0_124, %c0_125] : memref<16x1xi32, #tpu.memory_space<vmem>>, vector<16x1xi32>
    %cst_126 = arith.constant dense<0xFF800000> : vector<16xf32>
    %290 = vector.multi_reduction <maximumf>, %287, %cst_126 [1] : vector<16x128xf32> to vector<16xf32>
    %291 = vector.shape_cast %290 : vector<16xf32> to vector<16x1xf32>
    %292 = vector.broadcast %291 : vector<16x1xf32> to vector<16x128xf32>
    %293 = arith.subf %287, %292 : vector<16x128xf32>
    %294 = math.exp %293 : vector<16x128xf32>
    %cst_127 = arith.constant dense<0.000000e+00> : vector<16xf32>
    %295 = vector.multi_reduction <add>, %294, %cst_127 [1] : vector<16x128xf32> to vector<16xf32>
    %296 = vector.shape_cast %295 : vector<16xf32> to vector<16x1xf32>
    %297 = math.log %296 : vector<16x1xf32>
    %298 = arith.addf %297, %291 : vector<16x1xf32>
    %299 = tpu.iota {dimensions = array<i32: 1>} : vector<16x128xi32>
    %300 = vector.broadcast %289 : vector<16x1xi32> to vector<16x128xi32>
    %301 = arith.cmpi eq, %299, %300 : vector<16x128xi32>
    %cst_128 = arith.constant 0.000000e+00 : f32
    %302 = vector.broadcast %cst_128 : f32 to vector<16x128xf32>
    %303 = arith.select %301, %287, %302 : vector<16x128xi1>, vector<16x128xf32>
    %cst_129 = arith.constant dense<0.000000e+00> : vector<16xf32>
    %304 = vector.multi_reduction <add>, %303, %cst_129 [1] : vector<16x128xf32> to vector<16xf32>
    %305 = vector.shape_cast %304 : vector<16xf32> to vector<16x1xf32>
    %c0_i32 = arith.constant 0 : i32
    %306 = vector.broadcast %c0_i32 : i32 to vector<16x1xi32>
    %307 = arith.cmpi sge, %289, %306 : vector<16x1xi32>
    %308 = arith.extui %307 : vector<16x1xi1> to vector<16x1xi32>
    %309 = arith.sitofp %308 : vector<16x1xi32> to vector<16x1xf32>
    %310 = arith.subf %298, %305 : vector<16x1xf32>
    %311 = arith.mulf %310, %309 : vector<16x1xf32>
    %cst_130 = arith.constant dense<0.000000e+00> : vector<1xf32>
    %312 = vector.multi_reduction <add>, %311, %cst_130 [0] : vector<16x1xf32> to vector<1xf32>
    %313 = vector.shape_cast %312 : vector<1xf32> to vector<1x1xf32>
    %cst_131 = arith.constant dense<0.000000e+00> : vector<1xf32>
    %314 = vector.multi_reduction <add>, %309, %cst_131 [0] : vector<16x1xf32> to vector<1xf32>
    %315 = vector.shape_cast %314 : vector<1xf32> to vector<1x1xf32>
    %cst_132 = arith.constant 1.000000e+00 : f32
    %316 = vector.broadcast %cst_132 : f32 to vector<1x1xf32>
    %317 = arith.maximumf %315, %316 : vector<1x1xf32>
    %318 = arith.divf %313, %317 : vector<1x1xf32>
    %c0_133 = arith.constant 0 : index
    %c0_134 = arith.constant 0 : index
    %319 = vector.load %arg28[%c0_133, %c0_134] : memref<1x1xf32, #tpu.memory_space<vmem>>, vector<1x1xf32>
    tpu.vector_store %arg28[%c0_133, %c0_134], %318 {strides = array<i32>} : memref<1x1xf32, #tpu.memory_space<vmem>>, vector<1x1xf32>,
    return
  }
}

</mosaic_0001>

<llo_original>
// kernel: t5_forward.1
$region0: #{t5_forward.1}
  #allocation0 [shape = 'u32[]', space=smem, size = 0x4, offset = 0x4, fixed_abs, tag = 'smem constant byte address 0x4 - core index']
  #allocation1 [shape = 'u32[144,128]{1,0:T(1,128)}', space=vmem, size = 0x12000, scoped, tag = 'internal scratch']
  %s0 = inlined_call_operand.vmem [shape: f32[16,32], index: 0, kind: input, shape index: {}]
  %s1 = inlined_call_operand.vmem [shape: f32[16,32], index: 1, kind: input, shape index: {}]
  %s2 = inlined_call_operand.vmem [shape: f32[2,8], index: 2, kind: input, shape index: {}]
  %s3 = inlined_call_operand.vmem [shape: f32[2,8,8], index: 3, kind: input, shape index: {}]
  %s4 = inlined_call_operand.vmem [shape: f32[2,8,8], index: 4, kind: input, shape index: {}]
  %s5 = inlined_call_operand.vmem [shape: s32[16,1], index: 5, kind: input, shape index: {}]
  %s6 = inlined_call_operand.vmem [shape: f32[128,32], index: 6, kind: input, shape index: {}]
  %s7 = inlined_call_operand.vmem [shape: f32[1,32], index: 7, kind: input, shape index: {}]
  %s8 = inlined_call_operand.vmem [shape: f32[32,32], index: 8, kind: input, shape index: {}]
  %s9 = inlined_call_operand.vmem [shape: f32[32,64], index: 9, kind: input, shape index: {}]
  %s10 = inlined_call_operand.vmem [shape: f32[32,32], index: 10, kind: input, shape index: {}]
  %s11 = inlined_call_operand.vmem [shape: f32[1,32], index: 11, kind: input, shape index: {}]
  %s12 = inlined_call_operand.vmem [shape: f32[32,64], index: 12, kind: input, shape index: {}]
  %s13 = inlined_call_operand.vmem [shape: f32[64,32], index: 13, kind: input, shape index: {}]
  %s14 = inlined_call_operand.vmem [shape: f32[1,32], index: 14, kind: input, shape index: {}]
  %s15 = inlined_call_operand.vmem [shape: f32[1,32], index: 15, kind: input, shape index: {}]
  %s16 = inlined_call_operand.vmem [shape: f32[32,32], index: 16, kind: input, shape index: {}]
  %s17 = inlined_call_operand.vmem [shape: f32[32,64], index: 17, kind: input, shape index: {}]
  %s18 = inlined_call_operand.vmem [shape: f32[32,32], index: 18, kind: input, shape index: {}]
  %s19 = inlined_call_operand.vmem [shape: f32[1,32], index: 19, kind: input, shape index: {}]
  %s20 = inlined_call_operand.vmem [shape: f32[32,32], index: 20, kind: input, shape index: {}]
  %s21 = inlined_call_operand.vmem [shape: f32[32,64], index: 21, kind: input, shape index: {}]
  %s22 = inlined_call_operand.vmem [shape: f32[32,32], index: 22, kind: input, shape index: {}]
  %s23 = inlined_call_operand.vmem [shape: f32[1,32], index: 23, kind: input, shape index: {}]
  %s24 = inlined_call_operand.vmem [shape: f32[32,64], index: 24, kind: input, shape index: {}]
  %s25 = inlined_call_operand.vmem [shape: f32[64,32], index: 25, kind: input, shape index: {}]
  %s26 = inlined_call_operand.vmem [shape: f32[1,32], index: 26, kind: input, shape index: {}]
  %s27 = inlined_call_operand.hbm [shape: f32[16,128], index: 27, kind: output, shape index: {0}]
  %s28 = inlined_call_operand.hbm [shape: f32[1,1], index: 28, kind: output, shape index: {1}]
  %29 = xla_tuple %s27, %s28
  %s30 = sld [smem:[#allocation0]]
  $region126: #{t5_forward.1} parent=0
    _
  %s32 = ssub.s32 1, %s30
  %s33 = scalar_select 0, %s32, %s30
  $region1: #{t5_forward.1} parent=0
    #allocation2 [shape = 'u8[8192]{0}', space=vmem, size = 0x2000, scoped, tag = 'output window, operand 0, single buffered']
    #allocation3 [shape = 's32[1]{0}', space=sflag, size = 0x4, scoped, tag = 'scoped memory for t5_forward.1']
    #allocation4 [shape = 'u8[512]{0}', space=vmem, size = 0x400, scoped, tag = 'output window, operand 1, single buffered']
    #allocation5 [shape = 's32[1]{0}', space=sflag, size = 0x4, scoped, tag = 'scoped memory for t5_forward.1']
    %34 = vsyncpa [#allocation3], 0
    %35 = vsyncpa [#allocation5], 0
    // Predicated region
    $region2: #{t5_forward.1} parent=1 // pred_check
      _
    $region3: #{t5_forward.1} parent=1 // pred_check_branch
      %37 = sbr.rel (0) target = $region5
    $region4: #{t5_forward.1} parent=1 // pred_region
      _
    $region5: #{t5_forward.1} parent=1 // pred_fallthru
      _
    // Predicated region
    $region6: #{t5_forward.1} parent=1 // pred_check
      _
    $region7: #{t5_forward.1} parent=1 // pred_check_branch
      %39 = sbr.rel (0) target = $region9
    $region8: #{t5_forward.1} parent=1 // pred_region
      _
    $region9: #{t5_forward.1} parent=1 // pred_fallthru
      _
    // Predicated region
    $region10: #{t5_forward.1} parent=1 // pred_check
      _
    $region11: #{t5_forward.1} parent=1 // pred_check_branch
      %41 = sbr.rel (0) target = $region13
    $region12: #{t5_forward.1} parent=1 // pred_region
      _
    $region13: #{t5_forward.1} parent=1 // pred_fallthru
      _
    // Predicated region
    $region14: #{t5_forward.1} parent=1 // pred_check
      _
    $region15: #{t5_forward.1} parent=1 // pred_check_branch
      %43 = sbr.rel (0) target = $region17
    $region16: #{t5_forward.1} parent=1 // pred_region
      _
    $region17: #{t5_forward.1} parent=1 // pred_fallthru
      _
    // Predicated region
    $region18: #{t5_forward.1} parent=1 // pred_check
      _
    $region19: #{t5_forward.1} parent=1 // pred_check_branch
      %45 = sbr.rel (0) target = $region21
    $region20: #{t5_forward.1} parent=1 // pred_region
      _
    $region21: #{t5_forward.1} parent=1 // pred_fallthru
      _
    // Predicated region
    $region22: #{t5_forward.1} parent=1 // pred_check
      _
    $region23: #{t5_forward.1} parent=1 // pred_check_branch
      %47 = sbr.rel (0) target = $region25
    $region24: #{t5_forward.1} parent=1 // pred_region
      _
    $region25: #{t5_forward.1} parent=1 // pred_fallthru
      _
    // Predicated region
    $region26: #{t5_forward.1} parent=1 // pred_check
      _
    $region27: #{t5_forward.1} parent=1 // pred_check_branch
      %49 = sbr.rel (0) target = $region29
    $region28: #{t5_forward.1} parent=1 // pred_region
      _
    $region29: #{t5_forward.1} parent=1 // pred_fallthru
      _
    // Predicated region
    $region30: #{t5_forward.1} parent=1 // pred_check
      _
    $region31: #{t5_forward.1} parent=1 // pred_check_branch
      %51 = sbr.rel (0) target = $region33
    $region32: #{t5_forward.1} parent=1 // pred_region
      _
    $region33: #{t5_forward.1} parent=1 // pred_fallthru
      _
    // Predicated region
    $region34: #{t5_forward.1} parent=1 // pred_check
      _
    $region35: #{t5_forward.1} parent=1 // pred_check_branch
      %53 = sbr.rel (0) target = $region37
    $region36: #{t5_forward.1} parent=1 // pred_region
      _
    $region37: #{t5_forward.1} parent=1 // pred_fallthru
      _
    // Predicated region
    $region38: #{t5_forward.1} parent=1 // pred_check
      _
    $region39: #{t5_forward.1} parent=1 // pred_check_branch
      %55 = sbr.rel (0) target = $region41
    $region40: #{t5_forward.1} parent=1 // pred_region
      _
    $region41: #{t5_forward.1} parent=1 // pred_fallthru
      _
    // Predicated region
    $region42: #{t5_forward.1} parent=1 // pred_check
      _
    $region43: #{t5_forward.1} parent=1 // pred_check_branch
      %57 = sbr.rel (0) target = $region45
    $region44: #{t5_forward.1} parent=1 // pred_region
      _
    $region45: #{t5_forward.1} parent=1 // pred_fallthru
      _
    // Predicated region
    $region46: #{t5_forward.1} parent=1 // pred_check
      _
    $region47: #{t5_forward.1} parent=1 // pred_check_branch
      %59 = sbr.rel (0) target = $region49
    $region48: #{t5_forward.1} parent=1 // pred_region
      _
    $region49: #{t5_forward.1} parent=1 // pred_fallthru
      _
    // Predicated region
    $region50: #{t5_forward.1} parent=1 // pred_check
      _
    $region51: #{t5_forward.1} parent=1 // pred_check_branch
      %61 = sbr.rel (0) target = $region53
    $region52: #{t5_forward.1} parent=1 // pred_region
      _
    $region53: #{t5_forward.1} parent=1 // pred_fallthru
      _
    // Predicated region
    $region54: #{t5_forward.1} parent=1 // pred_check
      _
    $region55: #{t5_forward.1} parent=1 // pred_check_branch
      %63 = sbr.rel (0) target = $region57
    $region56: #{t5_forward.1} parent=1 // pred_region
      _
    $region57: #{t5_forward.1} parent=1 // pred_fallthru
      _
    // Predicated region
    $region58: #{t5_forward.1} parent=1 // pred_check
      _
    $region59: #{t5_forward.1} parent=1 // pred_check_branch
      %65 = sbr.rel (0) target = $region61
    $region60: #{t5_forward.1} parent=1 // pred_region
      _
    $region61: #{t5_forward.1} parent=1 // pred_fallthru
      _
    // Predicated region
    $region62: #{t5_forward.1} parent=1 // pred_check
      _
    $region63: #{t5_forward.1} parent=1 // pred_check_branch
      %67 = sbr.rel (0) target = $region65
    $region64: #{t5_forward.1} parent=1 // pred_region
      _
    $region65: #{t5_forward.1} parent=1 // pred_fallthru
      _
    // Predicated region
    $region66: #{t5_forward.1} parent=1 // pred_check
      _
    $region67: #{t5_forward.1} parent=1 // pred_check_branch
      %69 = sbr.rel (0) target = $region69
    $region68: #{t5_forward.1} parent=1 // pred_region
      _
    $region69: #{t5_forward.1} parent=1 // pred_fallthru
      _
    // Predicated region
    $region70: #{t5_forward.1} parent=1 // pred_check
      _
    $region71: #{t5_forward.1} parent=1 // pred_check_branch
      %71 = sbr.rel (0) target = $region73
    $region72: #{t5_forward.1} parent=1 // pred_region
      _
    $region73: #{t5_forward.1} parent=1 // pred_fallthru
      _
    // Predicated region
    $region74: #{t5_forward.1} parent=1 // pred_check
      _
    $region75: #{t5_forward.1} parent=1 // pred_check_branch
      %73 = sbr.rel (0) target = $region77
    $region76: #{t5_forward.1} parent=1 // pred_region
      _
    $region77: #{t5_forward.1} parent=1 // pred_fallthru
      _
    // Predicated region
    $region78: #{t5_forward.1} parent=1 // pred_check
      _
    $region79: #{t5_forward.1} parent=1 // pred_check_branch
      %75 = sbr.rel (0) target = $region81
    $region80: #{t5_forward.1} parent=1 // pred_region
      _
    $region81: #{t5_forward.1} parent=1 // pred_fallthru
      _
    // Predicated region
    $region82: #{t5_forward.1} parent=1 // pred_check
      _
    $region83: #{t5_forward.1} parent=1 // pred_check_branch
      %77 = sbr.rel (0) target = $region85
    $region84: #{t5_forward.1} parent=1 // pred_region
      _
    $region85: #{t5_forward.1} parent=1 // pred_fallthru
      _
    // Predicated region
    $region86: #{t5_forward.1} parent=1 // pred_check
      _
    $region87: #{t5_forward.1} parent=1 // pred_check_branch
      %79 = sbr.rel (0) target = $region89
    $region88: #{t5_forward.1} parent=1 // pred_region
      _
    $region89: #{t5_forward.1} parent=1 // pred_fallthru
      _
    // Predicated region
    $region90: #{t5_forward.1} parent=1 // pred_check
      _
    $region91: #{t5_forward.1} parent=1 // pred_check_branch
      %81 = sbr.rel (0) target = $region93
    $region92: #{t5_forward.1} parent=1 // pred_region
      _
    $region93: #{t5_forward.1} parent=1 // pred_fallthru
      _
    // Predicated region
    $region94: #{t5_forward.1} parent=1 // pred_check
      _
    $region95: #{t5_forward.1} parent=1 // pred_check_branch
      %83 = sbr.rel (0) target = $region97
    $region96: #{t5_forward.1} parent=1 // pred_region
      _
    $region97: #{t5_forward.1} parent=1 // pred_fallthru
      _
    // Predicated region
    $region98: #{t5_forward.1} parent=1 // pred_check
      _
    $region99: #{t5_forward.1} parent=1 // pred_check_branch
      %85 = sbr.rel (0) target = $region101
    $region100: #{t5_forward.1} parent=1 // pred_region
      _
    $region101: #{t5_forward.1} parent=1 // pred_fallthru
      _
    // Predicated region
    $region102: #{t5_forward.1} parent=1 // pred_check
      _
    $region103: #{t5_forward.1} parent=1 // pred_check_branch
      %87 = sbr.rel (0) target = $region105
    $region104: #{t5_forward.1} parent=1 // pred_region
      _
    $region105: #{t5_forward.1} parent=1 // pred_fallthru
      _
    // Predicated region
    $region106: #{t5_forward.1} parent=1 // pred_check
      _
    $region107: #{t5_forward.1} parent=1 // pred_check_branch
      %89 = sbr.rel (0) target = $region109
    $region108: #{t5_forward.1} parent=1 // pred_region
      _
    $region109: #{t5_forward.1} parent=1 // pred_fallthru
      _
    %v90 = vld [vmem:[%s2] sm:$0x3]
    %v91 = vsub.f32 1.0, %v90
    %v94 = vunpack.c.l.s4 1966171168
    %v95 = vunpack.c.0.s8 %v94
    %v96 = vlaneseq
    %v97 = vshrl.u32 %v96, 7
    %v98 = vsub.s32 %v95, %v97
    %v99 = vrot.slane %v91, %v98
    %v100 = vcombine.high %v99, %v99
    %v102 = vunpack.c.l.s4 1966171168
    %v103 = vunpack.c.0.s8 %v102
    %v104 = vlaneseq
    %v105 = vshrl.u32 %v104, 7
    %v106 = vsub.s32 %v103, %v105
    %v107 = vrot.slane %v99, %v106
    %v109 = vunpack.c.l.s4 1966171168
    %v110 = vunpack.c.0.s8 %v109
    %v111 = vlaneseq
    %v112 = vshrl.u32 %v111, 7
    %v113 = vsub.s32 %v110, %v112
    %v114 = vrot.slane %v100, %v113
    %v117 = vmul.f32 %v107, -1e+09
    %v118 = vmul.f32 %v114, -1e+09
    %v119 = vld [vmem:[%s3] sm:$0xff]
    %v120 = vld [vmem:[%s3 + $0x8] sm:$0xff]
    %v121 = vld [vmem:[%s4] sm:$0xff]
    %v122 = vld [vmem:[%s4 + $0x8] sm:$0xff]
    %v123 = vld [vmem:[%s0] sm:$0xff]
    %v124 = vld [vmem:[%s0 + $0x8] sm:$0xff]
    %v125 = vmul.f32 %v123, %v123
    %v126 = vmul.f32 %v124, %v124
    %vm127 = vcmask 261120
    %v128 = vsel %vm127, %v125, 0.0
    %129 = vadd.xlane.f32.xlu0 %v128
    %v130 = vpop.xlane.xlu0 %129
    %v131 = vsel %vm127, %v126, 0.0
    %132 = vadd.xlane.f32.xlu0 %v131
    %v133 = vpop.xlane.xlu0 %132
    %v134 = vrcp.pop 32.0
    %v135 = vmul.f32 %v130, %v134
    %v136 = vmul.f32 %v133, %v134
    %v137 = vadd.f32 %v135, 1e-06
    %v138 = vadd.f32 %v136, 1e-06
    %v139 = vrsqrt.pop %v137
    %v140 = vrsqrt.pop %v138
    %v141 = vmul.f32 %v123, %v139
    %v142 = vmul.f32 %v124, %v140
    %v143 = vld [vmem:[%s7] sm:$0x1]
    %v145 = vlaneseq
    %v146 = vshrl.u32 %v145, 7
    %v147 = vsub.s32 0, %v146
    %v148 = vrot.slane %v143, %v147
    %v150 = vmul.f32 %v141, %v148
    %v151 = vmul.f32 %v142, %v148
    %v152 = vld [vmem:[%s8] sm:$0xff]
    %v153 = vld [vmem:[%s8 + $0x8] sm:$0xff]
    %v154 = vld [vmem:[%s8 + $0x10] sm:$0xff]
    %v155 = vld [vmem:[%s8 + $0x18] sm:$0xff]
    %v157 = vsel %vm127, %v150, 0
    %v160 = vsel %vm127, %v151, 0
    %162 = vmatprep.subr.mxu0 0.0
    %163 = vmatpush1.msra.mxu0 %v152
    %164 = vmatprep.subr.mxu0 0.0
    %165 = vmatpush1.msra.mxu0 %v153
    %166 = vmatprep.subr.mxu0 0.0
    %167 = vmatpush1.msra.mxu0 %v154
    %168 = vmatprep.subr.mxu0 0.0
    %169 = vmatpush1.msra.mxu0 %v155
    %170 = vmatprep.subr.mxu0 0.0
    %171 = vmatpush1.msra.mxu0 0.0
    %172 = vmatprep.subr.mxu0 0.0
    %173 = vmatpush1.msra.mxu0 0.0
    %174 = vmatprep.subr.mxu0 0.0
    %175 = vmatpush1.msra.mxu0 0.0
    %176 = vmatprep.subr.mxu0 0.0
    %177 = vmatpush1.msra.mxu0 0.0
    %178 = vmatprep.subr.mxu0 0.0
    %179 = vmatpush1.msra.mxu0 0.0
    %180 = vmatprep.subr.mxu0 0.0
    %181 = vmatpush1.msra.mxu0 0.0
    %182 = vmatprep.subr.mxu0 0.0
    %183 = vmatpush1.msra.mxu0 0.0
    %184 = vmatprep.subr.mxu0 0.0
    %185 = vmatpush1.msra.mxu0 0.0
    %186 = vmatprep.subr.mxu0 0.0
    %187 = vmatpush1.msra.mxu0 0.0
    %188 = vmatprep.subr.mxu0 0.0
    %189 = vmatpush1.msra.mxu0 0.0
    %190 = vmatprep.subr.mxu0 0.0
    %191 = vmatpush1.msra.mxu0 0.0
    %192 = vmatprep.subr.mxu0 0.0
    %193 = vmatpush1.msra.mxu0 0.0
    %194 = vmatprep.subr.mxu0 0.0
    %195 = vmatpush1.msra.mxu0 0.0
    %196 = vmatprep.subr.mxu0 0.0
    %197 = vmatpush1.msra.mxu0 0.0
    %198 = vmatprep.subr.mxu0 0.0
    %199 = vmatpush1.msra.mxu0 0.0
    %200 = vmatprep.subr.mxu0 0.0
    %201 = vmatpush1.msra.mxu0 0.0
    %202 = vmatprep.subr.mxu0 0.0
    %203 = vmatpush1.msra.mxu0 0.0
    %204 = vmatprep.subr.mxu0 0.0
    %205 = vmatpush1.msra.mxu0 0.0
    %206 = vmatprep.subr.mxu0 0.0
    %207 = vmatpush1.msra.mxu0 0.0
    %208 = vmatprep.subr.mxu0 0.0
    %209 = vmatpush1.msra.mxu0 0.0
    %210 = vmatprep.subr.mxu0 0.0
    %211 = vmatpush1.msra.mxu0 0.0
    %212 = vmatprep.subr.mxu0 0.0
    %213 = vmatpush1.msra.mxu0 0.0
    %214 = vmatprep.subr.mxu0 0.0
    %215 = vmatpush1.msra.mxu0 0.0
    %216 = vmatprep.subr.mxu0 0.0
    %217 = vmatpush1.msra.mxu0 0.0
    %218 = vmatprep.subr.mxu0 0.0
    %219 = vmatpush1.msra.mxu0 0.0
    %220 = vmatprep.subr.mxu0 0.0
    %221 = vmatpush1.msra.mxu0 0.0
    %222 = vmatprep.subr.mxu0 0.0
    %223 = vmatpush1.msra.mxu0 0.0
    %224 = vmatprep.subr.mxu0 0.0
    %225 = vmatpush1.msra.mxu0 0.0
    %226 = vmatprep.mubr.f32.mxu0 0.0
    %227 = vmatmul.mubr.f32.gmra.mrb[0].mxu0 %v157
    %v228 = vpop.f32.mrb[0].mxu0
    %v229 = vadd.f32 0.0, %v228
    %v230 = vpop.f32.mrb[0].mxu0
    %231 = vmatprep.mubr.f32.mxu0 0.0
    %232 = vmatmul.mubr.f32.gmra.mrb[0].mxu0 %v160
    %v233 = vpop.f32.mrb[0].mxu0
    %v234 = vadd.f32 0.0, %v233
    %v235 = vpop.f32.mrb[0].mxu0
    %236 = vdwg.mxu0
    %v237 = vld [vmem:[%s9] sm:$0xff]
    %v238 = vld [vmem:[%s9 + $0x8] sm:$0xff]
    %v239 = vld [vmem:[%s9 + $0x10] sm:$0xff]
    %v240 = vld [vmem:[%s9 + $0x18] sm:$0xff]
    %241 = vmatprep.subr.mxu0 0.0
    %242 = vmatpush1.msra.mxu0 %v237
    %243 = vmatprep.subr.mxu0 0.0
    %244 = vmatpush1.msra.mxu0 %v238
    %245 = vmatprep.subr.mxu0 0.0
    %246 = vmatpush1.msra.mxu0 %v239
    %247 = vmatprep.subr.mxu0 0.0
    %248 = vmatpush1.msra.mxu0 %v240
    %249 = vmatprep.subr.mxu0 0.0
    %250 = vmatpush1.msra.mxu0 0.0
    %251 = vmatprep.subr.mxu0 0.0
    %252 = vmatpush1.msra.mxu0 0.0
    %253 = vmatprep.subr.mxu0 0.0
    %254 = vmatpush1.msra.mxu0 0.0
    %255 = vmatprep.subr.mxu0 0.0
    %256 = vmatpush1.msra.mxu0 0.0
    %257 = vmatprep.subr.mxu0 0.0
    %258 = vmatpush1.msra.mxu0 0.0
    %259 = vmatprep.subr.mxu0 0.0
    %260 = vmatpush1.msra.mxu0 0.0
    %261 = vmatprep.subr.mxu0 0.0
    %262 = vmatpush1.msra.mxu0 0.0
    %263 = vmatprep.subr.mxu0 0.0
    %264 = vmatpush1.msra.mxu0 0.0
    %265 = vmatprep.subr.mxu0 0.0
    %266 = vmatpush1.msra.mxu0 0.0
    %267 = vmatprep.subr.mxu0 0.0
    %268 = vmatpush1.msra.mxu0 0.0
    %269 = vmatprep.subr.mxu0 0.0
    %270 = vmatpush1.msra.mxu0 0.0
    %271 = vmatprep.subr.mxu0 0.0
    %272 = vmatpush1.msra.mxu0 0.0
    %273 = vmatprep.subr.mxu0 0.0
    %274 = vmatpush1.msra.mxu0 0.0
    %275 = vmatprep.subr.mxu0 0.0
    %276 = vmatpush1.msra.mxu0 0.0
    %277 = vmatprep.subr.mxu0 0.0
    %278 = vmatpush1.msra.mxu0 0.0
    %279 = vmatprep.subr.mxu0 0.0
    %280 = vmatpush1.msra.mxu0 0.0
    %281 = vmatprep.subr.mxu0 0.0
    %282 = vmatpush1.msra.mxu0 0.0
    %283 = vmatprep.subr.mxu0 0.0
    %284 = vmatpush1.msra.mxu0 0.0
    %285 = vmatprep.subr.mxu0 0.0
    %286 = vmatpush1.msra.mxu0 0.0
    %287 = vmatprep.subr.mxu0 0.0
    %288 = vmatpush1.msra.mxu0 0.0
    %289 = vmatprep.subr.mxu0 0.0
    %290 = vmatpush1.msra.mxu0 0.0
    %291 = vmatprep.subr.mxu0 0.0
    %292 = vmatpush1.msra.mxu0 0.0
    %293 = vmatprep.subr.mxu0 0.0
    %294 = vmatpush1.msra.mxu0 0.0
    %295 = vmatprep.subr.mxu0 0.0
    %296 = vmatpush1.msra.mxu0 0.0
    %297 = vmatprep.subr.mxu0 0.0
    %298 = vmatpush1.msra.mxu0 0.0
    %299 = vmatprep.subr.mxu0 0.0
    %300 = vmatpush1.msra.mxu0 0.0
    %301 = vmatprep.subr.mxu0 0.0
    %302 = vmatpush1.msra.mxu0 0.0
    %303 = vmatprep.subr.mxu0 0.0
    %304 = vmatpush1.msra.mxu0 0.0
    %305 = vmatprep.mubr.f32.mxu0 0.0
    %306 = vmatmul.mubr.f32.gmra.mrb[0].mxu0 %v157
    %v307 = vpop.f32.mrb[0].mxu0
    %v308 = vadd.f32 0.0, %v307
    %v309 = vpop.f32.mrb[0].mxu0
    %310 = vmatprep.mubr.f32.mxu0 0.0
    %311 = vmatmul.mubr.f32.gmra.mrb[0].mxu0 %v160
    %v312 = vpop.f32.mrb[0].mxu0
    %v313 = vadd.f32 0.0, %v312
    %v314 = vpop.f32.mrb[0].mxu0
    %315 = vdwg.mxu0
    %v316 = vld [vmem:[%s10] sm:$0xff]
    %v317 = vld [vmem:[%s10 + $0x8] sm:$0xff]
    %v318 = vld [vmem:[%s10 + $0x10] sm:$0xff]
    %v319 = vld [vmem:[%s10 + $0x18] sm:$0xff]
    %vm320 = vcmask 130048
    %v322 = vsel %vm320, %v229, 0
    %v325 = vsel %vm320, %v308, 0
    %327 = vmatprep.subr.mxu0 0.0
    %328 = vmatpush1.xpose.msra.mxu0 %v325
    %329 = vmatprep.subr.mxu0 0.0
    %330 = vmatpush1.xpose.msra.mxu0 0.0
    %331 = vmatprep.subr.mxu0 0.0
    %332 = vmatpush1.xpose.msra.mxu0 0.0
    %333 = vmatprep.subr.mxu0 0.0
    %334 = vmatpush1.xpose.msra.mxu0 0.0
    %335 = vmatprep.subr.mxu0 0.0
    %336 = vmatpush1.xpose.msra.mxu0 0.0
    %337 = vmatprep.subr.mxu0 0.0
    %338 = vmatpush1.xpose.msra.mxu0 0.0
    %339 = vmatprep.subr.mxu0 0.0
    %340 = vmatpush1.xpose.msra.mxu0 0.0
    %341 = vmatprep.subr.mxu0 0.0
    %342 = vmatpush1.xpose.msra.mxu0 0.0
    %343 = vmatprep.subr.mxu0 0.0
    %344 = vmatpush1.xpose.msra.mxu0 0.0
    %345 = vmatprep.subr.mxu0 0.0
    %346 = vmatpush1.xpose.msra.mxu0 0.0
    %347 = vmatprep.subr.mxu0 0.0
    %348 = vmatpush1.xpose.msra.mxu0 0.0
    %349 = vmatprep.subr.mxu0 0.0
    %350 = vmatpush1.xpose.msra.mxu0 0.0
    %351 = vmatprep.subr.mxu0 0.0
    %352 = vmatpush1.xpose.msra.mxu0 0.0
    %353 = vmatprep.subr.mxu0 0.0
    %354 = vmatpush1.xpose.msra.mxu0 0.0
    %355 = vmatprep.subr.mxu0 0.0
    %356 = vmatpush1.xpose.msra.mxu0 0.0
    %357 = vmatprep.subr.mxu0 0.0
    %358 = vmatpush1.xpose.msra.mxu0 0.0
    %359 = vmatprep.subr.mxu0 0.0
    %360 = vmatpush1.xpose.msra.mxu0 0.0
    %361 = vmatprep.subr.mxu0 0.0
    %362 = vmatpush1.xpose.msra.mxu0 0.0
    %363 = vmatprep.subr.mxu0 0.0
    %364 = vmatpush1.xpose.msra.mxu0 0.0
    %365 = vmatprep.subr.mxu0 0.0
    %366 = vmatpush1.xpose.msra.mxu0 0.0
    %367 = vmatprep.subr.mxu0 0.0
    %368 = vmatpush1.xpose.msra.mxu0 0.0
    %369 = vmatprep.subr.mxu0 0.0
    %370 = vmatpush1.xpose.msra.mxu0 0.0
    %371 = vmatprep.subr.mxu0 0.0
    %372 = vmatpush1.xpose.msra.mxu0 0.0
    %373 = vmatprep.subr.mxu0 0.0
    %374 = vmatpush1.xpose.msra.mxu0 0.0
    %375 = vmatprep.subr.mxu0 0.0
    %376 = vmatpush1.xpose.msra.mxu0 0.0
    %377 = vmatprep.subr.mxu0 0.0
    %378 = vmatpush1.xpose.msra.mxu0 0.0
    %379 = vmatprep.subr.mxu0 0.0
    %380 = vmatpush1.xpose.msra.mxu0 0.0
    %381 = vmatprep.subr.mxu0 0.0
    %382 = vmatpush1.xpose.msra.mxu0 0.0
    %383 = vmatprep.subr.mxu0 0.0
    %384 = vmatpush1.xpose.msra.mxu0 0.0
    %385 = vmatprep.subr.mxu0 0.0
    %386 = vmatpush1.xpose.msra.mxu0 0.0
    %387 = vmatprep.subr.mxu0 0.0
    %388 = vmatpush1.xpose.msra.mxu0 0.0
    %389 = vmatprep.subr.mxu0 0.0
    %390 = vmatpush1.xpose.msra.mxu0 0.0
    %391 = vmatprep.mubr.f32.mxu0 0.0
    %392 = vmatmul.mubr.f32.gmra.mrb[0].mxu0 %v322
    %v393 = vpop.f32.mrb[0].mxu0
    %v394 = vadd.f32 %v119, %v393
    %v395 = vpop.f32.mrb[0].mxu0
    %396 = vdwg.mxu0
    %v398 = vsel %vm320, %v234, 0
    %v401 = vsel %vm320, %v313, 0
    %403 = vmatprep.subr.mxu0 0.0
    %404 = vmatpush1.xpose.msra.mxu0 %v401
    %405 = vmatprep.subr.mxu0 0.0
    %406 = vmatpush1.xpose.msra.mxu0 0.0
    %407 = vmatprep.subr.mxu0 0.0
    %408 = vmatpush1.xpose.msra.mxu0 0.0
    %409 = vmatprep.subr.mxu0 0.0
    %410 = vmatpush1.xpose.msra.mxu0 0.0
    %411 = vmatprep.subr.mxu0 0.0
    %412 = vmatpush1.xpose.msra.mxu0 0.0
    %413 = vmatprep.subr.mxu0 0.0
    %414 = vmatpush1.xpose.msra.mxu0 0.0
    %415 = vmatprep.subr.mxu0 0.0
    %416 = vmatpush1.xpose.msra.mxu0 0.0
    %417 = vmatprep.subr.mxu0 0.0
    %418 = vmatpush1.xpose.msra.mxu0 0.0
    %419 = vmatprep.subr.mxu0 0.0
    %420 = vmatpush1.xpose.msra.mxu0 0.0
    %421 = vmatprep.subr.mxu0 0.0
    %422 = vmatpush1.xpose.msra.mxu0 0.0
    %423 = vmatprep.subr.mxu0 0.0
    %424 = vmatpush1.xpose.msra.mxu0 0.0
    %425 = vmatprep.subr.mxu0 0.0
    %426 = vmatpush1.xpose.msra.mxu0 0.0
    %427 = vmatprep.subr.mxu0 0.0
    %428 = vmatpush1.xpose.msra.mxu0 0.0
    %429 = vmatprep.subr.mxu0 0.0
    %430 = vmatpush1.xpose.msra.mxu0 0.0
    %431 = vmatprep.subr.mxu0 0.0
    %432 = vmatpush1.xpose.msra.mxu0 0.0
    %433 = vmatprep.subr.mxu0 0.0
    %434 = vmatpush1.xpose.msra.mxu0 0.0
    %435 = vmatprep.subr.mxu0 0.0
    %436 = vmatpush1.xpose.msra.mxu0 0.0
    %437 = vmatprep.subr.mxu0 0.0
    %438 = vmatpush1.xpose.msra.mxu0 0.0
    %439 = vmatprep.subr.mxu0 0.0
    %440 = vmatpush1.xpose.msra.mxu0 0.0
    %441 = vmatprep.subr.mxu0 0.0
    %442 = vmatpush1.xpose.msra.mxu0 0.0
    %443 = vmatprep.subr.mxu0 0.0
    %444 = vmatpush1.xpose.msra.mxu0 0.0
    %445 = vmatprep.subr.mxu0 0.0
    %446 = vmatpush1.xpose.msra.mxu0 0.0
    %447 = vmatprep.subr.mxu0 0.0
    %448 = vmatpush1.xpose.msra.mxu0 0.0
    %449 = vmatprep.subr.mxu0 0.0
    %450 = vmatpush1.xpose.msra.mxu0 0.0
    %451 = vmatprep.subr.mxu0 0.0
    %452 = vmatpush1.xpose.msra.mxu0 0.0
    %453 = vmatprep.subr.mxu0 0.0
    %454 = vmatpush1.xpose.msra.mxu0 0.0
    %455 = vmatprep.subr.mxu0 0.0
    %456 = vmatpush1.xpose.msra.mxu0 0.0
    %457 = vmatprep.subr.mxu0 0.0
    %458 = vmatpush1.xpose.msra.mxu0 0.0
    %459 = vmatprep.subr.mxu0 0.0
    %460 = vmatpush1.xpose.msra.mxu0 0.0
    %461 = vmatprep.subr.mxu0 0.0
    %462 = vmatpush1.xpose.msra.mxu0 0.0
    %463 = vmatprep.subr.mxu0 0.0
    %464 = vmatpush1.xpose.msra.mxu0 0.0
    %465 = vmatprep.subr.mxu0 0.0
    %466 = vmatpush1.xpose.msra.mxu0 0.0
    %467 = vmatprep.mubr.f32.mxu0 0.0
    %468 = vmatmul.mubr.f32.gmra.mrb[0].mxu0 %v398
    %v469 = vpop.f32.mrb[0].mxu0
    %v470 = vadd.f32 %v119, %v469
    %v471 = vpop.f32.mrb[0].mxu0
    %472 = vdwg.mxu0
    %v475 = vlaneseq
    %v476 = vshrl.u32 %v475, 7
    %v477 = vsub.s32 0, %v476
    %v478 = vrot.slane %v117, %v477
    %v479 = vlaneseq
    %v480 = vshrl.u32 %v479, 7
    %v481 = vsub.s32 0, %v480
    %v482 = vrot.slane %v118, %v481
    %v485 = vadd.f32 %v394, %v478
    %v486 = vadd.f32 %v470, %v482
    %vm487 = vcmask 64512
    %v488 = vsel %vm487, %v485, -inf
    %489 = vmax.xlane.f32.xlu0 %v488
    %v490 = vpop.xlane.xlu0 %489
    %v491 = vsel %vm487, %v486, -inf
    %492 = vmax.xlane.f32.xlu0 %v491
    %v493 = vpop.xlane.xlu0 %492
    %v494 = vsub.f32 %v485, %v490
    %v495 = vsub.f32 %v486, %v493
    %v496 = vmul.f32 %v494, 1.442695
    %v497 = vpow.pop %v496
    %v498 = vmul.f32 %v495, 1.442695
    %v499 = vpow.pop %v498
    %v500 = vsel %vm487, %v497, 0.0
    %501 = vadd.xlane.f32.xlu0 %v500
    %v502 = vpop.xlane.xlu0 %501
    %v503 = vsel %vm487, %v499, 0.0
    %504 = vadd.xlane.f32.xlu0 %v503
    %v505 = vpop.xlane.xlu0 %504
    %v506 = vrcp.pop %v502
    %v507 = vrcp.pop %v505
    %v508 = vmul.f32 %v497, %v506
    %v509 = vmul.f32 %v499, %v507
    %510 = vrot.lane.b32.xlu0 %v308, 96
    %v511 = vpop.permute.xlu0 %510
    %v514 = vsel %vm487, %v508, 0
    %516 = vmatprep.subr.mxu0 0.0
    %517 = vmatpush1.msra.mxu0 %v511
    %518 = vmatprep.subr.mxu0 0.0
    %519 = vmatpush1.msra.mxu0 0.0
    %520 = vmatprep.subr.mxu0 0.0
    %521 = vmatpush1.msra.mxu0 0.0
    %522 = vmatprep.subr.mxu0 0.0
    %523 = vmatpush1.msra.mxu0 0.0
    %524 = vmatprep.subr.mxu0 0.0
    %525 = vmatpush1.msra.mxu0 0.0
    %526 = vmatprep.subr.mxu0 0.0
    %527 = vmatpush1.msra.mxu0 0.0
    %528 = vmatprep.subr.mxu0 0.0
    %529 = vmatpush1.msra.mxu0 0.0
    %530 = vmatprep.subr.mxu0 0.0
    %531 = vmatpush1.msra.mxu0 0.0
    %532 = vmatprep.subr.mxu0 0.0
    %533 = vmatpush1.msra.mxu0 0.0
    %534 = vmatprep.subr.mxu0 0.0
    %535 = vmatpush1.msra.mxu0 0.0
    %536 = vmatprep.subr.mxu0 0.0
    %537 = vmatpush1.msra.mxu0 0.0
    %538 = vmatprep.subr.mxu0 0.0
    %539 = vmatpush1.msra.mxu0 0.0
    %540 = vmatprep.subr.mxu0 0.0
    %541 = vmatpush1.msra.mxu0 0.0
    %542 = vmatprep.subr.mxu0 0.0
    %543 = vmatpush1.msra.mxu0 0.0
    %544 = vmatprep.subr.mxu0 0.0
    %545 = vmatpush1.msra.mxu0 0.0
    %546 = vmatprep.subr.mxu0 0.0
    %547 = vmatpush1.msra.mxu0 0.0
    %548 = vmatprep.subr.mxu0 0.0
    %549 = vmatpush1.msra.mxu0 0.0
    %550 = vmatprep.subr.mxu0 0.0
    %551 = vmatpush1.msra.mxu0 0.0
    %552 = vmatprep.subr.mxu0 0.0
    %553 = vmatpush1.msra.mxu0 0.0
    %554 = vmatprep.subr.mxu0 0.0
    %555 = vmatpush1.msra.mxu0 0.0
    %556 = vmatprep.subr.mxu0 0.0
    %557 = vmatpush1.msra.mxu0 0.0
    %558 = vmatprep.subr.mxu0 0.0
    %559 = vmatpush1.msra.mxu0 0.0
    %560 = vmatprep.subr.mxu0 0.0
    %561 = vmatpush1.msra.mxu0 0.0
    %562 = vmatprep.subr.mxu0 0.0
    %563 = vmatpush1.msra.mxu0 0.0
    %564 = vmatprep.subr.mxu0 0.0
    %565 = vmatpush1.msra.mxu0 0.0
    %566 = vmatprep.subr.mxu0 0.0
    %567 = vmatpush1.msra.mxu0 0.0
    %568 = vmatprep.subr.mxu0 0.0
    %569 = vmatpush1.msra.mxu0 0.0
    %570 = vmatprep.subr.mxu0 0.0
    %571 = vmatpush1.msra.mxu0 0.0
    %572 = vmatprep.subr.mxu0 0.0
    %573 = vmatpush1.msra.mxu0 0.0
    %574 = vmatprep.subr.mxu0 0.0
    %575 = vmatpush1.msra.mxu0 0.0
    %576 = vmatprep.subr.mxu0 0.0
    %577 = vmatpush1.msra.mxu0 0.0
    %578 = vmatprep.subr.mxu0 0.0
    %579 = vmatpush1.msra.mxu0 0.0
    %580 = vmatprep.mubr.f32.mxu0 0.0
    %581 = vmatmul.mubr.f32.gmra.mrb[0].mxu0 %v514
    %v582 = vpop.f32.mrb[0].mxu0
    %v583 = vadd.f32 0.0, %v582
    %v584 = vpop.f32.mrb[0].mxu0
    %585 = vdwg.mxu0
    %586 = vrot.lane.b32.xlu0 %v313, 96
    %v587 = vpop.permute.xlu0 %586
    %v590 = vsel %vm487, %v509, 0
    %592 = vmatprep.subr.mxu0 0.0
    %593 = vmatpush1.msra.mxu0 %v587
    %594 = vmatprep.subr.mxu0 0.0
    %595 = vmatpush1.msra.mxu0 0.0
    %596 = vmatprep.subr.mxu0 0.0
    %597 = vmatpush1.msra.mxu0 0.0
    %598 = vmatprep.subr.mxu0 0.0
    %599 = vmatpush1.msra.mxu0 0.0
    %600 = vmatprep.subr.mxu0 0.0
    %601 = vmatpush1.msra.mxu0 0.0
    %602 = vmatprep.subr.mxu0 0.0
    %603 = vmatpush1.msra.mxu0 0.0
    %604 = vmatprep.subr.mxu0 0.0
    %605 = vmatpush1.msra.mxu0 0.0
    %606 = vmatprep.subr.mxu0 0.0
    %607 = vmatpush1.msra.mxu0 0.0
    %608 = vmatprep.subr.mxu0 0.0
    %609 = vmatpush1.msra.mxu0 0.0
    %610 = vmatprep.subr.mxu0 0.0
    %611 = vmatpush1.msra.mxu0 0.0
    %612 = vmatprep.subr.mxu0 0.0
    %613 = vmatpush1.msra.mxu0 0.0
    %614 = vmatprep.subr.mxu0 0.0
    %615 = vmatpush1.msra.mxu0 0.0
    %616 = vmatprep.subr.mxu0 0.0
    %617 = vmatpush1.msra.mxu0 0.0
    %618 = vmatprep.subr.mxu0 0.0
    %619 = vmatpush1.msra.mxu0 0.0
    %620 = vmatprep.subr.mxu0 0.0
    %621 = vmatpush1.msra.mxu0 0.0
    %622 = vmatprep.subr.mxu0 0.0
    %623 = vmatpush1.msra.mxu0 0.0
    %624 = vmatprep.subr.mxu0 0.0
    %625 = vmatpush1.msra.mxu0 0.0
    %626 = vmatprep.subr.mxu0 0.0
    %627 = vmatpush1.msra.mxu0 0.0
    %628 = vmatprep.subr.mxu0 0.0
    %629 = vmatpush1.msra.mxu0 0.0
    %630 = vmatprep.subr.mxu0 0.0
    %631 = vmatpush1.msra.mxu0 0.0
    %632 = vmatprep.subr.mxu0 0.0
    %633 = vmatpush1.msra.mxu0 0.0
    %634 = vmatprep.subr.mxu0 0.0
    %635 = vmatpush1.msra.mxu0 0.0
    %636 = vmatprep.subr.mxu0 0.0
    %637 = vmatpush1.msra.mxu0 0.0
    %638 = vmatprep.subr.mxu0 0.0
    %639 = vmatpush1.msra.mxu0 0.0
    %640 = vmatprep.subr.mxu0 0.0
    %641 = vmatpush1.msra.mxu0 0.0
    %642 = vmatprep.subr.mxu0 0.0
    %643 = vmatpush1.msra.mxu0 0.0
    %644 = vmatprep.subr.mxu0 0.0
    %645 = vmatpush1.msra.mxu0 0.0
    %646 = vmatprep.subr.mxu0 0.0
    %647 = vmatpush1.msra.mxu0 0.0
    %648 = vmatprep.subr.mxu0 0.0
    %649 = vmatpush1.msra.mxu0 0.0
    %650 = vmatprep.subr.mxu0 0.0
    %651 = vmatpush1.msra.mxu0 0.0
    %652 = vmatprep.subr.mxu0 0.0
    %653 = vmatpush1.msra.mxu0 0.0
    %654 = vmatprep.subr.mxu0 0.0
    %655 = vmatpush1.msra.mxu0 0.0
    %656 = vmatprep.mubr.f32.mxu0 0.0
    %657 = vmatmul.mubr.f32.gmra.mrb[0].mxu0 %v590
    %v658 = vpop.f32.mrb[0].mxu0
    %v659 = vadd.f32 0.0, %v658
    %v660 = vpop.f32.mrb[0].mxu0
    %661 = vdwg.mxu0
    %662 = vrot.lane.b32.xlu0 %v229, 112
    %v663 = vpop.permute.xlu0 %662
    %664 = vrot.lane.b32.xlu0 %v308, 112
    %v665 = vpop.permute.xlu0 %664
    %v666 = vsel %vm320, %v663, 0
    %v668 = vsel %vm320, %v665, 0
    %670 = vmatprep.subr.mxu0 0.0
    %671 = vmatpush1.xpose.msra.mxu0 %v668
    %672 = vmatprep.subr.mxu0 0.0
    %673 = vmatpush1.xpose.msra.mxu0 0.0
    %674 = vmatprep.subr.mxu0 0.0
    %675 = vmatpush1.xpose.msra.mxu0 0.0
    %676 = vmatprep.subr.mxu0 0.0
    %677 = vmatpush1.xpose.msra.mxu0 0.0
    %678 = vmatprep.subr.mxu0 0.0
    %679 = vmatpush1.xpose.msra.mxu0 0.0
    %680 = vmatprep.subr.mxu0 0.0
    %681 = vmatpush1.xpose.msra.mxu0 0.0
    %682 = vmatprep.subr.mxu0 0.0
    %683 = vmatpush1.xpose.msra.mxu0 0.0
    %684 = vmatprep.subr.mxu0 0.0
    %685 = vmatpush1.xpose.msra.mxu0 0.0
    %686 = vmatprep.subr.mxu0 0.0
    %687 = vmatpush1.xpose.msra.mxu0 0.0
    %688 = vmatprep.subr.mxu0 0.0
    %689 = vmatpush1.xpose.msra.mxu0 0.0
    %690 = vmatprep.subr.mxu0 0.0
    %691 = vmatpush1.xpose.msra.mxu0 0.0
    %692 = vmatprep.subr.mxu0 0.0
    %693 = vmatpush1.xpose.msra.mxu0 0.0
    %694 = vmatprep.subr.mxu0 0.0
    %695 = vmatpush1.xpose.msra.mxu0 0.0
    %696 = vmatprep.subr.mxu0 0.0
    %697 = vmatpush1.xpose.msra.mxu0 0.0
    %698 = vmatprep.subr.mxu0 0.0
    %699 = vmatpush1.xpose.msra.mxu0 0.0
    %700 = vmatprep.subr.mxu0 0.0
    %701 = vmatpush1.xpose.msra.mxu0 0.0
    %702 = vmatprep.subr.mxu0 0.0
    %703 = vmatpush1.xpose.msra.mxu0 0.0
    %704 = vmatprep.subr.mxu0 0.0
    %705 = vmatpush1.xpose.msra.mxu0 0.0
    %706 = vmatprep.subr.mxu0 0.0
    %707 = vmatpush1.xpose.msra.mxu0 0.0
    %708 = vmatprep.subr.mxu0 0.0
    %709 = vmatpush1.xpose.msra.mxu0 0.0
    %710 = vmatprep.subr.mxu0 0.0
    %711 = vmatpush1.xpose.msra.mxu0 0.0
    %712 = vmatprep.subr.mxu0 0.0
    %713 = vmatpush1.xpose.msra.mxu0 0.0
    %714 = vmatprep.subr.mxu0 0.0
    %715 = vmatpush1.xpose.msra.mxu0 0.0
    %716 = vmatprep.subr.mxu0 0.0
    %717 = vmatpush1.xpose.msra.mxu0 0.0
    %718 = vmatprep.subr.mxu0 0.0
    %719 = vmatpush1.xpose.msra.mxu0 0.0
    %720 = vmatprep.subr.mxu0 0.0
    %721 = vmatpush1.xpose.msra.mxu0 0.0
    %722 = vmatprep.subr.mxu0 0.0
    %723 = vmatpush1.xpose.msra.mxu0 0.0
    %724 = vmatprep.subr.mxu0 0.0
    %725 = vmatpush1.xpose.msra.mxu0 0.0
    %726 = vmatprep.subr.mxu0 0.0
    %727 = vmatpush1.xpose.msra.mxu0 0.0
    %728 = vmatprep.subr.mxu0 0.0
    %729 = vmatpush1.xpose.msra.mxu0 0.0
    %730 = vmatprep.subr.mxu0 0.0
    %731 = vmatpush1.xpose.msra.mxu0 0.0
    %732 = vmatprep.subr.mxu0 0.0
    %733 = vmatpush1.xpose.msra.mxu0 0.0
    %734 = vmatprep.mubr.f32.mxu0 0.0
    %735 = vmatmul.mubr.f32.gmra.mrb[0].mxu0 %v666
    %v736 = vpop.f32.mrb[0].mxu0
    %v737 = vadd.f32 %v120, %v736
    %v738 = vpop.f32.mrb[0].mxu0
    %739 = vdwg.mxu0
    %740 = vrot.lane.b32.xlu0 %v234, 112
    %v741 = vpop.permute.xlu0 %740
    %742 = vrot.lane.b32.xlu0 %v313, 112
    %v743 = vpop.permute.xlu0 %742
    %v744 = vsel %vm320, %v741, 0
    %v746 = vsel %vm320, %v743, 0
    %748 = vmatprep.subr.mxu0 0.0
    %749 = vmatpush1.xpose.msra.mxu0 %v746
    %750 = vmatprep.subr.mxu0 0.0
    %751 = vmatpush1.xpose.msra.mxu0 0.0
    %752 = vmatprep.subr.mxu0 0.0
    %753 = vmatpush1.xpose.msra.mxu0 0.0
    %754 = vmatprep.subr.mxu0 0.0
    %755 = vmatpush1.xpose.msra.mxu0 0.0
    %756 = vmatprep.subr.mxu0 0.0
    %757 = vmatpush1.xpose.msra.mxu0 0.0
    %758 = vmatprep.subr.mxu0 0.0
    %759 = vmatpush1.xpose.msra.mxu0 0.0
    %760 = vmatprep.subr.mxu0 0.0
    %761 = vmatpush1.xpose.msra.mxu0 0.0
    %762 = vmatprep.subr.mxu0 0.0
    %763 = vmatpush1.xpose.msra.mxu0 0.0
    %764 = vmatprep.subr.mxu0 0.0
    %765 = vmatpush1.xpose.msra.mxu0 0.0
    %766 = vmatprep.subr.mxu0 0.0
    %767 = vmatpush1.xpose.msra.mxu0 0.0
    %768 = vmatprep.subr.mxu0 0.0
    %769 = vmatpush1.xpose.msra.mxu0 0.0
    %770 = vmatprep.subr.mxu0 0.0
    %771 = vmatpush1.xpose.msra.mxu0 0.0
    %772 = vmatprep.subr.mxu0 0.0
    %773 = vmatpush1.xpose.msra.mxu0 0.0
    %774 = vmatprep.subr.mxu0 0.0
    %775 = vmatpush1.xpose.msra.mxu0 0.0
    %776 = vmatprep.subr.mxu0 0.0
    %777 = vmatpush1.xpose.msra.mxu0 0.0
    %778 = vmatprep.subr.mxu0 0.0
    %779 = vmatpush1.xpose.msra.mxu0 0.0
    %780 = vmatprep.subr.mxu0 0.0
    %781 = vmatpush1.xpose.msra.mxu0 0.0
    %782 = vmatprep.subr.mxu0 0.0
    %783 = vmatpush1.xpose.msra.mxu0 0.0
    %784 = vmatprep.subr.mxu0 0.0
    %785 = vmatpush1.xpose.msra.mxu0 0.0
    %786 = vmatprep.subr.mxu0 0.0
    %787 = vmatpush1.xpose.msra.mxu0 0.0
    %788 = vmatprep.subr.mxu0 0.0
    %789 = vmatpush1.xpose.msra.mxu0 0.0
    %790 = vmatprep.subr.mxu0 0.0
    %791 = vmatpush1.xpose.msra.mxu0 0.0
    %792 = vmatprep.subr.mxu0 0.0
    %793 = vmatpush1.xpose.msra.mxu0 0.0
    %794 = vmatprep.subr.mxu0 0.0
    %795 = vmatpush1.xpose.msra.mxu0 0.0
    %796 = vmatprep.subr.mxu0 0.0
    %797 = vmatpush1.xpose.msra.mxu0 0.0
    %798 = vmatprep.subr.mxu0 0.0
    %799 = vmatpush1.xpose.msra.mxu0 0.0
    %800 = vmatprep.subr.mxu0 0.0
    %801 = vmatpush1.xpose.msra.mxu0 0.0
    %802 = vmatprep.subr.mxu0 0.0
    %803 = vmatpush1.xpose.msra.mxu0 0.0
    %804 = vmatprep.subr.mxu0 0.0
    %805 = vmatpush1.xpose.msra.mxu0 0.0
    %806 = vmatprep.subr.mxu0 0.0
    %807 = vmatpush1.xpose.msra.mxu0 0.0
    %808 = vmatprep.subr.mxu0 0.0
    %809 = vmatpush1.xpose.msra.mxu0 0.0
    %810 = vmatprep.subr.mxu0 0.0
    %811 = vmatpush1.xpose.msra.mxu0 0.0
    %812 = vmatprep.mubr.f32.mxu0 0.0
    %813 = vmatmul.mubr.f32.gmra.mrb[0].mxu0 %v744
    %v814 = vpop.f32.mrb[0].mxu0
    %v815 = vadd.f32 %v120, %v814
    %v816 = vpop.f32.mrb[0].mxu0
    %817 = vdwg.mxu0
    %v818 = vadd.f32 %v737, %v478
    %v819 = vadd.f32 %v815, %v482
    %v820 = vsel %vm487, %v818, -inf
    %821 = vmax.xlane.f32.xlu0 %v820
    %v822 = vpop.xlane.xlu0 %821
    %v823 = vsel %vm487, %v819, -inf
    %824 = vmax.xlane.f32.xlu0 %v823
    %v825 = vpop.xlane.xlu0 %824
    %v826 = vsub.f32 %v818, %v822
    %v827 = vsub.f32 %v819, %v825
    %v828 = vmul.f32 %v826, 1.442695
    %v829 = vpow.pop %v828
    %v830 = vmul.f32 %v827, 1.442695
    %v831 = vpow.pop %v830
    %v832 = vsel %vm487, %v829, 0.0
    %833 = vadd.xlane.f32.xlu0 %v832
    %v834 = vpop.xlane.xlu0 %833
    %v835 = vsel %vm487, %v831, 0.0
    %836 = vadd.xlane.f32.xlu0 %v835
    %v837 = vpop.xlane.xlu0 %836
    %v838 = vrcp.pop %v834
    %v839 = vrcp.pop %v837
    %v840 = vmul.f32 %v829, %v838
    %v841 = vmul.f32 %v831, %v839
    %842 = vrot.lane.b32.xlu0 %v308, 80
    %v843 = vpop.permute.xlu0 %842
    %v846 = vsel %vm487, %v840, 0
    %848 = vmatprep.subr.mxu0 0.0
    %849 = vmatpush1.msra.mxu0 %v843
    %850 = vmatprep.subr.mxu0 0.0
    %851 = vmatpush1.msra.mxu0 0.0
    %852 = vmatprep.subr.mxu0 0.0
    %853 = vmatpush1.msra.mxu0 0.0
    %854 = vmatprep.subr.mxu0 0.0
    %855 = vmatpush1.msra.mxu0 0.0
    %856 = vmatprep.subr.mxu0 0.0
    %857 = vmatpush1.msra.mxu0 0.0
    %858 = vmatprep.subr.mxu0 0.0
    %859 = vmatpush1.msra.mxu0 0.0
    %860 = vmatprep.subr.mxu0 0.0
    %861 = vmatpush1.msra.mxu0 0.0
    %862 = vmatprep.subr.mxu0 0.0
    %863 = vmatpush1.msra.mxu0 0.0
    %864 = vmatprep.subr.mxu0 0.0
    %865 = vmatpush1.msra.mxu0 0.0
    %866 = vmatprep.subr.mxu0 0.0
    %867 = vmatpush1.msra.mxu0 0.0
    %868 = vmatprep.subr.mxu0 0.0
    %869 = vmatpush1.msra.mxu0 0.0
    %870 = vmatprep.subr.mxu0 0.0
    %871 = vmatpush1.msra.mxu0 0.0
    %872 = vmatprep.subr.mxu0 0.0
    %873 = vmatpush1.msra.mxu0 0.0
    %874 = vmatprep.subr.mxu0 0.0
    %875 = vmatpush1.msra.mxu0 0.0
    %876 = vmatprep.subr.mxu0 0.0
    %877 = vmatpush1.msra.mxu0 0.0
    %878 = vmatprep.subr.mxu0 0.0
    %879 = vmatpush1.msra.mxu0 0.0
    %880 = vmatprep.subr.mxu0 0.0
    %881 = vmatpush1.msra.mxu0 0.0
    %882 = vmatprep.subr.mxu0 0.0
    %883 = vmatpush1.msra.mxu0 0.0
    %884 = vmatprep.subr.mxu0 0.0
    %885 = vmatpush1.msra.mxu0 0.0
    %886 = vmatprep.subr.mxu0 0.0
    %887 = vmatpush1.msra.mxu0 0.0
    %888 = vmatprep.subr.mxu0 0.0
    %889 = vmatpush1.msra.mxu0 0.0
    %890 = vmatprep.subr.mxu0 0.0
    %891 = vmatpush1.msra.mxu0 0.0
    %892 = vmatprep.subr.mxu0 0.0
    %893 = vmatpush1.msra.mxu0 0.0
    %894 = vmatprep.subr.mxu0 0.0
    %895 = vmatpush1.msra.mxu0 0.0
    %896 = vmatprep.subr.mxu0 0.0
    %897 = vmatpush1.msra.mxu0 0.0
    %898 = vmatprep.subr.mxu0 0.0
    %899 = vmatpush1.msra.mxu0 0.0
    %900 = vmatprep.subr.mxu0 0.0
    %901 = vmatpush1.msra.mxu0 0.0
    %902 = vmatprep.subr.mxu0 0.0
    %903 = vmatpush1.msra.mxu0 0.0
    %904 = vmatprep.subr.mxu0 0.0
    %905 = vmatpush1.msra.mxu0 0.0
    %906 = vmatprep.subr.mxu0 0.0
    %907 = vmatpush1.msra.mxu0 0.0
    %908 = vmatprep.subr.mxu0 0.0
    %909 = vmatpush1.msra.mxu0 0.0
    %910 = vmatprep.subr.mxu0 0.0
    %911 = vmatpush1.msra.mxu0 0.0
    %912 = vmatprep.mubr.f32.mxu0 0.0
    %913 = vmatmul.mubr.f32.gmra.mrb[0].mxu0 %v846
    %v914 = vpop.f32.mrb[0].mxu0
    %v915 = vadd.f32 0.0, %v914
    %v916 = vpop.f32.mrb[0].mxu0
    %917 = vdwg.mxu0
    %918 = vrot.lane.b32.xlu0 %v313, 80
    %v919 = vpop.permute.xlu0 %918
    %v922 = vsel %vm487, %v841, 0
    %924 = vmatprep.subr.mxu0 0.0
    %925 = vmatpush1.msra.mxu0 %v919
    %926 = vmatprep.subr.mxu0 0.0
    %927 = vmatpush1.msra.mxu0 0.0
    %928 = vmatprep.subr.mxu0 0.0
    %929 = vmatpush1.msra.mxu0 0.0
    %930 = vmatprep.subr.mxu0 0.0
    %931 = vmatpush1.msra.mxu0 0.0
    %932 = vmatprep.subr.mxu0 0.0
    %933 = vmatpush1.msra.mxu0 0.0
    %934 = vmatprep.subr.mxu0 0.0
    %935 = vmatpush1.msra.mxu0 0.0
    %936 = vmatprep.subr.mxu0 0.0
    %937 = vmatpush1.msra.mxu0 0.0
    %938 = vmatprep.subr.mxu0 0.0
    %939 = vmatpush1.msra.mxu0 0.0
    %940 = vmatprep.subr.mxu0 0.0
    %941 = vmatpush1.msra.mxu0 0.0
    %942 = vmatprep.subr.mxu0 0.0
    %943 = vmatpush1.msra.mxu0 0.0
    %944 = vmatprep.subr.mxu0 0.0
    %945 = vmatpush1.msra.mxu0 0.0
    %946 = vmatprep.subr.mxu0 0.0
    %947 = vmatpush1.msra.mxu0 0.0
    %948 = vmatprep.subr.mxu0 0.0
    %949 = vmatpush1.msra.mxu0 0.0
    %950 = vmatprep.subr.mxu0 0.0
    %951 = vmatpush1.msra.mxu0 0.0
    %952 = vmatprep.subr.mxu0 0.0
    %953 = vmatpush1.msra.mxu0 0.0
    %954 = vmatprep.subr.mxu0 0.0
    %955 = vmatpush1.msra.mxu0 0.0
    %956 = vmatprep.subr.mxu0 0.0
    %957 = vmatpush1.msra.mxu0 0.0
    %958 = vmatprep.subr.mxu0 0.0
    %959 = vmatpush1.msra.mxu0 0.0
    %960 = vmatprep.subr.mxu0 0.0
    %961 = vmatpush1.msra.mxu0 0.0
    %962 = vmatprep.subr.mxu0 0.0
    %963 = vmatpush1.msra.mxu0 0.0
    %964 = vmatprep.subr.mxu0 0.0
    %965 = vmatpush1.msra.mxu0 0.0
    %966 = vmatprep.subr.mxu0 0.0
    %967 = vmatpush1.msra.mxu0 0.0
    %968 = vmatprep.subr.mxu0 0.0
    %969 = vmatpush1.msra.mxu0 0.0
    %970 = vmatprep.subr.mxu0 0.0
    %971 = vmatpush1.msra.mxu0 0.0
    %972 = vmatprep.subr.mxu0 0.0
    %973 = vmatpush1.msra.mxu0 0.0
    %974 = vmatprep.subr.mxu0 0.0
    %975 = vmatpush1.msra.mxu0 0.0
    %976 = vmatprep.subr.mxu0 0.0
    %977 = vmatpush1.msra.mxu0 0.0
    %978 = vmatprep.subr.mxu0 0.0
    %979 = vmatpush1.msra.mxu0 0.0
    %980 = vmatprep.subr.mxu0 0.0
    %981 = vmatpush1.msra.mxu0 0.0
    %982 = vmatprep.subr.mxu0 0.0
    %983 = vmatpush1.msra.mxu0 0.0
    %984 = vmatprep.subr.mxu0 0.0
    %985 = vmatpush1.msra.mxu0 0.0
    %986 = vmatprep.subr.mxu0 0.0
    %987 = vmatpush1.msra.mxu0 0.0
    %988 = vmatprep.mubr.f32.mxu0 0.0
    %989 = vmatmul.mubr.f32.gmra.mrb[0].mxu0 %v922
    %v990 = vpop.f32.mrb[0].mxu0
    %v991 = vadd.f32 0.0, %v990
    %v992 = vpop.f32.mrb[0].mxu0
    %993 = vdwg.mxu0
    %v995 = vsel %vm320, %v915, 0
    %v998 = vsel %vm320, %v991, 0
    %1000 = vmatprep.subr.mxu0 0.0
    %1001 = vmatpush1.msra.mxu0 %v318
    %1002 = vmatprep.subr.mxu0 0.0
    %1003 = vmatpush1.msra.mxu0 %v319
    %1004 = vmatprep.subr.mxu0 0.0
    %1005 = vmatpush1.msra.mxu0 0.0
    %1006 = vmatprep.subr.mxu0 0.0
    %1007 = vmatpush1.msra.mxu0 0.0
    %1008 = vmatprep.subr.mxu0 0.0
    %1009 = vmatpush1.msra.mxu0 0.0
    %1010 = vmatprep.subr.mxu0 0.0
    %1011 = vmatpush1.msra.mxu0 0.0
    %1012 = vmatprep.subr.mxu0 0.0
    %1013 = vmatpush1.msra.mxu0 0.0
    %1014 = vmatprep.subr.mxu0 0.0
    %1015 = vmatpush1.msra.mxu0 0.0
    %1016 = vmatprep.subr.mxu0 0.0
    %1017 = vmatpush1.msra.mxu0 0.0
    %1018 = vmatprep.subr.mxu0 0.0
    %1019 = vmatpush1.msra.mxu0 0.0
    %1020 = vmatprep.subr.mxu0 0.0
    %1021 = vmatpush1.msra.mxu0 0.0
    %1022 = vmatprep.subr.mxu0 0.0
    %1023 = vmatpush1.msra.mxu0 0.0
    %1024 = vmatprep.subr.mxu0 0.0
    %1025 = vmatpush1.msra.mxu0 0.0
    %1026 = vmatprep.subr.mxu0 0.0
    %1027 = vmatpush1.msra.mxu0 0.0
    %1028 = vmatprep.subr.mxu0 0.0
    %1029 = vmatpush1.msra.mxu0 0.0
    %1030 = vmatprep.subr.mxu0 0.0
    %1031 = vmatpush1.msra.mxu0 0.0
    %1032 = vmatprep.subr.mxu0 0.0
    %1033 = vmatpush1.msra.mxu0 0.0
    %1034 = vmatprep.subr.mxu0 0.0
    %1035 = vmatpush1.msra.mxu0 0.0
    %1036 = vmatprep.subr.mxu0 0.0
    %1037 = vmatpush1.msra.mxu0 0.0
    %1038 = vmatprep.subr.mxu0 0.0
    %1039 = vmatpush1.msra.mxu0 0.0
    %1040 = vmatprep.subr.mxu0 0.0
    %1041 = vmatpush1.msra.mxu0 0.0
    %1042 = vmatprep.subr.mxu0 0.0
    %1043 = vmatpush1.msra.mxu0 0.0
    %1044 = vmatprep.subr.mxu0 0.0
    %1045 = vmatpush1.msra.mxu0 0.0
    %1046 = vmatprep.subr.mxu0 0.0
    %1047 = vmatpush1.msra.mxu0 0.0
    %1048 = vmatprep.subr.mxu0 0.0
    %1049 = vmatpush1.msra.mxu0 0.0
    %1050 = vmatprep.subr.mxu0 0.0
    %1051 = vmatpush1.msra.mxu0 0.0
    %1052 = vmatprep.subr.mxu0 0.0
    %1053 = vmatpush1.msra.mxu0 0.0
    %1054 = vmatprep.subr.mxu0 0.0
    %1055 = vmatpush1.msra.mxu0 0.0
    %1056 = vmatprep.subr.mxu0 0.0
    %1057 = vmatpush1.msra.mxu0 0.0
    %1058 = vmatprep.subr.mxu0 0.0
    %1059 = vmatpush1.msra.mxu0 0.0
    %1060 = vmatprep.subr.mxu0 0.0
    %1061 = vmatpush1.msra.mxu0 0.0
    %1062 = vmatprep.subr.mxu0 0.0
    %1063 = vmatpush1.msra.mxu0 0.0
    %1064 = vmatprep.mubr.f32.mxu0 0.0
    %1065 = vmatmul.mubr.f32.gmra.mrb[0].mxu0 %v995
    %v1066 = vpop.f32.mrb[0].mxu0
    %v1067 = vadd.f32 0.0, %v1066
    %v1068 = vpop.f32.mrb[0].mxu0
    %1069 = vmatprep.mubr.f32.mxu0 0.0
    %1070 = vmatmul.mubr.f32.gmra.mrb[0].mxu0 %v998
    %v1071 = vpop.f32.mrb[0].mxu0
    %v1072 = vadd.f32 0.0, %v1071
    %v1073 = vpop.f32.mrb[0].mxu0
    %1074 = vdwg.mxu0
    %v1076 = vsel %vm320, %v583, 0
    %v1079 = vsel %vm320, %v659, 0
    %1081 = vmatprep.subr.mxu0 0.0
    %1082 = vmatpush1.msra.mxu0 %v316
    %1083 = vmatprep.subr.mxu0 0.0
    %1084 = vmatpush1.msra.mxu0 %v317
    %1085 = vmatprep.subr.mxu0 0.0
    %1086 = vmatpush1.msra.mxu0 0.0
    %1087 = vmatprep.subr.mxu0 0.0
    %1088 = vmatpush1.msra.mxu0 0.0
    %1089 = vmatprep.subr.mxu0 0.0
    %1090 = vmatpush1.msra.mxu0 0.0
    %1091 = vmatprep.subr.mxu0 0.0
    %1092 = vmatpush1.msra.mxu0 0.0
    %1093 = vmatprep.subr.mxu0 0.0
    %1094 = vmatpush1.msra.mxu0 0.0
    %1095 = vmatprep.subr.mxu0 0.0
    %1096 = vmatpush1.msra.mxu0 0.0
    %1097 = vmatprep.subr.mxu0 0.0
    %1098 = vmatpush1.msra.mxu0 0.0
    %1099 = vmatprep.subr.mxu0 0.0
    %1100 = vmatpush1.msra.mxu0 0.0
    %1101 = vmatprep.subr.mxu0 0.0
    %1102 = vmatpush1.msra.mxu0 0.0
    %1103 = vmatprep.subr.mxu0 0.0
    %1104 = vmatpush1.msra.mxu0 0.0
    %1105 = vmatprep.subr.mxu0 0.0
    %1106 = vmatpush1.msra.mxu0 0.0
    %1107 = vmatprep.subr.mxu0 0.0
    %1108 = vmatpush1.msra.mxu0 0.0
    %1109 = vmatprep.subr.mxu0 0.0
    %1110 = vmatpush1.msra.mxu0 0.0
    %1111 = vmatprep.subr.mxu0 0.0
    %1112 = vmatpush1.msra.mxu0 0.0
    %1113 = vmatprep.subr.mxu0 0.0
    %1114 = vmatpush1.msra.mxu0 0.0
    %1115 = vmatprep.subr.mxu0 0.0
    %1116 = vmatpush1.msra.mxu0 0.0
    %1117 = vmatprep.subr.mxu0 0.0
    %1118 = vmatpush1.msra.mxu0 0.0
    %1119 = vmatprep.subr.mxu0 0.0
    %1120 = vmatpush1.msra.mxu0 0.0
    %1121 = vmatprep.subr.mxu0 0.0
    %1122 = vmatpush1.msra.mxu0 0.0
    %1123 = vmatprep.subr.mxu0 0.0
    %1124 = vmatpush1.msra.mxu0 0.0
    %1125 = vmatprep.subr.mxu0 0.0
    %1126 = vmatpush1.msra.mxu0 0.0
    %1127 = vmatprep.subr.mxu0 0.0
    %1128 = vmatpush1.msra.mxu0 0.0
    %1129 = vmatprep.subr.mxu0 0.0
    %1130 = vmatpush1.msra.mxu0 0.0
    %1131 = vmatprep.subr.mxu0 0.0
    %1132 = vmatpush1.msra.mxu0 0.0
    %1133 = vmatprep.subr.mxu0 0.0
    %1134 = vmatpush1.msra.mxu0 0.0
    %1135 = vmatprep.subr.mxu0 0.0
    %1136 = vmatpush1.msra.mxu0 0.0
    %1137 = vmatprep.subr.mxu0 0.0
    %1138 = vmatpush1.msra.mxu0 0.0
    %1139 = vmatprep.subr.mxu0 0.0
    %1140 = vmatpush1.msra.mxu0 0.0
    %1141 = vmatprep.subr.mxu0 0.0
    %1142 = vmatpush1.msra.mxu0 0.0
    %1143 = vmatprep.subr.mxu0 0.0
    %1144 = vmatpush1.msra.mxu0 0.0
    %1145 = vmatprep.mubr.f32.mxu0 0.0
    %1146 = vmatmul.mubr.f32.gmra.mrb[0].mxu0 %v1076
    %v1147 = vpop.f32.mrb[0].mxu0
    %v1148 = vadd.f32 %v1067, %v1147
    %v1149 = vpop.f32.mrb[0].mxu0
    %1150 = vmatprep.mubr.f32.mxu0 0.0
    %1151 = vmatmul.mubr.f32.gmra.mrb[0].mxu0 %v1079
    %v1152 = vpop.f32.mrb[0].mxu0
    %v1153 = vadd.f32 %v1072, %v1152
    %v1154 = vpop.f32.mrb[0].mxu0
    %1155 = vdwg.mxu0
    %v1156 = vadd.f32 %v123, %v1148
    %v1157 = vadd.f32 %v124, %v1153
    %v1158 = vmul.f32 %v1156, %v1156
    %v1159 = vmul.f32 %v1157, %v1157
    %v1160 = vsel %vm127, %v1158, 0.0
    %1161 = vadd.xlane.f32.xlu0 %v1160
    %v1162 = vpop.xlane.xlu0 %1161
    %v1163 = vsel %vm127, %v1159, 0.0
    %1164 = vadd.xlane.f32.xlu0 %v1163
    %v1165 = vpop.xlane.xlu0 %1164
    %v1166 = vmul.f32 %v1162, %v134
    %v1167 = vmul.f32 %v1165, %v134
    %v1168 = vadd.f32 %v1166, 1e-06
    %v1169 = vadd.f32 %v1167, 1e-06
    %v1170 = vrsqrt.pop %v1168
    %v1171 = vrsqrt.pop %v1169
    %v1172 = vmul.f32 %v1156, %v1170
    %v1173 = vmul.f32 %v1157, %v1171
    %v1174 = vld [vmem:[%s11] sm:$0x1]
    %v1176 = vlaneseq
    %v1177 = vshrl.u32 %v1176, 7
    %v1178 = vsub.s32 0, %v1177
    %v1179 = vrot.slane %v1174, %v1178
    %v1181 = vmul.f32 %v1172, %v1179
    %v1182 = vmul.f32 %v1173, %v1179
    %v1183 = vld [vmem:[%s12] sm:$0xff]
    %v1184 = vld [vmem:[%s12 + $0x8] sm:$0xff]
    %v1185 = vld [vmem:[%s12 + $0x10] sm:$0xff]
    %v1186 = vld [vmem:[%s12 + $0x18] sm:$0xff]
    %v1188 = vsel %vm127, %v1181, 0
    %v1191 = vsel %vm127, %v1182, 0
    %1193 = vmatprep.subr.mxu0 0.0
    %1194 = vmatpush1.msra.mxu0 %v1183
    %1195 = vmatprep.subr.mxu0 0.0
    %1196 = vmatpush1.msra.mxu0 %v1184
    %1197 = vmatprep.subr.mxu0 0.0
    %1198 = vmatpush1.msra.mxu0 %v1185
    %1199 = vmatprep.subr.mxu0 0.0
    %1200 = vmatpush1.msra.mxu0 %v1186
    %1201 = vmatprep.subr.mxu0 0.0
    %1202 = vmatpush1.msra.mxu0 0.0
    %1203 = vmatprep.subr.mxu0 0.0
    %1204 = vmatpush1.msra.mxu0 0.0
    %1205 = vmatprep.subr.mxu0 0.0
    %1206 = vmatpush1.msra.mxu0 0.0
    %1207 = vmatprep.subr.mxu0 0.0
    %1208 = vmatpush1.msra.mxu0 0.0
    %1209 = vmatprep.subr.mxu0 0.0
    %1210 = vmatpush1.msra.mxu0 0.0
    %1211 = vmatprep.subr.mxu0 0.0
    %1212 = vmatpush1.msra.mxu0 0.0
    %1213 = vmatprep.subr.mxu0 0.0
    %1214 = vmatpush1.msra.mxu0 0.0
    %1215 = vmatprep.subr.mxu0 0.0
    %1216 = vmatpush1.msra.mxu0 0.0
    %1217 = vmatprep.subr.mxu0 0.0
    %1218 = vmatpush1.msra.mxu0 0.0
    %1219 = vmatprep.subr.mxu0 0.0
    %1220 = vmatpush1.msra.mxu0 0.0
    %1221 = vmatprep.subr.mxu0 0.0
    %1222 = vmatpush1.msra.mxu0 0.0
    %1223 = vmatprep.subr.mxu0 0.0
    %1224 = vmatpush1.msra.mxu0 0.0
    %1225 = vmatprep.subr.mxu0 0.0
    %1226 = vmatpush1.msra.mxu0 0.0
    %1227 = vmatprep.subr.mxu0 0.0
    %1228 = vmatpush1.msra.mxu0 0.0
    %1229 = vmatprep.subr.mxu0 0.0
    %1230 = vmatpush1.msra.mxu0 0.0
    %1231 = vmatprep.subr.mxu0 0.0
    %1232 = vmatpush1.msra.mxu0 0.0
    %1233 = vmatprep.subr.mxu0 0.0
    %1234 = vmatpush1.msra.mxu0 0.0
    %1235 = vmatprep.subr.mxu0 0.0
    %1236 = vmatpush1.msra.mxu0 0.0
    %1237 = vmatprep.subr.mxu0 0.0
    %1238 = vmatpush1.msra.mxu0 0.0
    %1239 = vmatprep.subr.mxu0 0.0
    %1240 = vmatpush1.msra.mxu0 0.0
    %1241 = vmatprep.subr.mxu0 0.0
    %1242 = vmatpush1.msra.mxu0 0.0
    %1243 = vmatprep.subr.mxu0 0.0
    %1244 = vmatpush1.msra.mxu0 0.0
    %1245 = vmatprep.subr.mxu0 0.0
    %1246 = vmatpush1.msra.mxu0 0.0
    %1247 = vmatprep.subr.mxu0 0.0
    %1248 = vmatpush1.msra.mxu0 0.0
    %1249 = vmatprep.subr.mxu0 0.0
    %1250 = vmatpush1.msra.mxu0 0.0
    %1251 = vmatprep.subr.mxu0 0.0
    %1252 = vmatpush1.msra.mxu0 0.0
    %1253 = vmatprep.subr.mxu0 0.0
    %1254 = vmatpush1.msra.mxu0 0.0
    %1255 = vmatprep.subr.mxu0 0.0
    %1256 = vmatpush1.msra.mxu0 0.0
    %1257 = vmatprep.mubr.f32.mxu0 0.0
    %1258 = vmatmul.mubr.f32.gmra.mrb[0].mxu0 %v1188
    %v1259 = vpop.f32.mrb[0].mxu0
    %v1260 = vadd.f32 0.0, %v1259
    %v1261 = vpop.f32.mrb[0].mxu0
    %1262 = vmatprep.mubr.f32.mxu0 0.0
    %1263 = vmatmul.mubr.f32.gmra.mrb[0].mxu0 %v1191
    %v1264 = vpop.f32.mrb[0].mxu0
    %v1265 = vadd.f32 0.0, %v1264
    %v1266 = vpop.f32.mrb[0].mxu0
    %1267 = vdwg.mxu0
    %v1268 = vmax.f32 %v1260, 0.0
    %v1269 = vmax.f32 %v1265, 0.0
    %v1270 = vld [vmem:[%s13] sm:$0xff]
    %v1271 = vld [vmem:[%s13 + $0x8] sm:$0xff]
    %v1272 = vld [vmem:[%s13 + $0x10] sm:$0xff]
    %v1273 = vld [vmem:[%s13 + $0x18] sm:$0xff]
    %v1274 = vld [vmem:[%s13 + $0x20] sm:$0xff]
    %v1275 = vld [vmem:[%s13 + $0x28] sm:$0xff]
    %v1276 = vld [vmem:[%s13 + $0x30] sm:$0xff]
    %v1277 = vld [vmem:[%s13 + $0x38] sm:$0xff]
    %vm1278 = vcmask 523264
    %v1280 = vsel %vm1278, %v1268, 0
    %v1283 = vsel %vm1278, %v1269, 0
    %1285 = vmatprep.subr.mxu0 0.0
    %1286 = vmatpush1.msra.mxu0 %v1270
    %1287 = vmatprep.subr.mxu0 0.0
    %1288 = vmatpush1.msra.mxu0 %v1271
    %1289 = vmatprep.subr.mxu0 0.0
    %1290 = vmatpush1.msra.mxu0 %v1272
    %1291 = vmatprep.subr.mxu0 0.0
    %1292 = vmatpush1.msra.mxu0 %v1273
    %1293 = vmatprep.subr.mxu0 0.0
    %1294 = vmatpush1.msra.mxu0 %v1274
    %1295 = vmatprep.subr.mxu0 0.0
    %1296 = vmatpush1.msra.mxu0 %v1275
    %1297 = vmatprep.subr.mxu0 0.0
    %1298 = vmatpush1.msra.mxu0 %v1276
    %1299 = vmatprep.subr.mxu0 0.0
    %1300 = vmatpush1.msra.mxu0 %v1277
    %1301 = vmatprep.subr.mxu0 0.0
    %1302 = vmatpush1.msra.mxu0 0.0
    %1303 = vmatprep.subr.mxu0 0.0
    %1304 = vmatpush1.msra.mxu0 0.0
    %1305 = vmatprep.subr.mxu0 0.0
    %1306 = vmatpush1.msra.mxu0 0.0
    %1307 = vmatprep.subr.mxu0 0.0
    %1308 = vmatpush1.msra.mxu0 0.0
    %1309 = vmatprep.subr.mxu0 0.0
    %1310 = vmatpush1.msra.mxu0 0.0
    %1311 = vmatprep.subr.mxu0 0.0
    %1312 = vmatpush1.msra.mxu0 0.0
    %1313 = vmatprep.subr.mxu0 0.0
    %1314 = vmatpush1.msra.mxu0 0.0
    %1315 = vmatprep.subr.mxu0 0.0
    %1316 = vmatpush1.msra.mxu0 0.0
    %1317 = vmatprep.subr.mxu0 0.0
    %1318 = vmatpush1.msra.mxu0 0.0
    %1319 = vmatprep.subr.mxu0 0.0
    %1320 = vmatpush1.msra.mxu0 0.0
    %1321 = vmatprep.subr.mxu0 0.0
    %1322 = vmatpush1.msra.mxu0 0.0
    %1323 = vmatprep.subr.mxu0 0.0
    %1324 = vmatpush1.msra.mxu0 0.0
    %1325 = vmatprep.subr.mxu0 0.0
    %1326 = vmatpush1.msra.mxu0 0.0
    %1327 = vmatprep.subr.mxu0 0.0
    %1328 = vmatpush1.msra.mxu0 0.0
    %1329 = vmatprep.subr.mxu0 0.0
    %1330 = vmatpush1.msra.mxu0 0.0
    %1331 = vmatprep.subr.mxu0 0.0
    %1332 = vmatpush1.msra.mxu0 0.0
    %1333 = vmatprep.subr.mxu0 0.0
    %1334 = vmatpush1.msra.mxu0 0.0
    %1335 = vmatprep.subr.mxu0 0.0
    %1336 = vmatpush1.msra.mxu0 0.0
    %1337 = vmatprep.subr.mxu0 0.0
    %1338 = vmatpush1.msra.mxu0 0.0
    %1339 = vmatprep.subr.mxu0 0.0
    %1340 = vmatpush1.msra.mxu0 0.0
    %1341 = vmatprep.subr.mxu0 0.0
    %1342 = vmatpush1.msra.mxu0 0.0
    %1343 = vmatprep.subr.mxu0 0.0
    %1344 = vmatpush1.msra.mxu0 0.0
    %1345 = vmatprep.subr.mxu0 0.0
    %1346 = vmatpush1.msra.mxu0 0.0
    %1347 = vmatprep.subr.mxu0 0.0
    %1348 = vmatpush1.msra.mxu0 0.0
    %1349 = vmatprep.mubr.f32.mxu0 0.0
    %1350 = vmatmul.mubr.f32.gmra.mrb[0].mxu0 %v1280
    %v1351 = vpop.f32.mrb[0].mxu0
    %v1352 = vadd.f32 0.0, %v1351
    %v1353 = vpop.f32.mrb[0].mxu0
    %1354 = vmatprep.mubr.f32.mxu0 0.0
    %1355 = vmatmul.mubr.f32.gmra.mrb[0].mxu0 %v1283
    %v1356 = vpop.f32.mrb[0].mxu0
    %v1357 = vadd.f32 0.0, %v1356
    %v1358 = vpop.f32.mrb[0].mxu0
    %1359 = vdwg.mxu0
    %v1360 = vadd.f32 %v1156, %v1352
    %v1361 = vadd.f32 %v1157, %v1357
    %v1362 = vmul.f32 %v1360, %v1360
    %v1363 = vmul.f32 %v1361, %v1361
    %v1364 = vsel %vm127, %v1362, 0.0
    %1365 = vadd.xlane.f32.xlu0 %v1364
    %v1366 = vpop.xlane.xlu0 %1365
    %v1367 = vsel %vm127, %v1363, 0.0
    %1368 = vadd.xlane.f32.xlu0 %v1367
    %v1369 = vpop.xlane.xlu0 %1368
    %v1370 = vmul.f32 %v1366, %v134
    %v1371 = vmul.f32 %v1369, %v134
    %v1372 = vadd.f32 %v1370, 1e-06
    %v1373 = vadd.f32 %v1371, 1e-06
    %v1374 = vrsqrt.pop %v1372
    %v1375 = vrsqrt.pop %v1373
    %v1376 = vmul.f32 %v1360, %v1374
    %v1377 = vmul.f32 %v1361, %v1375
    %v1378 = vld [vmem:[%s14] sm:$0x1]
    %v1380 = vlaneseq
    %v1381 = vshrl.u32 %v1380, 7
    %v1382 = vsub.s32 0, %v1381
    %v1383 = vrot.slane %v1378, %v1382
    %v1385 = vmul.f32 %v1376, %v1383
    %v1386 = vmul.f32 %v1377, %v1383
    %v1387 = vld [vmem:[%s1] sm:$0xff]
    %v1388 = vld [vmem:[%s1 + $0x8] sm:$0xff]
    %v1389 = vmul.f32 %v1387, %v1387
    %v1390 = vmul.f32 %v1388, %v1388
    %v1391 = vsel %vm127, %v1389, 0.0
    %1392 = vadd.xlane.f32.xlu0 %v1391
    %v1393 = vpop.xlane.xlu0 %1392
    %v1394 = vsel %vm127, %v1390, 0.0
    %1395 = vadd.xlane.f32.xlu0 %v1394
    %v1396 = vpop.xlane.xlu0 %1395
    %v1397 = vmul.f32 %v1393, %v134
    %v1398 = vmul.f32 %v1396, %v134
    %v1399 = vadd.f32 %v1397, 1e-06
    %v1400 = vadd.f32 %v1398, 1e-06
    %v1401 = vrsqrt.pop %v1399
    %v1402 = vrsqrt.pop %v1400
    %v1403 = vmul.f32 %v1387, %v1401
    %v1404 = vmul.f32 %v1388, %v1402
    %v1405 = vld [vmem:[%s15] sm:$0x1]
    %v1407 = vlaneseq
    %v1408 = vshrl.u32 %v1407, 7
    %v1409 = vsub.s32 0, %v1408
    %v1410 = vrot.slane %v1405, %v1409
    %v1412 = vmul.f32 %v1403, %v1410
    %v1413 = vmul.f32 %v1404, %v1410
    %v1414 = vld [vmem:[%s16] sm:$0xff]
    %v1415 = vld [vmem:[%s16 + $0x8] sm:$0xff]
    %v1416 = vld [vmem:[%s16 + $0x10] sm:$0xff]
    %v1417 = vld [vmem:[%s16 + $0x18] sm:$0xff]
    %v1419 = vsel %vm127, %v1412, 0
    %v1422 = vsel %vm127, %v1413, 0
    %1424 = vmatprep.subr.mxu0 0.0
    %1425 = vmatpush1.msra.mxu0 %v1414
    %1426 = vmatprep.subr.mxu0 0.0
    %1427 = vmatpush1.msra.mxu0 %v1415
    %1428 = vmatprep.subr.mxu0 0.0
    %1429 = vmatpush1.msra.mxu0 %v1416
    %1430 = vmatprep.subr.mxu0 0.0
    %1431 = vmatpush1.msra.mxu0 %v1417
    %1432 = vmatprep.subr.mxu0 0.0
    %1433 = vmatpush1.msra.mxu0 0.0
    %1434 = vmatprep.subr.mxu0 0.0
    %1435 = vmatpush1.msra.mxu0 0.0
    %1436 = vmatprep.subr.mxu0 0.0
    %1437 = vmatpush1.msra.mxu0 0.0
    %1438 = vmatprep.subr.mxu0 0.0
    %1439 = vmatpush1.msra.mxu0 0.0
    %1440 = vmatprep.subr.mxu0 0.0
    %1441 = vmatpush1.msra.mxu0 0.0
    %1442 = vmatprep.subr.mxu0 0.0
    %1443 = vmatpush1.msra.mxu0 0.0
    %1444 = vmatprep.subr.mxu0 0.0
    %1445 = vmatpush1.msra.mxu0 0.0
    %1446 = vmatprep.subr.mxu0 0.0
    %1447 = vmatpush1.msra.mxu0 0.0
    %1448 = vmatprep.subr.mxu0 0.0
    %1449 = vmatpush1.msra.mxu0 0.0
    %1450 = vmatprep.subr.mxu0 0.0
    %1451 = vmatpush1.msra.mxu0 0.0
    %1452 = vmatprep.subr.mxu0 0.0
    %1453 = vmatpush1.msra.mxu0 0.0
    %1454 = vmatprep.subr.mxu0 0.0
    %1455 = vmatpush1.msra.mxu0 0.0
    %1456 = vmatprep.subr.mxu0 0.0
    %1457 = vmatpush1.msra.mxu0 0.0
    %1458 = vmatprep.subr.mxu0 0.0
    %1459 = vmatpush1.msra.mxu0 0.0
    %1460 = vmatprep.subr.mxu0 0.0
    %1461 = vmatpush1.msra.mxu0 0.0
    %1462 = vmatprep.subr.mxu0 0.0
    %1463 = vmatpush1.msra.mxu0 0.0
    %1464 = vmatprep.subr.mxu0 0.0
    %1465 = vmatpush1.msra.mxu0 0.0
    %1466 = vmatprep.subr.mxu0 0.0
    %1467 = vmatpush1.msra.mxu0 0.0
    %1468 = vmatprep.subr.mxu0 0.0
    %1469 = vmatpush1.msra.mxu0 0.0
    %1470 = vmatprep.subr.mxu0 0.0
    %1471 = vmatpush1.msra.mxu0 0.0
    %1472 = vmatprep.subr.mxu0 0.0
    %1473 = vmatpush1.msra.mxu0 0.0
    %1474 = vmatprep.subr.mxu0 0.0
    %1475 = vmatpush1.msra.mxu0 0.0
    %1476 = vmatprep.subr.mxu0 0.0
    %1477 = vmatpush1.msra.mxu0 0.0
    %1478 = vmatprep.subr.mxu0 0.0
    %1479 = vmatpush1.msra.mxu0 0.0
    %1480 = vmatprep.subr.mxu0 0.0
    %1481 = vmatpush1.msra.mxu0 0.0
    %1482 = vmatprep.subr.mxu0 0.0
    %1483 = vmatpush1.msra.mxu0 0.0
    %1484 = vmatprep.subr.mxu0 0.0
    %1485 = vmatpush1.msra.mxu0 0.0
    %1486 = vmatprep.subr.mxu0 0.0
    %1487 = vmatpush1.msra.mxu0 0.0
    %1488 = vmatprep.mubr.f32.mxu0 0.0
    %1489 = vmatmul.mubr.f32.gmra.mrb[0].mxu0 %v1419
    %v1490 = vpop.f32.mrb[0].mxu0
    %v1491 = vadd.f32 0.0, %v1490
    %v1492 = vpop.f32.mrb[0].mxu0
    %1493 = vmatprep.mubr.f32.mxu0 0.0
    %1494 = vmatmul.mubr.f32.gmra.mrb[0].mxu0 %v1422
    %v1495 = vpop.f32.mrb[0].mxu0
    %v1496 = vadd.f32 0.0, %v1495
    %v1497 = vpop.f32.mrb[0].mxu0
    %1498 = vdwg.mxu0
    %v1499 = vld [vmem:[%s17] sm:$0xff]
    %v1500 = vld [vmem:[%s17 + $0x8] sm:$0xff]
    %v1501 = vld [vmem:[%s17 + $0x10] sm:$0xff]
    %v1502 = vld [vmem:[%s17 + $0x18] sm:$0xff]
    %1503 = vmatprep.subr.mxu0 0.0
    %1504 = vmatpush1.msra.mxu0 %v1499
    %1505 = vmatprep.subr.mxu0 0.0
    %1506 = vmatpush1.msra.mxu0 %v1500
    %1507 = vmatprep.subr.mxu0 0.0
    %1508 = vmatpush1.msra.mxu0 %v1501
    %1509 = vmatprep.subr.mxu0 0.0
    %1510 = vmatpush1.msra.mxu0 %v1502
    %1511 = vmatprep.subr.mxu0 0.0
    %1512 = vmatpush1.msra.mxu0 0.0
    %1513 = vmatprep.subr.mxu0 0.0
    %1514 = vmatpush1.msra.mxu0 0.0
    %1515 = vmatprep.subr.mxu0 0.0
    %1516 = vmatpush1.msra.mxu0 0.0
    %1517 = vmatprep.subr.mxu0 0.0
    %1518 = vmatpush1.msra.mxu0 0.0
    %1519 = vmatprep.subr.mxu0 0.0
    %1520 = vmatpush1.msra.mxu0 0.0
    %1521 = vmatprep.subr.mxu0 0.0
    %1522 = vmatpush1.msra.mxu0 0.0
    %1523 = vmatprep.subr.mxu0 0.0
    %1524 = vmatpush1.msra.mxu0 0.0
    %1525 = vmatprep.subr.mxu0 0.0
    %1526 = vmatpush1.msra.mxu0 0.0
    %1527 = vmatprep.subr.mxu0 0.0
    %1528 = vmatpush1.msra.mxu0 0.0
    %1529 = vmatprep.subr.mxu0 0.0
    %1530 = vmatpush1.msra.mxu0 0.0
    %1531 = vmatprep.subr.mxu0 0.0
    %1532 = vmatpush1.msra.mxu0 0.0
    %1533 = vmatprep.subr.mxu0 0.0
    %1534 = vmatpush1.msra.mxu0 0.0
    %1535 = vmatprep.subr.mxu0 0.0
    %1536 = vmatpush1.msra.mxu0 0.0
    %1537 = vmatprep.subr.mxu0 0.0
    %1538 = vmatpush1.msra.mxu0 0.0
    %1539 = vmatprep.subr.mxu0 0.0
    %1540 = vmatpush1.msra.mxu0 0.0
    %1541 = vmatprep.subr.mxu0 0.0
    %1542 = vmatpush1.msra.mxu0 0.0
    %1543 = vmatprep.subr.mxu0 0.0
    %1544 = vmatpush1.msra.mxu0 0.0
    %1545 = vmatprep.subr.mxu0 0.0
    %1546 = vmatpush1.msra.mxu0 0.0
    %1547 = vmatprep.subr.mxu0 0.0
    %1548 = vmatpush1.msra.mxu0 0.0
    %1549 = vmatprep.subr.mxu0 0.0
    %1550 = vmatpush1.msra.mxu0 0.0
    %1551 = vmatprep.subr.mxu0 0.0
    %1552 = vmatpush1.msra.mxu0 0.0
    %1553 = vmatprep.subr.mxu0 0.0
    %1554 = vmatpush1.msra.mxu0 0.0
    %1555 = vmatprep.subr.mxu0 0.0
    %1556 = vmatpush1.msra.mxu0 0.0
    %1557 = vmatprep.subr.mxu0 0.0
    %1558 = vmatpush1.msra.mxu0 0.0
    %1559 = vmatprep.subr.mxu0 0.0
    %1560 = vmatpush1.msra.mxu0 0.0
    %1561 = vmatprep.subr.mxu0 0.0
    %1562 = vmatpush1.msra.mxu0 0.0
    %1563 = vmatprep.subr.mxu0 0.0
    %1564 = vmatpush1.msra.mxu0 0.0
    %1565 = vmatprep.subr.mxu0 0.0
    %1566 = vmatpush1.msra.mxu0 0.0
    %1567 = vmatprep.mubr.f32.mxu0 0.0
    %1568 = vmatmul.mubr.f32.gmra.mrb[0].mxu0 %v1419
    %v1569 = vpop.f32.mrb[0].mxu0
    %v1570 = vadd.f32 0.0, %v1569
    %v1571 = vpop.f32.mrb[0].mxu0
    %1572 = vmatprep.mubr.f32.mxu0 0.0
    %1573 = vmatmul.mubr.f32.gmra.mrb[0].mxu0 %v1422
    %v1574 = vpop.f32.mrb[0].mxu0
    %v1575 = vadd.f32 0.0, %v1574
    %v1576 = vpop.f32.mrb[0].mxu0
    %1577 = vdwg.mxu0
    %v1578 = vld [vmem:[%s18] sm:$0xff]
    %v1579 = vld [vmem:[%s18 + $0x8] sm:$0xff]
    %v1580 = vld [vmem:[%s18 + $0x10] sm:$0xff]
    %v1581 = vld [vmem:[%s18 + $0x18] sm:$0xff]
    %v1583 = vsel %vm320, %v1491, 0
    %v1586 = vsel %vm320, %v1570, 0
    %1588 = vmatprep.subr.mxu0 0.0
    %1589 = vmatpush1.xpose.msra.mxu0 %v1586
    %1590 = vmatprep.subr.mxu0 0.0
    %1591 = vmatpush1.xpose.msra.mxu0 0.0
    %1592 = vmatprep.subr.mxu0 0.0
    %1593 = vmatpush1.xpose.msra.mxu0 0.0
    %1594 = vmatprep.subr.mxu0 0.0
    %1595 = vmatpush1.xpose.msra.mxu0 0.0
    %1596 = vmatprep.subr.mxu0 0.0
    %1597 = vmatpush1.xpose.msra.mxu0 0.0
    %1598 = vmatprep.subr.mxu0 0.0
    %1599 = vmatpush1.xpose.msra.mxu0 0.0
    %1600 = vmatprep.subr.mxu0 0.0
    %1601 = vmatpush1.xpose.msra.mxu0 0.0
    %1602 = vmatprep.subr.mxu0 0.0
    %1603 = vmatpush1.xpose.msra.mxu0 0.0
    %1604 = vmatprep.subr.mxu0 0.0
    %1605 = vmatpush1.xpose.msra.mxu0 0.0
    %1606 = vmatprep.subr.mxu0 0.0
    %1607 = vmatpush1.xpose.msra.mxu0 0.0
    %1608 = vmatprep.subr.mxu0 0.0
    %1609 = vmatpush1.xpose.msra.mxu0 0.0
    %1610 = vmatprep.subr.mxu0 0.0
    %1611 = vmatpush1.xpose.msra.mxu0 0.0
    %1612 = vmatprep.subr.mxu0 0.0
    %1613 = vmatpush1.xpose.msra.mxu0 0.0
    %1614 = vmatprep.subr.mxu0 0.0
    %1615 = vmatpush1.xpose.msra.mxu0 0.0
    %1616 = vmatprep.subr.mxu0 0.0
    %1617 = vmatpush1.xpose.msra.mxu0 0.0
    %1618 = vmatprep.subr.mxu0 0.0
    %1619 = vmatpush1.xpose.msra.mxu0 0.0
    %1620 = vmatprep.subr.mxu0 0.0
    %1621 = vmatpush1.xpose.msra.mxu0 0.0
    %1622 = vmatprep.subr.mxu0 0.0
    %1623 = vmatpush1.xpose.msra.mxu0 0.0
    %1624 = vmatprep.subr.mxu0 0.0
    %1625 = vmatpush1.xpose.msra.mxu0 0.0
    %1626 = vmatprep.subr.mxu0 0.0
    %1627 = vmatpush1.xpose.msra.mxu0 0.0
    %1628 = vmatprep.subr.mxu0 0.0
    %1629 = vmatpush1.xpose.msra.mxu0 0.0
    %1630 = vmatprep.subr.mxu0 0.0
    %1631 = vmatpush1.xpose.msra.mxu0 0.0
    %1632 = vmatprep.subr.mxu0 0.0
    %1633 = vmatpush1.xpose.msra.mxu0 0.0
    %1634 = vmatprep.subr.mxu0 0.0
    %1635 = vmatpush1.xpose.msra.mxu0 0.0
    %1636 = vmatprep.subr.mxu0 0.0
    %1637 = vmatpush1.xpose.msra.mxu0 0.0
    %1638 = vmatprep.subr.mxu0 0.0
    %1639 = vmatpush1.xpose.msra.mxu0 0.0
    %1640 = vmatprep.subr.mxu0 0.0
    %1641 = vmatpush1.xpose.msra.mxu0 0.0
    %1642 = vmatprep.subr.mxu0 0.0
    %1643 = vmatpush1.xpose.msra.mxu0 0.0
    %1644 = vmatprep.subr.mxu0 0.0
    %1645 = vmatpush1.xpose.msra.mxu0 0.0
    %1646 = vmatprep.subr.mxu0 0.0
    %1647 = vmatpush1.xpose.msra.mxu0 0.0
    %1648 = vmatprep.subr.mxu0 0.0
    %1649 = vmatpush1.xpose.msra.mxu0 0.0
    %1650 = vmatprep.subr.mxu0 0.0
    %1651 = vmatpush1.xpose.msra.mxu0 0.0
    %1652 = vmatprep.mubr.f32.mxu0 0.0
    %1653 = vmatmul.mubr.f32.gmra.mrb[0].mxu0 %v1583
    %v1654 = vpop.f32.mrb[0].mxu0
    %v1655 = vadd.f32 %v121, %v1654
    %v1656 = vpop.f32.mrb[0].mxu0
    %1657 = vdwg.mxu0
    %v1659 = vsel %vm320, %v1496, 0
    %v1662 = vsel %vm320, %v1575, 0
    %1664 = vmatprep.subr.mxu0 0.0
    %1665 = vmatpush1.xpose.msra.mxu0 %v1662
    %1666 = vmatprep.subr.mxu0 0.0
    %1667 = vmatpush1.xpose.msra.mxu0 0.0
    %1668 = vmatprep.subr.mxu0 0.0
    %1669 = vmatpush1.xpose.msra.mxu0 0.0
    %1670 = vmatprep.subr.mxu0 0.0
    %1671 = vmatpush1.xpose.msra.mxu0 0.0
    %1672 = vmatprep.subr.mxu0 0.0
    %1673 = vmatpush1.xpose.msra.mxu0 0.0
    %1674 = vmatprep.subr.mxu0 0.0
    %1675 = vmatpush1.xpose.msra.mxu0 0.0
    %1676 = vmatprep.subr.mxu0 0.0
    %1677 = vmatpush1.xpose.msra.mxu0 0.0
    %1678 = vmatprep.subr.mxu0 0.0
    %1679 = vmatpush1.xpose.msra.mxu0 0.0
    %1680 = vmatprep.subr.mxu0 0.0
    %1681 = vmatpush1.xpose.msra.mxu0 0.0
    %1682 = vmatprep.subr.mxu0 0.0
    %1683 = vmatpush1.xpose.msra.mxu0 0.0
    %1684 = vmatprep.subr.mxu0 0.0
    %1685 = vmatpush1.xpose.msra.mxu0 0.0
    %1686 = vmatprep.subr.mxu0 0.0
    %1687 = vmatpush1.xpose.msra.mxu0 0.0
    %1688 = vmatprep.subr.mxu0 0.0
    %1689 = vmatpush1.xpose.msra.mxu0 0.0
    %1690 = vmatprep.subr.mxu0 0.0
    %1691 = vmatpush1.xpose.msra.mxu0 0.0
    %1692 = vmatprep.subr.mxu0 0.0
    %1693 = vmatpush1.xpose.msra.mxu0 0.0
    %1694 = vmatprep.subr.mxu0 0.0
    %1695 = vmatpush1.xpose.msra.mxu0 0.0
    %1696 = vmatprep.subr.mxu0 0.0
    %1697 = vmatpush1.xpose.msra.mxu0 0.0
    %1698 = vmatprep.subr.mxu0 0.0
    %1699 = vmatpush1.xpose.msra.mxu0 0.0
    %1700 = vmatprep.subr.mxu0 0.0
    %1701 = vmatpush1.xpose.msra.mxu0 0.0
    %1702 = vmatprep.subr.mxu0 0.0
    %1703 = vmatpush1.xpose.msra.mxu0 0.0
    %1704 = vmatprep.subr.mxu0 0.0
    %1705 = vmatpush1.xpose.msra.mxu0 0.0
    %1706 = vmatprep.subr.mxu0 0.0
    %1707 = vmatpush1.xpose.msra.mxu0 0.0
    %1708 = vmatprep.subr.mxu0 0.0
    %1709 = vmatpush1.xpose.msra.mxu0 0.0
    %1710 = vmatprep.subr.mxu0 0.0
    %1711 = vmatpush1.xpose.msra.mxu0 0.0
    %1712 = vmatprep.subr.mxu0 0.0
    %1713 = vmatpush1.xpose.msra.mxu0 0.0
    %1714 = vmatprep.subr.mxu0 0.0
    %1715 = vmatpush1.xpose.msra.mxu0 0.0
    %1716 = vmatprep.subr.mxu0 0.0
    %1717 = vmatpush1.xpose.msra.mxu0 0.0
    %1718 = vmatprep.subr.mxu0 0.0
    %1719 = vmatpush1.xpose.msra.mxu0 0.0
    %1720 = vmatprep.subr.mxu0 0.0
    %1721 = vmatpush1.xpose.msra.mxu0 0.0
    %1722 = vmatprep.subr.mxu0 0.0
    %1723 = vmatpush1.xpose.msra.mxu0 0.0
    %1724 = vmatprep.subr.mxu0 0.0
    %1725 = vmatpush1.xpose.msra.mxu0 0.0
    %1726 = vmatprep.subr.mxu0 0.0
    %1727 = vmatpush1.xpose.msra.mxu0 0.0
    %1728 = vmatprep.mubr.f32.mxu0 0.0
    %1729 = vmatmul.mubr.f32.gmra.mrb[0].mxu0 %v1659
    %v1730 = vpop.f32.mrb[0].mxu0
    %v1731 = vadd.f32 %v121, %v1730
    %v1732 = vpop.f32.mrb[0].mxu0
    %1733 = vdwg.mxu0
    %v1734 = vsel %vm487, %v1655, -inf
    %1735 = vmax.xlane.f32.xlu0 %v1734
    %v1736 = vpop.xlane.xlu0 %1735
    %v1737 = vsel %vm487, %v1731, -inf
    %1738 = vmax.xlane.f32.xlu0 %v1737
    %v1739 = vpop.xlane.xlu0 %1738
    %v1740 = vsub.f32 %v1655, %v1736
    %v1741 = vsub.f32 %v1731, %v1739
    %v1742 = vmul.f32 %v1740, 1.442695
    %v1743 = vpow.pop %v1742
    %v1744 = vmul.f32 %v1741, 1.442695
    %v1745 = vpow.pop %v1744
    %v1746 = vsel %vm487, %v1743, 0.0
    %1747 = vadd.xlane.f32.xlu0 %v1746
    %v1748 = vpop.xlane.xlu0 %1747
    %v1749 = vsel %vm487, %v1745, 0.0
    %1750 = vadd.xlane.f32.xlu0 %v1749
    %v1751 = vpop.xlane.xlu0 %1750
    %v1752 = vrcp.pop %v1748
    %v1753 = vrcp.pop %v1751
    %v1754 = vmul.f32 %v1743, %v1752
    %v1755 = vmul.f32 %v1745, %v1753
    %1756 = vrot.lane.b32.xlu0 %v1570, 96
    %v1757 = vpop.permute.xlu0 %1756
    %v1760 = vsel %vm487, %v1754, 0
    %1762 = vmatprep.subr.mxu0 0.0
    %1763 = vmatpush1.msra.mxu0 %v1757
    %1764 = vmatprep.subr.mxu0 0.0
    %1765 = vmatpush1.msra.mxu0 0.0
    %1766 = vmatprep.subr.mxu0 0.0
    %1767 = vmatpush1.msra.mxu0 0.0
    %1768 = vmatprep.subr.mxu0 0.0
    %1769 = vmatpush1.msra.mxu0 0.0
    %1770 = vmatprep.subr.mxu0 0.0
    %1771 = vmatpush1.msra.mxu0 0.0
    %1772 = vmatprep.subr.mxu0 0.0
    %1773 = vmatpush1.msra.mxu0 0.0
    %1774 = vmatprep.subr.mxu0 0.0
    %1775 = vmatpush1.msra.mxu0 0.0
    %1776 = vmatprep.subr.mxu0 0.0
    %1777 = vmatpush1.msra.mxu0 0.0
    %1778 = vmatprep.subr.mxu0 0.0
    %1779 = vmatpush1.msra.mxu0 0.0
    %1780 = vmatprep.subr.mxu0 0.0
    %1781 = vmatpush1.msra.mxu0 0.0
    %1782 = vmatprep.subr.mxu0 0.0
    %1783 = vmatpush1.msra.mxu0 0.0
    %1784 = vmatprep.subr.mxu0 0.0
    %1785 = vmatpush1.msra.mxu0 0.0
    %1786 = vmatprep.subr.mxu0 0.0
    %1787 = vmatpush1.msra.mxu0 0.0
    %1788 = vmatprep.subr.mxu0 0.0
    %1789 = vmatpush1.msra.mxu0 0.0
    %1790 = vmatprep.subr.mxu0 0.0
    %1791 = vmatpush1.msra.mxu0 0.0
    %1792 = vmatprep.subr.mxu0 0.0
    %1793 = vmatpush1.msra.mxu0 0.0
    %1794 = vmatprep.subr.mxu0 0.0
    %1795 = vmatpush1.msra.mxu0 0.0
    %1796 = vmatprep.subr.mxu0 0.0
    %1797 = vmatpush1.msra.mxu0 0.0
    %1798 = vmatprep.subr.mxu0 0.0
    %1799 = vmatpush1.msra.mxu0 0.0
    %1800 = vmatprep.subr.mxu0 0.0
    %1801 = vmatpush1.msra.mxu0 0.0
    %1802 = vmatprep.subr.mxu0 0.0
    %1803 = vmatpush1.msra.mxu0 0.0
    %1804 = vmatprep.subr.mxu0 0.0
    %1805 = vmatpush1.msra.mxu0 0.0
    %1806 = vmatprep.subr.mxu0 0.0
    %1807 = vmatpush1.msra.mxu0 0.0
    %1808 = vmatprep.subr.mxu0 0.0
    %1809 = vmatpush1.msra.mxu0 0.0
    %1810 = vmatprep.subr.mxu0 0.0
    %1811 = vmatpush1.msra.mxu0 0.0
    %1812 = vmatprep.subr.mxu0 0.0
    %1813 = vmatpush1.msra.mxu0 0.0
    %1814 = vmatprep.subr.mxu0 0.0
    %1815 = vmatpush1.msra.mxu0 0.0
    %1816 = vmatprep.subr.mxu0 0.0
    %1817 = vmatpush1.msra.mxu0 0.0
    %1818 = vmatprep.subr.mxu0 0.0
    %1819 = vmatpush1.msra.mxu0 0.0
    %1820 = vmatprep.subr.mxu0 0.0
    %1821 = vmatpush1.msra.mxu0 0.0
    %1822 = vmatprep.subr.mxu0 0.0
    %1823 = vmatpush1.msra.mxu0 0.0
    %1824 = vmatprep.subr.mxu0 0.0
    %1825 = vmatpush1.msra.mxu0 0.0
    %1826 = vmatprep.mubr.f32.mxu0 0.0
    %1827 = vmatmul.mubr.f32.gmra.mrb[0].mxu0 %v1760
    %v1828 = vpop.f32.mrb[0].mxu0
    %v1829 = vadd.f32 0.0, %v1828
    %v1830 = vpop.f32.mrb[0].mxu0
    %1831 = vdwg.mxu0
    %1832 = vrot.lane.b32.xlu0 %v1575, 96
    %v1833 = vpop.permute.xlu0 %1832
    %v1836 = vsel %vm487, %v1755, 0
    %1838 = vmatprep.subr.mxu0 0.0
    %1839 = vmatpush1.msra.mxu0 %v1833
    %1840 = vmatprep.subr.mxu0 0.0
    %1841 = vmatpush1.msra.mxu0 0.0
    %1842 = vmatprep.subr.mxu0 0.0
    %1843 = vmatpush1.msra.mxu0 0.0
    %1844 = vmatprep.subr.mxu0 0.0
    %1845 = vmatpush1.msra.mxu0 0.0
    %1846 = vmatprep.subr.mxu0 0.0
    %1847 = vmatpush1.msra.mxu0 0.0
    %1848 = vmatprep.subr.mxu0 0.0
    %1849 = vmatpush1.msra.mxu0 0.0
    %1850 = vmatprep.subr.mxu0 0.0
    %1851 = vmatpush1.msra.mxu0 0.0
    %1852 = vmatprep.subr.mxu0 0.0
    %1853 = vmatpush1.msra.mxu0 0.0
    %1854 = vmatprep.subr.mxu0 0.0
    %1855 = vmatpush1.msra.mxu0 0.0
    %1856 = vmatprep.subr.mxu0 0.0
    %1857 = vmatpush1.msra.mxu0 0.0
    %1858 = vmatprep.subr.mxu0 0.0
    %1859 = vmatpush1.msra.mxu0 0.0
    %1860 = vmatprep.subr.mxu0 0.0
    %1861 = vmatpush1.msra.mxu0 0.0
    %1862 = vmatprep.subr.mxu0 0.0
    %1863 = vmatpush1.msra.mxu0 0.0
    %1864 = vmatprep.subr.mxu0 0.0
    %1865 = vmatpush1.msra.mxu0 0.0
    %1866 = vmatprep.subr.mxu0 0.0
    %1867 = vmatpush1.msra.mxu0 0.0
    %1868 = vmatprep.subr.mxu0 0.0
    %1869 = vmatpush1.msra.mxu0 0.0
    %1870 = vmatprep.subr.mxu0 0.0
    %1871 = vmatpush1.msra.mxu0 0.0
    %1872 = vmatprep.subr.mxu0 0.0
    %1873 = vmatpush1.msra.mxu0 0.0
    %1874 = vmatprep.subr.mxu0 0.0
    %1875 = vmatpush1.msra.mxu0 0.0
    %1876 = vmatprep.subr.mxu0 0.0
    %1877 = vmatpush1.msra.mxu0 0.0
    %1878 = vmatprep.subr.mxu0 0.0
    %1879 = vmatpush1.msra.mxu0 0.0
    %1880 = vmatprep.subr.mxu0 0.0
    %1881 = vmatpush1.msra.mxu0 0.0
    %1882 = vmatprep.subr.mxu0 0.0
    %1883 = vmatpush1.msra.mxu0 0.0
    %1884 = vmatprep.subr.mxu0 0.0
    %1885 = vmatpush1.msra.mxu0 0.0
    %1886 = vmatprep.subr.mxu0 0.0
    %1887 = vmatpush1.msra.mxu0 0.0
    %1888 = vmatprep.subr.mxu0 0.0
    %1889 = vmatpush1.msra.mxu0 0.0
    %1890 = vmatprep.subr.mxu0 0.0
    %1891 = vmatpush1.msra.mxu0 0.0
    %1892 = vmatprep.subr.mxu0 0.0
    %1893 = vmatpush1.msra.mxu0 0.0
    %1894 = vmatprep.subr.mxu0 0.0
    %1895 = vmatpush1.msra.mxu0 0.0
    %1896 = vmatprep.subr.mxu0 0.0
    %1897 = vmatpush1.msra.mxu0 0.0
    %1898 = vmatprep.subr.mxu0 0.0
    %1899 = vmatpush1.msra.mxu0 0.0
    %1900 = vmatprep.subr.mxu0 0.0
    %1901 = vmatpush1.msra.mxu0 0.0
    %1902 = vmatprep.mubr.f32.mxu0 0.0
    %1903 = vmatmul.mubr.f32.gmra.mrb[0].mxu0 %v1836
    %v1904 = vpop.f32.mrb[0].mxu0
    %v1905 = vadd.f32 0.0, %v1904
    %v1906 = vpop.f32.mrb[0].mxu0
    %1907 = vdwg.mxu0
    %1908 = vrot.lane.b32.xlu0 %v1491, 112
    %v1909 = vpop.permute.xlu0 %1908
    %1910 = vrot.lane.b32.xlu0 %v1570, 112
    %v1911 = vpop.permute.xlu0 %1910
    %v1912 = vsel %vm320, %v1909, 0
    %v1914 = vsel %vm320, %v1911, 0
    %1916 = vmatprep.subr.mxu0 0.0
    %1917 = vmatpush1.xpose.msra.mxu0 %v1914
    %1918 = vmatprep.subr.mxu0 0.0
    %1919 = vmatpush1.xpose.msra.mxu0 0.0
    %1920 = vmatprep.subr.mxu0 0.0
    %1921 = vmatpush1.xpose.msra.mxu0 0.0
    %1922 = vmatprep.subr.mxu0 0.0
    %1923 = vmatpush1.xpose.msra.mxu0 0.0
    %1924 = vmatprep.subr.mxu0 0.0
    %1925 = vmatpush1.xpose.msra.mxu0 0.0
    %1926 = vmatprep.subr.mxu0 0.0
    %1927 = vmatpush1.xpose.msra.mxu0 0.0
    %1928 = vmatprep.subr.mxu0 0.0
    %1929 = vmatpush1.xpose.msra.mxu0 0.0
    %1930 = vmatprep.subr.mxu0 0.0
    %1931 = vmatpush1.xpose.msra.mxu0 0.0
    %1932 = vmatprep.subr.mxu0 0.0
    %1933 = vmatpush1.xpose.msra.mxu0 0.0
    %1934 = vmatprep.subr.mxu0 0.0
    %1935 = vmatpush1.xpose.msra.mxu0 0.0
    %1936 = vmatprep.subr.mxu0 0.0
    %1937 = vmatpush1.xpose.msra.mxu0 0.0
    %1938 = vmatprep.subr.mxu0 0.0
    %1939 = vmatpush1.xpose.msra.mxu0 0.0
    %1940 = vmatprep.subr.mxu0 0.0
    %1941 = vmatpush1.xpose.msra.mxu0 0.0
    %1942 = vmatprep.subr.mxu0 0.0
    %1943 = vmatpush1.xpose.msra.mxu0 0.0
    %1944 = vmatprep.subr.mxu0 0.0
    %1945 = vmatpush1.xpose.msra.mxu0 0.0
    %1946 = vmatprep.subr.mxu0 0.0
    %1947 = vmatpush1.xpose.msra.mxu0 0.0
    %1948 = vmatprep.subr.mxu0 0.0
    %1949 = vmatpush1.xpose.msra.mxu0 0.0
    %1950 = vmatprep.subr.mxu0 0.0
    %1951 = vmatpush1.xpose.msra.mxu0 0.0
    %1952 = vmatprep.subr.mxu0 0.0
    %1953 = vmatpush1.xpose.msra.mxu0 0.0
    %1954 = vmatprep.subr.mxu0 0.0
    %1955 = vmatpush1.xpose.msra.mxu0 0.0
    %1956 = vmatprep.subr.mxu0 0.0
    %1957 = vmatpush1.xpose.msra.mxu0 0.0
    %1958 = vmatprep.subr.mxu0 0.0
    %1959 = vmatpush1.xpose.msra.mxu0 0.0
    %1960 = vmatprep.subr.mxu0 0.0
    %1961 = vmatpush1.xpose.msra.mxu0 0.0
    %1962 = vmatprep.subr.mxu0 0.0
    %1963 = vmatpush1.xpose.msra.mxu0 0.0
    %1964 = vmatprep.subr.mxu0 0.0
    %1965 = vmatpush1.xpose.msra.mxu0 0.0
    %1966 = vmatprep.subr.mxu0 0.0
    %1967 = vmatpush1.xpose.msra.mxu0 0.0
    %1968 = vmatprep.subr.mxu0 0.0
    %1969 = vmatpush1.xpose.msra.mxu0 0.0
    %1970 = vmatprep.subr.mxu0 0.0
    %1971 = vmatpush1.xpose.msra.mxu0 0.0
    %1972 = vmatprep.subr.mxu0 0.0
    %1973 = vmatpush1.xpose.msra.mxu0 0.0
    %1974 = vmatprep.subr.mxu0 0.0
    %1975 = vmatpush1.xpose.msra.mxu0 0.0
    %1976 = vmatprep.subr.mxu0 0.0
    %1977 = vmatpush1.xpose.msra.mxu0 0.0
    %1978 = vmatprep.subr.mxu0 0.0
    %1979 = vmatpush1.xpose.msra.mxu0 0.0
    %1980 = vmatprep.mubr.f32.mxu0 0.0
    %1981 = vmatmul.mubr.f32.gmra.mrb[0].mxu0 %v1912
    %v1982 = vpop.f32.mrb[0].mxu0
    %v1983 = vadd.f32 %v122, %v1982
    %v1984 = vpop.f32.mrb[0].mxu0
    %1985 = vdwg.mxu0
    %1986 = vrot.lane.b32.xlu0 %v1496, 112
    %v1987 = vpop.permute.xlu0 %1986
    %1988 = vrot.lane.b32.xlu0 %v1575, 112
    %v1989 = vpop.permute.xlu0 %1988
    %v1990 = vsel %vm320, %v1987, 0
    %v1992 = vsel %vm320, %v1989, 0
    %1994 = vmatprep.subr.mxu0 0.0
    %1995 = vmatpush1.xpose.msra.mxu0 %v1992
    %1996 = vmatprep.subr.mxu0 0.0
    %1997 = vmatpush1.xpose.msra.mxu0 0.0
    %1998 = vmatprep.subr.mxu0 0.0
    %1999 = vmatpush1.xpose.msra.mxu0 0.0
    %2000 = vmatprep.subr.mxu0 0.0
    %2001 = vmatpush1.xpose.msra.mxu0 0.0
    %2002 = vmatprep.subr.mxu0 0.0
    %2003 = vmatpush1.xpose.msra.mxu0 0.0
    %2004 = vmatprep.subr.mxu0 0.0
    %2005 = vmatpush1.xpose.msra.mxu0 0.0
    %2006 = vmatprep.subr.mxu0 0.0
    %2007 = vmatpush1.xpose.msra.mxu0 0.0
    %2008 = vmatprep.subr.mxu0 0.0
    %2009 = vmatpush1.xpose.msra.mxu0 0.0
    %2010 = vmatprep.subr.mxu0 0.0
    %2011 = vmatpush1.xpose.msra.mxu0 0.0
    %2012 = vmatprep.subr.mxu0 0.0
    %2013 = vmatpush1.xpose.msra.mxu0 0.0
    %2014 = vmatprep.subr.mxu0 0.0
    %2015 = vmatpush1.xpose.msra.mxu0 0.0
    %2016 = vmatprep.subr.mxu0 0.0
    %2017 = vmatpush1.xpose.msra.mxu0 0.0
    %2018 = vmatprep.subr.mxu0 0.0
    %2019 = vmatpush1.xpose.msra.mxu0 0.0
    %2020 = vmatprep.subr.mxu0 0.0
    %2021 = vmatpush1.xpose.msra.mxu0 0.0
    %2022 = vmatprep.subr.mxu0 0.0
    %2023 = vmatpush1.xpose.msra.mxu0 0.0
    %2024 = vmatprep.subr.mxu0 0.0
    %2025 = vmatpush1.xpose.msra.mxu0 0.0
    %2026 = vmatprep.subr.mxu0 0.0
    %2027 = vmatpush1.xpose.msra.mxu0 0.0
    %2028 = vmatprep.subr.mxu0 0.0
    %2029 = vmatpush1.xpose.msra.mxu0 0.0
    %2030 = vmatprep.subr.mxu0 0.0
    %2031 = vmatpush1.xpose.msra.mxu0 0.0
    %2032 = vmatprep.subr.mxu0 0.0
    %2033 = vmatpush1.xpose.msra.mxu0 0.0
    %2034 = vmatprep.subr.mxu0 0.0
    %2035 = vmatpush1.xpose.msra.mxu0 0.0
    %2036 = vmatprep.subr.mxu0 0.0
    %2037 = vmatpush1.xpose.msra.mxu0 0.0
    %2038 = vmatprep.subr.mxu0 0.0
    %2039 = vmatpush1.xpose.msra.mxu0 0.0
    %2040 = vmatprep.subr.mxu0 0.0
    %2041 = vmatpush1.xpose.msra.mxu0 0.0
    %2042 = vmatprep.subr.mxu0 0.0
    %2043 = vmatpush1.xpose.msra.mxu0 0.0
    %2044 = vmatprep.subr.mxu0 0.0
    %2045 = vmatpush1.xpose.msra.mxu0 0.0
    %2046 = vmatprep.subr.mxu0 0.0
    %2047 = vmatpush1.xpose.msra.mxu0 0.0
    %2048 = vmatprep.subr.mxu0 0.0
    %2049 = vmatpush1.xpose.msra.mxu0 0.0
    %2050 = vmatprep.subr.mxu0 0.0
    %2051 = vmatpush1.xpose.msra.mxu0 0.0
    %2052 = vmatprep.subr.mxu0 0.0
    %2053 = vmatpush1.xpose.msra.mxu0 0.0
    %2054 = vmatprep.subr.mxu0 0.0
    %2055 = vmatpush1.xpose.msra.mxu0 0.0
    %2056 = vmatprep.subr.mxu0 0.0
    %2057 = vmatpush1.xpose.msra.mxu0 0.0
    %2058 = vmatprep.mubr.f32.mxu0 0.0
    %2059 = vmatmul.mubr.f32.gmra.mrb[0].mxu0 %v1990
    %v2060 = vpop.f32.mrb[0].mxu0
    %v2061 = vadd.f32 %v122, %v2060
    %v2062 = vpop.f32.mrb[0].mxu0
    %2063 = vdwg.mxu0
    %v2064 = vsel %vm487, %v1983, -inf
    %2065 = vmax.xlane.f32.xlu0 %v2064
    %v2066 = vpop.xlane.xlu0 %2065
    %v2067 = vsel %vm487, %v2061, -inf
    %2068 = vmax.xlane.f32.xlu0 %v2067
    %v2069 = vpop.xlane.xlu0 %2068
    %v2070 = vsub.f32 %v1983, %v2066
    %v2071 = vsub.f32 %v2061, %v2069
    %v2072 = vmul.f32 %v2070, 1.442695
    %v2073 = vpow.pop %v2072
    %v2074 = vmul.f32 %v2071, 1.442695
    %v2075 = vpow.pop %v2074
    %v2076 = vsel %vm487, %v2073, 0.0
    %2077 = vadd.xlane.f32.xlu0 %v2076
    %v2078 = vpop.xlane.xlu0 %2077
    %v2079 = vsel %vm487, %v2075, 0.0
    %2080 = vadd.xlane.f32.xlu0 %v2079
    %v2081 = vpop.xlane.xlu0 %2080
    %v2082 = vrcp.pop %v2078
    %v2083 = vrcp.pop %v2081
    %v2084 = vmul.f32 %v2073, %v2082
    %v2085 = vmul.f32 %v2075, %v2083
    %2086 = vrot.lane.b32.xlu0 %v1570, 80
    %v2087 = vpop.permute.xlu0 %2086
    %v2090 = vsel %vm487, %v2084, 0
    %2092 = vmatprep.subr.mxu0 0.0
    %2093 = vmatpush1.msra.mxu0 %v2087
    %2094 = vmatprep.subr.mxu0 0.0
    %2095 = vmatpush1.msra.mxu0 0.0
    %2096 = vmatprep.subr.mxu0 0.0
    %2097 = vmatpush1.msra.mxu0 0.0
    %2098 = vmatprep.subr.mxu0 0.0
    %2099 = vmatpush1.msra.mxu0 0.0
    %2100 = vmatprep.subr.mxu0 0.0
    %2101 = vmatpush1.msra.mxu0 0.0
    %2102 = vmatprep.subr.mxu0 0.0
    %2103 = vmatpush1.msra.mxu0 0.0
    %2104 = vmatprep.subr.mxu0 0.0
    %2105 = vmatpush1.msra.mxu0 0.0
    %2106 = vmatprep.subr.mxu0 0.0
    %2107 = vmatpush1.msra.mxu0 0.0
    %2108 = vmatprep.subr.mxu0 0.0
    %2109 = vmatpush1.msra.mxu0 0.0
    %2110 = vmatprep.subr.mxu0 0.0
    %2111 = vmatpush1.msra.mxu0 0.0
    %2112 = vmatprep.subr.mxu0 0.0
    %2113 = vmatpush1.msra.mxu0 0.0
    %2114 = vmatprep.subr.mxu0 0.0
    %2115 = vmatpush1.msra.mxu0 0.0
    %2116 = vmatprep.subr.mxu0 0.0
    %2117 = vmatpush1.msra.mxu0 0.0
    %2118 = vmatprep.subr.mxu0 0.0
    %2119 = vmatpush1.msra.mxu0 0.0
    %2120 = vmatprep.subr.mxu0 0.0
    %2121 = vmatpush1.msra.mxu0 0.0
    %2122 = vmatprep.subr.mxu0 0.0
    %2123 = vmatpush1.msra.mxu0 0.0
    %2124 = vmatprep.subr.mxu0 0.0
    %2125 = vmatpush1.msra.mxu0 0.0
    %2126 = vmatprep.subr.mxu0 0.0
    %2127 = vmatpush1.msra.mxu0 0.0
    %2128 = vmatprep.subr.mxu0 0.0
    %2129 = vmatpush1.msra.mxu0 0.0
    %2130 = vmatprep.subr.mxu0 0.0
    %2131 = vmatpush1.msra.mxu0 0.0
    %2132 = vmatprep.subr.mxu0 0.0
    %2133 = vmatpush1.msra.mxu0 0.0
    %2134 = vmatprep.subr.mxu0 0.0
    %2135 = vmatpush1.msra.mxu0 0.0
    %2136 = vmatprep.subr.mxu0 0.0
    %2137 = vmatpush1.msra.mxu0 0.0
    %2138 = vmatprep.subr.mxu0 0.0
    %2139 = vmatpush1.msra.mxu0 0.0
    %2140 = vmatprep.subr.mxu0 0.0
    %2141 = vmatpush1.msra.mxu0 0.0
    %2142 = vmatprep.subr.mxu0 0.0
    %2143 = vmatpush1.msra.mxu0 0.0
    %2144 = vmatprep.subr.mxu0 0.0
    %2145 = vmatpush1.msra.mxu0 0.0
    %2146 = vmatprep.subr.mxu0 0.0
    %2147 = vmatpush1.msra.mxu0 0.0
    %2148 = vmatprep.subr.mxu0 0.0
    %2149 = vmatpush1.msra.mxu0 0.0
    %2150 = vmatprep.subr.mxu0 0.0
    %2151 = vmatpush1.msra.mxu0 0.0
    %2152 = vmatprep.subr.mxu0 0.0
    %2153 = vmatpush1.msra.mxu0 0.0
    %2154 = vmatprep.subr.mxu0 0.0
    %2155 = vmatpush1.msra.mxu0 0.0
    %2156 = vmatprep.mubr.f32.mxu0 0.0
    %2157 = vmatmul.mubr.f32.gmra.mrb[0].mxu0 %v2090
    %v2158 = vpop.f32.mrb[0].mxu0
    %v2159 = vadd.f32 0.0, %v2158
    %v2160 = vpop.f32.mrb[0].mxu0
    %2161 = vdwg.mxu0
    %2162 = vrot.lane.b32.xlu0 %v1575, 80
    %v2163 = vpop.permute.xlu0 %2162
    %v2166 = vsel %vm487, %v2085, 0
    %2168 = vmatprep.subr.mxu0 0.0
    %2169 = vmatpush1.msra.mxu0 %v2163
    %2170 = vmatprep.subr.mxu0 0.0
    %2171 = vmatpush1.msra.mxu0 0.0
    %2172 = vmatprep.subr.mxu0 0.0
    %2173 = vmatpush1.msra.mxu0 0.0
    %2174 = vmatprep.subr.mxu0 0.0
    %2175 = vmatpush1.msra.mxu0 0.0
    %2176 = vmatprep.subr.mxu0 0.0
    %2177 = vmatpush1.msra.mxu0 0.0
    %2178 = vmatprep.subr.mxu0 0.0
    %2179 = vmatpush1.msra.mxu0 0.0
    %2180 = vmatprep.subr.mxu0 0.0
    %2181 = vmatpush1.msra.mxu0 0.0
    %2182 = vmatprep.subr.mxu0 0.0
    %2183 = vmatpush1.msra.mxu0 0.0
    %2184 = vmatprep.subr.mxu0 0.0
    %2185 = vmatpush1.msra.mxu0 0.0
    %2186 = vmatprep.subr.mxu0 0.0
    %2187 = vmatpush1.msra.mxu0 0.0
    %2188 = vmatprep.subr.mxu0 0.0
    %2189 = vmatpush1.msra.mxu0 0.0
    %2190 = vmatprep.subr.mxu0 0.0
    %2191 = vmatpush1.msra.mxu0 0.0
    %2192 = vmatprep.subr.mxu0 0.0
    %2193 = vmatpush1.msra.mxu0 0.0
    %2194 = vmatprep.subr.mxu0 0.0
    %2195 = vmatpush1.msra.mxu0 0.0
    %2196 = vmatprep.subr.mxu0 0.0
    %2197 = vmatpush1.msra.mxu0 0.0
    %2198 = vmatprep.subr.mxu0 0.0
    %2199 = vmatpush1.msra.mxu0 0.0
    %2200 = vmatprep.subr.mxu0 0.0
    %2201 = vmatpush1.msra.mxu0 0.0
    %2202 = vmatprep.subr.mxu0 0.0
    %2203 = vmatpush1.msra.mxu0 0.0
    %2204 = vmatprep.subr.mxu0 0.0
    %2205 = vmatpush1.msra.mxu0 0.0
    %2206 = vmatprep.subr.mxu0 0.0
    %2207 = vmatpush1.msra.mxu0 0.0
    %2208 = vmatprep.subr.mxu0 0.0
    %2209 = vmatpush1.msra.mxu0 0.0
    %2210 = vmatprep.subr.mxu0 0.0
    %2211 = vmatpush1.msra.mxu0 0.0
    %2212 = vmatprep.subr.mxu0 0.0
    %2213 = vmatpush1.msra.mxu0 0.0
    %2214 = vmatprep.subr.mxu0 0.0
    %2215 = vmatpush1.msra.mxu0 0.0
    %2216 = vmatprep.subr.mxu0 0.0
    %2217 = vmatpush1.msra.mxu0 0.0
    %2218 = vmatprep.subr.mxu0 0.0
    %2219 = vmatpush1.msra.mxu0 0.0
    %2220 = vmatprep.subr.mxu0 0.0
    %2221 = vmatpush1.msra.mxu0 0.0
    %2222 = vmatprep.subr.mxu0 0.0
    %2223 = vmatpush1.msra.mxu0 0.0
    %2224 = vmatprep.subr.mxu0 0.0
    %2225 = vmatpush1.msra.mxu0 0.0
    %2226 = vmatprep.subr.mxu0 0.0
    %2227 = vmatpush1.msra.mxu0 0.0
    %2228 = vmatprep.subr.mxu0 0.0
    %2229 = vmatpush1.msra.mxu0 0.0
    %2230 = vmatprep.subr.mxu0 0.0
    %2231 = vmatpush1.msra.mxu0 0.0
    %2232 = vmatprep.mubr.f32.mxu0 0.0
    %2233 = vmatmul.mubr.f32.gmra.mrb[0].mxu0 %v2166
    %v2234 = vpop.f32.mrb[0].mxu0
    %v2235 = vadd.f32 0.0, %v2234
    %v2236 = vpop.f32.mrb[0].mxu0
    %2237 = vdwg.mxu0
    %v2239 = vsel %vm320, %v2159, 0
    %v2242 = vsel %vm320, %v2235, 0
    %2244 = vmatprep.subr.mxu0 0.0
    %2245 = vmatpush1.msra.mxu0 %v1580
    %2246 = vmatprep.subr.mxu0 0.0
    %2247 = vmatpush1.msra.mxu0 %v1581
    %2248 = vmatprep.subr.mxu0 0.0
    %2249 = vmatpush1.msra.mxu0 0.0
    %2250 = vmatprep.subr.mxu0 0.0
    %2251 = vmatpush1.msra.mxu0 0.0
    %2252 = vmatprep.subr.mxu0 0.0
    %2253 = vmatpush1.msra.mxu0 0.0
    %2254 = vmatprep.subr.mxu0 0.0
    %2255 = vmatpush1.msra.mxu0 0.0
    %2256 = vmatprep.subr.mxu0 0.0
    %2257 = vmatpush1.msra.mxu0 0.0
    %2258 = vmatprep.subr.mxu0 0.0
    %2259 = vmatpush1.msra.mxu0 0.0
    %2260 = vmatprep.subr.mxu0 0.0
    %2261 = vmatpush1.msra.mxu0 0.0
    %2262 = vmatprep.subr.mxu0 0.0
    %2263 = vmatpush1.msra.mxu0 0.0
    %2264 = vmatprep.subr.mxu0 0.0
    %2265 = vmatpush1.msra.mxu0 0.0
    %2266 = vmatprep.subr.mxu0 0.0
    %2267 = vmatpush1.msra.mxu0 0.0
    %2268 = vmatprep.subr.mxu0 0.0
    %2269 = vmatpush1.msra.mxu0 0.0
    %2270 = vmatprep.subr.mxu0 0.0
    %2271 = vmatpush1.msra.mxu0 0.0
    %2272 = vmatprep.subr.mxu0 0.0
    %2273 = vmatpush1.msra.mxu0 0.0
    %2274 = vmatprep.subr.mxu0 0.0
    %2275 = vmatpush1.msra.mxu0 0.0
    %2276 = vmatprep.subr.mxu0 0.0
    %2277 = vmatpush1.msra.mxu0 0.0
    %2278 = vmatprep.subr.mxu0 0.0
    %2279 = vmatpush1.msra.mxu0 0.0
    %2280 = vmatprep.subr.mxu0 0.0
    %2281 = vmatpush1.msra.mxu0 0.0
    %2282 = vmatprep.subr.mxu0 0.0
    %2283 = vmatpush1.msra.mxu0 0.0
    %2284 = vmatprep.subr.mxu0 0.0
    %2285 = vmatpush1.msra.mxu0 0.0
    %2286 = vmatprep.subr.mxu0 0.0
    %2287 = vmatpush1.msra.mxu0 0.0
    %2288 = vmatprep.subr.mxu0 0.0
    %2289 = vmatpush1.msra.mxu0 0.0
    %2290 = vmatprep.subr.mxu0 0.0
    %2291 = vmatpush1.msra.mxu0 0.0
    %2292 = vmatprep.subr.mxu0 0.0
    %2293 = vmatpush1.msra.mxu0 0.0
    %2294 = vmatprep.subr.mxu0 0.0
    %2295 = vmatpush1.msra.mxu0 0.0
    %2296 = vmatprep.subr.mxu0 0.0
    %2297 = vmatpush1.msra.mxu0 0.0
    %2298 = vmatprep.subr.mxu0 0.0
    %2299 = vmatpush1.msra.mxu0 0.0
    %2300 = vmatprep.subr.mxu0 0.0
    %2301 = vmatpush1.msra.mxu0 0.0
    %2302 = vmatprep.subr.mxu0 0.0
    %2303 = vmatpush1.msra.mxu0 0.0
    %2304 = vmatprep.subr.mxu0 0.0
    %2305 = vmatpush1.msra.mxu0 0.0
    %2306 = vmatprep.subr.mxu0 0.0
    %2307 = vmatpush1.msra.mxu0 0.0
    %2308 = vmatprep.mubr.f32.mxu0 0.0
    %2309 = vmatmul.mubr.f32.gmra.mrb[0].mxu0 %v2239
    %v2310 = vpop.f32.mrb[0].mxu0
    %v2311 = vadd.f32 0.0, %v2310
    %v2312 = vpop.f32.mrb[0].mxu0
    %2313 = vmatprep.mubr.f32.mxu0 0.0
    %2314 = vmatmul.mubr.f32.gmra.mrb[0].mxu0 %v2242
    %v2315 = vpop.f32.mrb[0].mxu0
    %v2316 = vadd.f32 0.0, %v2315
    %v2317 = vpop.f32.mrb[0].mxu0
    %2318 = vdwg.mxu0
    %v2320 = vsel %vm320, %v1829, 0
    %v2323 = vsel %vm320, %v1905, 0
    %2325 = vmatprep.subr.mxu0 0.0
    %2326 = vmatpush1.msra.mxu0 %v1578
    %2327 = vmatprep.subr.mxu0 0.0
    %2328 = vmatpush1.msra.mxu0 %v1579
    %2329 = vmatprep.subr.mxu0 0.0
    %2330 = vmatpush1.msra.mxu0 0.0
    %2331 = vmatprep.subr.mxu0 0.0
    %2332 = vmatpush1.msra.mxu0 0.0
    %2333 = vmatprep.subr.mxu0 0.0
    %2334 = vmatpush1.msra.mxu0 0.0
    %2335 = vmatprep.subr.mxu0 0.0
    %2336 = vmatpush1.msra.mxu0 0.0
    %2337 = vmatprep.subr.mxu0 0.0
    %2338 = vmatpush1.msra.mxu0 0.0
    %2339 = vmatprep.subr.mxu0 0.0
    %2340 = vmatpush1.msra.mxu0 0.0
    %2341 = vmatprep.subr.mxu0 0.0
    %2342 = vmatpush1.msra.mxu0 0.0
    %2343 = vmatprep.subr.mxu0 0.0
    %2344 = vmatpush1.msra.mxu0 0.0
    %2345 = vmatprep.subr.mxu0 0.0
    %2346 = vmatpush1.msra.mxu0 0.0
    %2347 = vmatprep.subr.mxu0 0.0
    %2348 = vmatpush1.msra.mxu0 0.0
    %2349 = vmatprep.subr.mxu0 0.0
    %2350 = vmatpush1.msra.mxu0 0.0
    %2351 = vmatprep.subr.mxu0 0.0
    %2352 = vmatpush1.msra.mxu0 0.0
    %2353 = vmatprep.subr.mxu0 0.0
    %2354 = vmatpush1.msra.mxu0 0.0
    %2355 = vmatprep.subr.mxu0 0.0
    %2356 = vmatpush1.msra.mxu0 0.0
    %2357 = vmatprep.subr.mxu0 0.0
    %2358 = vmatpush1.msra.mxu0 0.0
    %2359 = vmatprep.subr.mxu0 0.0
    %2360 = vmatpush1.msra.mxu0 0.0
    %2361 = vmatprep.subr.mxu0 0.0
    %2362 = vmatpush1.msra.mxu0 0.0
    %2363 = vmatprep.subr.mxu0 0.0
    %2364 = vmatpush1.msra.mxu0 0.0
    %2365 = vmatprep.subr.mxu0 0.0
    %2366 = vmatpush1.msra.mxu0 0.0
    %2367 = vmatprep.subr.mxu0 0.0
    %2368 = vmatpush1.msra.mxu0 0.0
    %2369 = vmatprep.subr.mxu0 0.0
    %2370 = vmatpush1.msra.mxu0 0.0
    %2371 = vmatprep.subr.mxu0 0.0
    %2372 = vmatpush1.msra.mxu0 0.0
    %2373 = vmatprep.subr.mxu0 0.0
    %2374 = vmatpush1.msra.mxu0 0.0
    %2375 = vmatprep.subr.mxu0 0.0
    %2376 = vmatpush1.msra.mxu0 0.0
    %2377 = vmatprep.subr.mxu0 0.0
    %2378 = vmatpush1.msra.mxu0 0.0
    %2379 = vmatprep.subr.mxu0 0.0
    %2380 = vmatpush1.msra.mxu0 0.0
    %2381 = vmatprep.subr.mxu0 0.0
    %2382 = vmatpush1.msra.mxu0 0.0
    %2383 = vmatprep.subr.mxu0 0.0
    %2384 = vmatpush1.msra.mxu0 0.0
    %2385 = vmatprep.subr.mxu0 0.0
    %2386 = vmatpush1.msra.mxu0 0.0
    %2387 = vmatprep.subr.mxu0 0.0
    %2388 = vmatpush1.msra.mxu0 0.0
    %2389 = vmatprep.mubr.f32.mxu0 0.0
    %2390 = vmatmul.mubr.f32.gmra.mrb[0].mxu0 %v2320
    %v2391 = vpop.f32.mrb[0].mxu0
    %v2392 = vadd.f32 %v2311, %v2391
    %v2393 = vpop.f32.mrb[0].mxu0
    %2394 = vmatprep.mubr.f32.mxu0 0.0
    %2395 = vmatmul.mubr.f32.gmra.mrb[0].mxu0 %v2323
    %v2396 = vpop.f32.mrb[0].mxu0
    %v2397 = vadd.f32 %v2316, %v2396
    %v2398 = vpop.f32.mrb[0].mxu0
    %2399 = vdwg.mxu0
    %v2400 = vadd.f32 %v1387, %v2392
    %v2401 = vadd.f32 %v1388, %v2397
    %v2402 = vmul.f32 %v2400, %v2400
    %v2403 = vmul.f32 %v2401, %v2401
    %v2404 = vsel %vm127, %v2402, 0.0
    %2405 = vadd.xlane.f32.xlu0 %v2404
    %v2406 = vpop.xlane.xlu0 %2405
    %v2407 = vsel %vm127, %v2403, 0.0
    %2408 = vadd.xlane.f32.xlu0 %v2407
    %v2409 = vpop.xlane.xlu0 %2408
    %v2410 = vmul.f32 %v2406, %v134
    %v2411 = vmul.f32 %v2409, %v134
    %v2412 = vadd.f32 %v2410, 1e-06
    %v2413 = vadd.f32 %v2411, 1e-06
    %v2414 = vrsqrt.pop %v2412
    %v2415 = vrsqrt.pop %v2413
    %v2416 = vmul.f32 %v2400, %v2414
    %v2417 = vmul.f32 %v2401, %v2415
    %v2418 = vld [vmem:[%s19] sm:$0x1]
    %v2420 = vlaneseq
    %v2421 = vshrl.u32 %v2420, 7
    %v2422 = vsub.s32 0, %v2421
    %v2423 = vrot.slane %v2418, %v2422
    %v2425 = vmul.f32 %v2416, %v2423
    %v2426 = vmul.f32 %v2417, %v2423
    %v2427 = vld [vmem:[%s20] sm:$0xff]
    %v2428 = vld [vmem:[%s20 + $0x8] sm:$0xff]
    %v2429 = vld [vmem:[%s20 + $0x10] sm:$0xff]
    %v2430 = vld [vmem:[%s20 + $0x18] sm:$0xff]
    %v2432 = vsel %vm127, %v2425, 0
    %v2435 = vsel %vm127, %v2426, 0
    %2437 = vmatprep.subr.mxu0 0.0
    %2438 = vmatpush1.msra.mxu0 %v2427
    %2439 = vmatprep.subr.mxu0 0.0
    %2440 = vmatpush1.msra.mxu0 %v2428
    %2441 = vmatprep.subr.mxu0 0.0
    %2442 = vmatpush1.msra.mxu0 %v2429
    %2443 = vmatprep.subr.mxu0 0.0
    %2444 = vmatpush1.msra.mxu0 %v2430
    %2445 = vmatprep.subr.mxu0 0.0
    %2446 = vmatpush1.msra.mxu0 0.0
    %2447 = vmatprep.subr.mxu0 0.0
    %2448 = vmatpush1.msra.mxu0 0.0
    %2449 = vmatprep.subr.mxu0 0.0
    %2450 = vmatpush1.msra.mxu0 0.0
    %2451 = vmatprep.subr.mxu0 0.0
    %2452 = vmatpush1.msra.mxu0 0.0
    %2453 = vmatprep.subr.mxu0 0.0
    %2454 = vmatpush1.msra.mxu0 0.0
    %2455 = vmatprep.subr.mxu0 0.0
    %2456 = vmatpush1.msra.mxu0 0.0
    %2457 = vmatprep.subr.mxu0 0.0
    %2458 = vmatpush1.msra.mxu0 0.0
    %2459 = vmatprep.subr.mxu0 0.0
    %2460 = vmatpush1.msra.mxu0 0.0
    %2461 = vmatprep.subr.mxu0 0.0
    %2462 = vmatpush1.msra.mxu0 0.0
    %2463 = vmatprep.subr.mxu0 0.0
    %2464 = vmatpush1.msra.mxu0 0.0
    %2465 = vmatprep.subr.mxu0 0.0
    %2466 = vmatpush1.msra.mxu0 0.0
    %2467 = vmatprep.subr.mxu0 0.0
    %2468 = vmatpush1.msra.mxu0 0.0
    %2469 = vmatprep.subr.mxu0 0.0
    %2470 = vmatpush1.msra.mxu0 0.0
    %2471 = vmatprep.subr.mxu0 0.0
    %2472 = vmatpush1.msra.mxu0 0.0
    %2473 = vmatprep.subr.mxu0 0.0
    %2474 = vmatpush1.msra.mxu0 0.0
    %2475 = vmatprep.subr.mxu0 0.0
    %2476 = vmatpush1.msra.mxu0 0.0
    %2477 = vmatprep.subr.mxu0 0.0
    %2478 = vmatpush1.msra.mxu0 0.0
    %2479 = vmatprep.subr.mxu0 0.0
    %2480 = vmatpush1.msra.mxu0 0.0
    %2481 = vmatprep.subr.mxu0 0.0
    %2482 = vmatpush1.msra.mxu0 0.0
    %2483 = vmatprep.subr.mxu0 0.0
    %2484 = vmatpush1.msra.mxu0 0.0
    %2485 = vmatprep.subr.mxu0 0.0
    %2486 = vmatpush1.msra.mxu0 0.0
    %2487 = vmatprep.subr.mxu0 0.0
    %2488 = vmatpush1.msra.mxu0 0.0
    %2489 = vmatprep.subr.mxu0 0.0
    %2490 = vmatpush1.msra.mxu0 0.0
    %2491 = vmatprep.subr.mxu0 0.0
    %2492 = vmatpush1.msra.mxu0 0.0
    %2493 = vmatprep.subr.mxu0 0.0
    %2494 = vmatpush1.msra.mxu0 0.0
    %2495 = vmatprep.subr.mxu0 0.0
    %2496 = vmatpush1.msra.mxu0 0.0
    %2497 = vmatprep.subr.mxu0 0.0
    %2498 = vmatpush1.msra.mxu0 0.0
    %2499 = vmatprep.subr.mxu0 0.0
    %2500 = vmatpush1.msra.mxu0 0.0
    %2501 = vmatprep.mubr.f32.mxu0 0.0
    %2502 = vmatmul.mubr.f32.gmra.mrb[0].mxu0 %v2432
    %v2503 = vpop.f32.mrb[0].mxu0
    %v2504 = vadd.f32 0.0, %v2503
    %v2505 = vpop.f32.mrb[0].mxu0
    %2506 = vmatprep.mubr.f32.mxu0 0.0
    %2507 = vmatmul.mubr.f32.gmra.mrb[0].mxu0 %v2435
    %v2508 = vpop.f32.mrb[0].mxu0
    %v2509 = vadd.f32 0.0, %v2508
    %v2510 = vpop.f32.mrb[0].mxu0
    %2511 = vdwg.mxu0
    %v2512 = vld [vmem:[%s21] sm:$0xff]
    %v2513 = vld [vmem:[%s21 + $0x8] sm:$0xff]
    %v2514 = vld [vmem:[%s21 + $0x10] sm:$0xff]
    %v2515 = vld [vmem:[%s21 + $0x18] sm:$0xff]
    %v2517 = vsel %vm127, %v1385, 0
    %v2520 = vsel %vm127, %v1386, 0
    %2522 = vmatprep.subr.mxu0 0.0
    %2523 = vmatpush1.msra.mxu0 %v2512
    %2524 = vmatprep.subr.mxu0 0.0
    %2525 = vmatpush1.msra.mxu0 %v2513
    %2526 = vmatprep.subr.mxu0 0.0
    %2527 = vmatpush1.msra.mxu0 %v2514
    %2528 = vmatprep.subr.mxu0 0.0
    %2529 = vmatpush1.msra.mxu0 %v2515
    %2530 = vmatprep.subr.mxu0 0.0
    %2531 = vmatpush1.msra.mxu0 0.0
    %2532 = vmatprep.subr.mxu0 0.0
    %2533 = vmatpush1.msra.mxu0 0.0
    %2534 = vmatprep.subr.mxu0 0.0
    %2535 = vmatpush1.msra.mxu0 0.0
    %2536 = vmatprep.subr.mxu0 0.0
    %2537 = vmatpush1.msra.mxu0 0.0
    %2538 = vmatprep.subr.mxu0 0.0
    %2539 = vmatpush1.msra.mxu0 0.0
    %2540 = vmatprep.subr.mxu0 0.0
    %2541 = vmatpush1.msra.mxu0 0.0
    %2542 = vmatprep.subr.mxu0 0.0
    %2543 = vmatpush1.msra.mxu0 0.0
    %2544 = vmatprep.subr.mxu0 0.0
    %2545 = vmatpush1.msra.mxu0 0.0
    %2546 = vmatprep.subr.mxu0 0.0
    %2547 = vmatpush1.msra.mxu0 0.0
    %2548 = vmatprep.subr.mxu0 0.0
    %2549 = vmatpush1.msra.mxu0 0.0
    %2550 = vmatprep.subr.mxu0 0.0
    %2551 = vmatpush1.msra.mxu0 0.0
    %2552 = vmatprep.subr.mxu0 0.0
    %2553 = vmatpush1.msra.mxu0 0.0
    %2554 = vmatprep.subr.mxu0 0.0
    %2555 = vmatpush1.msra.mxu0 0.0
    %2556 = vmatprep.subr.mxu0 0.0
    %2557 = vmatpush1.msra.mxu0 0.0
    %2558 = vmatprep.subr.mxu0 0.0
    %2559 = vmatpush1.msra.mxu0 0.0
    %2560 = vmatprep.subr.mxu0 0.0
    %2561 = vmatpush1.msra.mxu0 0.0
    %2562 = vmatprep.subr.mxu0 0.0
    %2563 = vmatpush1.msra.mxu0 0.0
    %2564 = vmatprep.subr.mxu0 0.0
    %2565 = vmatpush1.msra.mxu0 0.0
    %2566 = vmatprep.subr.mxu0 0.0
    %2567 = vmatpush1.msra.mxu0 0.0
    %2568 = vmatprep.subr.mxu0 0.0
    %2569 = vmatpush1.msra.mxu0 0.0
    %2570 = vmatprep.subr.mxu0 0.0
    %2571 = vmatpush1.msra.mxu0 0.0
    %2572 = vmatprep.subr.mxu0 0.0
    %2573 = vmatpush1.msra.mxu0 0.0
    %2574 = vmatprep.subr.mxu0 0.0
    %2575 = vmatpush1.msra.mxu0 0.0
    %2576 = vmatprep.subr.mxu0 0.0
    %2577 = vmatpush1.msra.mxu0 0.0
    %2578 = vmatprep.subr.mxu0 0.0
    %2579 = vmatpush1.msra.mxu0 0.0
    %2580 = vmatprep.subr.mxu0 0.0
    %2581 = vmatpush1.msra.mxu0 0.0
    %2582 = vmatprep.subr.mxu0 0.0
    %2583 = vmatpush1.msra.mxu0 0.0
    %2584 = vmatprep.subr.mxu0 0.0
    %2585 = vmatpush1.msra.mxu0 0.0
    %2586 = vmatprep.mubr.f32.mxu0 0.0
    %2587 = vmatmul.mubr.f32.gmra.mrb[0].mxu0 %v2517
    %v2588 = vpop.f32.mrb[0].mxu0
    %v2589 = vadd.f32 0.0, %v2588
    %v2590 = vpop.f32.mrb[0].mxu0
    %2591 = vmatprep.mubr.f32.mxu0 0.0
    %2592 = vmatmul.mubr.f32.gmra.mrb[0].mxu0 %v2520
    %v2593 = vpop.f32.mrb[0].mxu0
    %v2594 = vadd.f32 0.0, %v2593
    %v2595 = vpop.f32.mrb[0].mxu0
    %2596 = vdwg.mxu0
    %v2597 = vld [vmem:[%s22] sm:$0xff]
    %v2598 = vld [vmem:[%s22 + $0x8] sm:$0xff]
    %v2599 = vld [vmem:[%s22 + $0x10] sm:$0xff]
    %v2600 = vld [vmem:[%s22 + $0x18] sm:$0xff]
    %v2602 = vsel %vm320, %v2504, 0
    %v2605 = vsel %vm320, %v2589, 0
    %2607 = vmatprep.subr.mxu0 0.0
    %2608 = vmatpush1.xpose.msra.mxu0 %v2605
    %2609 = vmatprep.subr.mxu0 0.0
    %2610 = vmatpush1.xpose.msra.mxu0 0.0
    %2611 = vmatprep.subr.mxu0 0.0
    %2612 = vmatpush1.xpose.msra.mxu0 0.0
    %2613 = vmatprep.subr.mxu0 0.0
    %2614 = vmatpush1.xpose.msra.mxu0 0.0
    %2615 = vmatprep.subr.mxu0 0.0
    %2616 = vmatpush1.xpose.msra.mxu0 0.0
    %2617 = vmatprep.subr.mxu0 0.0
    %2618 = vmatpush1.xpose.msra.mxu0 0.0
    %2619 = vmatprep.subr.mxu0 0.0
    %2620 = vmatpush1.xpose.msra.mxu0 0.0
    %2621 = vmatprep.subr.mxu0 0.0
    %2622 = vmatpush1.xpose.msra.mxu0 0.0
    %2623 = vmatprep.subr.mxu0 0.0
    %2624 = vmatpush1.xpose.msra.mxu0 0.0
    %2625 = vmatprep.subr.mxu0 0.0
    %2626 = vmatpush1.xpose.msra.mxu0 0.0
    %2627 = vmatprep.subr.mxu0 0.0
    %2628 = vmatpush1.xpose.msra.mxu0 0.0
    %2629 = vmatprep.subr.mxu0 0.0
    %2630 = vmatpush1.xpose.msra.mxu0 0.0
    %2631 = vmatprep.subr.mxu0 0.0
    %2632 = vmatpush1.xpose.msra.mxu0 0.0
    %2633 = vmatprep.subr.mxu0 0.0
    %2634 = vmatpush1.xpose.msra.mxu0 0.0
    %2635 = vmatprep.subr.mxu0 0.0
    %2636 = vmatpush1.xpose.msra.mxu0 0.0
    %2637 = vmatprep.subr.mxu0 0.0
    %2638 = vmatpush1.xpose.msra.mxu0 0.0
    %2639 = vmatprep.subr.mxu0 0.0
    %2640 = vmatpush1.xpose.msra.mxu0 0.0
    %2641 = vmatprep.subr.mxu0 0.0
    %2642 = vmatpush1.xpose.msra.mxu0 0.0
    %2643 = vmatprep.subr.mxu0 0.0
    %2644 = vmatpush1.xpose.msra.mxu0 0.0
    %2645 = vmatprep.subr.mxu0 0.0
    %2646 = vmatpush1.xpose.msra.mxu0 0.0
    %2647 = vmatprep.subr.mxu0 0.0
    %2648 = vmatpush1.xpose.msra.mxu0 0.0
    %2649 = vmatprep.subr.mxu0 0.0
    %2650 = vmatpush1.xpose.msra.mxu0 0.0
    %2651 = vmatprep.subr.mxu0 0.0
    %2652 = vmatpush1.xpose.msra.mxu0 0.0
    %2653 = vmatprep.subr.mxu0 0.0
    %2654 = vmatpush1.xpose.msra.mxu0 0.0
    %2655 = vmatprep.subr.mxu0 0.0
    %2656 = vmatpush1.xpose.msra.mxu0 0.0
    %2657 = vmatprep.subr.mxu0 0.0
    %2658 = vmatpush1.xpose.msra.mxu0 0.0
    %2659 = vmatprep.subr.mxu0 0.0
    %2660 = vmatpush1.xpose.msra.mxu0 0.0
    %2661 = vmatprep.subr.mxu0 0.0
    %2662 = vmatpush1.xpose.msra.mxu0 0.0
    %2663 = vmatprep.subr.mxu0 0.0
    %2664 = vmatpush1.xpose.msra.mxu0 0.0
    %2665 = vmatprep.subr.mxu0 0.0
    %2666 = vmatpush1.xpose.msra.mxu0 0.0
    %2667 = vmatprep.subr.mxu0 0.0
    %2668 = vmatpush1.xpose.msra.mxu0 0.0
    %2669 = vmatprep.subr.mxu0 0.0
    %2670 = vmatpush1.xpose.msra.mxu0 0.0
    %2671 = vmatprep.mubr.f32.mxu0 0.0
    %2672 = vmatmul.mubr.f32.gmra.mrb[0].mxu0 %v2602
    %v2673 = vpop.f32.mrb[0].mxu0
    %v2674 = vadd.f32 %v478, %v2673
    %v2675 = vpop.f32.mrb[0].mxu0
    %2676 = vdwg.mxu0
    %v2678 = vsel %vm320, %v2509, 0
    %v2681 = vsel %vm320, %v2594, 0
    %2683 = vmatprep.subr.mxu0 0.0
    %2684 = vmatpush1.xpose.msra.mxu0 %v2681
    %2685 = vmatprep.subr.mxu0 0.0
    %2686 = vmatpush1.xpose.msra.mxu0 0.0
    %2687 = vmatprep.subr.mxu0 0.0
    %2688 = vmatpush1.xpose.msra.mxu0 0.0
    %2689 = vmatprep.subr.mxu0 0.0
    %2690 = vmatpush1.xpose.msra.mxu0 0.0
    %2691 = vmatprep.subr.mxu0 0.0
    %2692 = vmatpush1.xpose.msra.mxu0 0.0
    %2693 = vmatprep.subr.mxu0 0.0
    %2694 = vmatpush1.xpose.msra.mxu0 0.0
    %2695 = vmatprep.subr.mxu0 0.0
    %2696 = vmatpush1.xpose.msra.mxu0 0.0
    %2697 = vmatprep.subr.mxu0 0.0
    %2698 = vmatpush1.xpose.msra.mxu0 0.0
    %2699 = vmatprep.subr.mxu0 0.0
    %2700 = vmatpush1.xpose.msra.mxu0 0.0
    %2701 = vmatprep.subr.mxu0 0.0
    %2702 = vmatpush1.xpose.msra.mxu0 0.0
    %2703 = vmatprep.subr.mxu0 0.0
    %2704 = vmatpush1.xpose.msra.mxu0 0.0
    %2705 = vmatprep.subr.mxu0 0.0
    %2706 = vmatpush1.xpose.msra.mxu0 0.0
    %2707 = vmatprep.subr.mxu0 0.0
    %2708 = vmatpush1.xpose.msra.mxu0 0.0
    %2709 = vmatprep.subr.mxu0 0.0
    %2710 = vmatpush1.xpose.msra.mxu0 0.0
    %2711 = vmatprep.subr.mxu0 0.0
    %2712 = vmatpush1.xpose.msra.mxu0 0.0
    %2713 = vmatprep.subr.mxu0 0.0
    %2714 = vmatpush1.xpose.msra.mxu0 0.0
    %2715 = vmatprep.subr.mxu0 0.0
    %2716 = vmatpush1.xpose.msra.mxu0 0.0
    %2717 = vmatprep.subr.mxu0 0.0
    %2718 = vmatpush1.xpose.msra.mxu0 0.0
    %2719 = vmatprep.subr.mxu0 0.0
    %2720 = vmatpush1.xpose.msra.mxu0 0.0
    %2721 = vmatprep.subr.mxu0 0.0
    %2722 = vmatpush1.xpose.msra.mxu0 0.0
    %2723 = vmatprep.subr.mxu0 0.0
    %2724 = vmatpush1.xpose.msra.mxu0 0.0
    %2725 = vmatprep.subr.mxu0 0.0
    %2726 = vmatpush1.xpose.msra.mxu0 0.0
    %2727 = vmatprep.subr.mxu0 0.0
    %2728 = vmatpush1.xpose.msra.mxu0 0.0
    %2729 = vmatprep.subr.mxu0 0.0
    %2730 = vmatpush1.xpose.msra.mxu0 0.0
    %2731 = vmatprep.subr.mxu0 0.0
    %2732 = vmatpush1.xpose.msra.mxu0 0.0
    %2733 = vmatprep.subr.mxu0 0.0
    %2734 = vmatpush1.xpose.msra.mxu0 0.0
    %2735 = vmatprep.subr.mxu0 0.0
    %2736 = vmatpush1.xpose.msra.mxu0 0.0
    %2737 = vmatprep.subr.mxu0 0.0
    %2738 = vmatpush1.xpose.msra.mxu0 0.0
    %2739 = vmatprep.subr.mxu0 0.0
    %2740 = vmatpush1.xpose.msra.mxu0 0.0
    %2741 = vmatprep.subr.mxu0 0.0
    %2742 = vmatpush1.xpose.msra.mxu0 0.0
    %2743 = vmatprep.subr.mxu0 0.0
    %2744 = vmatpush1.xpose.msra.mxu0 0.0
    %2745 = vmatprep.subr.mxu0 0.0
    %2746 = vmatpush1.xpose.msra.mxu0 0.0
    %2747 = vmatprep.mubr.f32.mxu0 0.0
    %2748 = vmatmul.mubr.f32.gmra.mrb[0].mxu0 %v2678
    %v2749 = vpop.f32.mrb[0].mxu0
    %v2750 = vadd.f32 %v482, %v2749
    %v2751 = vpop.f32.mrb[0].mxu0
    %2752 = vdwg.mxu0
    %v2753 = vsel %vm487, %v2674, -inf
    %2754 = vmax.xlane.f32.xlu0 %v2753
    %v2755 = vpop.xlane.xlu0 %2754
    %v2756 = vsel %vm487, %v2750, -inf
    %2757 = vmax.xlane.f32.xlu0 %v2756
    %v2758 = vpop.xlane.xlu0 %2757
    %v2759 = vsub.f32 %v2674, %v2755
    %v2760 = vsub.f32 %v2750, %v2758
    %v2761 = vmul.f32 %v2759, 1.442695
    %v2762 = vpow.pop %v2761
    %v2763 = vmul.f32 %v2760, 1.442695
    %v2764 = vpow.pop %v2763
    %v2765 = vsel %vm487, %v2762, 0.0
    %2766 = vadd.xlane.f32.xlu0 %v2765
    %v2767 = vpop.xlane.xlu0 %2766
    %v2768 = vsel %vm487, %v2764, 0.0
    %2769 = vadd.xlane.f32.xlu0 %v2768
    %v2770 = vpop.xlane.xlu0 %2769
    %v2771 = vrcp.pop %v2767
    %v2772 = vrcp.pop %v2770
    %v2773 = vmul.f32 %v2762, %v2771
    %v2774 = vmul.f32 %v2764, %v2772
    %2775 = vrot.lane.b32.xlu0 %v2589, 96
    %v2776 = vpop.permute.xlu0 %2775
    %v2779 = vsel %vm487, %v2773, 0
    %2781 = vmatprep.subr.mxu0 0.0
    %2782 = vmatpush1.msra.mxu0 %v2776
    %2783 = vmatprep.subr.mxu0 0.0
    %2784 = vmatpush1.msra.mxu0 0.0
    %2785 = vmatprep.subr.mxu0 0.0
    %2786 = vmatpush1.msra.mxu0 0.0
    %2787 = vmatprep.subr.mxu0 0.0
    %2788 = vmatpush1.msra.mxu0 0.0
    %2789 = vmatprep.subr.mxu0 0.0
    %2790 = vmatpush1.msra.mxu0 0.0
    %2791 = vmatprep.subr.mxu0 0.0
    %2792 = vmatpush1.msra.mxu0 0.0
    %2793 = vmatprep.subr.mxu0 0.0
    %2794 = vmatpush1.msra.mxu0 0.0
    %2795 = vmatprep.subr.mxu0 0.0
    %2796 = vmatpush1.msra.mxu0 0.0
    %2797 = vmatprep.subr.mxu0 0.0
    %2798 = vmatpush1.msra.mxu0 0.0
    %2799 = vmatprep.subr.mxu0 0.0
    %2800 = vmatpush1.msra.mxu0 0.0
    %2801 = vmatprep.subr.mxu0 0.0
    %2802 = vmatpush1.msra.mxu0 0.0
    %2803 = vmatprep.subr.mxu0 0.0
    %2804 = vmatpush1.msra.mxu0 0.0
    %2805 = vmatprep.subr.mxu0 0.0
    %2806 = vmatpush1.msra.mxu0 0.0
    %2807 = vmatprep.subr.mxu0 0.0
    %2808 = vmatpush1.msra.mxu0 0.0
    %2809 = vmatprep.subr.mxu0 0.0
    %2810 = vmatpush1.msra.mxu0 0.0
    %2811 = vmatprep.subr.mxu0 0.0
    %2812 = vmatpush1.msra.mxu0 0.0
    %2813 = vmatprep.subr.mxu0 0.0
    %2814 = vmatpush1.msra.mxu0 0.0
    %2815 = vmatprep.subr.mxu0 0.0
    %2816 = vmatpush1.msra.mxu0 0.0
    %2817 = vmatprep.subr.mxu0 0.0
    %2818 = vmatpush1.msra.mxu0 0.0
    %2819 = vmatprep.subr.mxu0 0.0
    %2820 = vmatpush1.msra.mxu0 0.0
    %2821 = vmatprep.subr.mxu0 0.0
    %2822 = vmatpush1.msra.mxu0 0.0
    %2823 = vmatprep.subr.mxu0 0.0
    %2824 = vmatpush1.msra.mxu0 0.0
    %2825 = vmatprep.subr.mxu0 0.0
    %2826 = vmatpush1.msra.mxu0 0.0
    %2827 = vmatprep.subr.mxu0 0.0
    %2828 = vmatpush1.msra.mxu0 0.0
    %2829 = vmatprep.subr.mxu0 0.0
    %2830 = vmatpush1.msra.mxu0 0.0
    %2831 = vmatprep.subr.mxu0 0.0
    %2832 = vmatpush1.msra.mxu0 0.0
    %2833 = vmatprep.subr.mxu0 0.0
    %2834 = vmatpush1.msra.mxu0 0.0
    %2835 = vmatprep.subr.mxu0 0.0
    %2836 = vmatpush1.msra.mxu0 0.0
    %2837 = vmatprep.subr.mxu0 0.0
    %2838 = vmatpush1.msra.mxu0 0.0
    %2839 = vmatprep.subr.mxu0 0.0
    %2840 = vmatpush1.msra.mxu0 0.0
    %2841 = vmatprep.subr.mxu0 0.0
    %2842 = vmatpush1.msra.mxu0 0.0
    %2843 = vmatprep.subr.mxu0 0.0
    %2844 = vmatpush1.msra.mxu0 0.0
    %2845 = vmatprep.mubr.f32.mxu0 0.0
    %2846 = vmatmul.mubr.f32.gmra.mrb[0].mxu0 %v2779
    %v2847 = vpop.f32.mrb[0].mxu0
    %v2848 = vadd.f32 0.0, %v2847
    %v2849 = vpop.f32.mrb[0].mxu0
    %2850 = vdwg.mxu0
    %2851 = vrot.lane.b32.xlu0 %v2594, 96
    %v2852 = vpop.permute.xlu0 %2851
    %v2855 = vsel %vm487, %v2774, 0
    %2857 = vmatprep.subr.mxu0 0.0
    %2858 = vmatpush1.msra.mxu0 %v2852
    %2859 = vmatprep.subr.mxu0 0.0
    %2860 = vmatpush1.msra.mxu0 0.0
    %2861 = vmatprep.subr.mxu0 0.0
    %2862 = vmatpush1.msra.mxu0 0.0
    %2863 = vmatprep.subr.mxu0 0.0
    %2864 = vmatpush1.msra.mxu0 0.0
    %2865 = vmatprep.subr.mxu0 0.0
    %2866 = vmatpush1.msra.mxu0 0.0
    %2867 = vmatprep.subr.mxu0 0.0
    %2868 = vmatpush1.msra.mxu0 0.0
    %2869 = vmatprep.subr.mxu0 0.0
    %2870 = vmatpush1.msra.mxu0 0.0
    %2871 = vmatprep.subr.mxu0 0.0
    %2872 = vmatpush1.msra.mxu0 0.0
    %2873 = vmatprep.subr.mxu0 0.0
    %2874 = vmatpush1.msra.mxu0 0.0
    %2875 = vmatprep.subr.mxu0 0.0
    %2876 = vmatpush1.msra.mxu0 0.0
    %2877 = vmatprep.subr.mxu0 0.0
    %2878 = vmatpush1.msra.mxu0 0.0
    %2879 = vmatprep.subr.mxu0 0.0
    %2880 = vmatpush1.msra.mxu0 0.0
    %2881 = vmatprep.subr.mxu0 0.0
    %2882 = vmatpush1.msra.mxu0 0.0
    %2883 = vmatprep.subr.mxu0 0.0
    %2884 = vmatpush1.msra.mxu0 0.0
    %2885 = vmatprep.subr.mxu0 0.0
    %2886 = vmatpush1.msra.mxu0 0.0
    %2887 = vmatprep.subr.mxu0 0.0
    %2888 = vmatpush1.msra.mxu0 0.0
    %2889 = vmatprep.subr.mxu0 0.0
    %2890 = vmatpush1.msra.mxu0 0.0
    %2891 = vmatprep.subr.mxu0 0.0
    %2892 = vmatpush1.msra.mxu0 0.0
    %2893 = vmatprep.subr.mxu0 0.0
    %2894 = vmatpush1.msra.mxu0 0.0
    %2895 = vmatprep.subr.mxu0 0.0
    %2896 = vmatpush1.msra.mxu0 0.0
    %2897 = vmatprep.subr.mxu0 0.0
    %2898 = vmatpush1.msra.mxu0 0.0
    %2899 = vmatprep.subr.mxu0 0.0
    %2900 = vmatpush1.msra.mxu0 0.0
    %2901 = vmatprep.subr.mxu0 0.0
    %2902 = vmatpush1.msra.mxu0 0.0
    %2903 = vmatprep.subr.mxu0 0.0
    %2904 = vmatpush1.msra.mxu0 0.0
    %2905 = vmatprep.subr.mxu0 0.0
    %2906 = vmatpush1.msra.mxu0 0.0
    %2907 = vmatprep.subr.mxu0 0.0
    %2908 = vmatpush1.msra.mxu0 0.0
    %2909 = vmatprep.subr.mxu0 0.0
    %2910 = vmatpush1.msra.mxu0 0.0
    %2911 = vmatprep.subr.mxu0 0.0
    %2912 = vmatpush1.msra.mxu0 0.0
    %2913 = vmatprep.subr.mxu0 0.0
    %2914 = vmatpush1.msra.mxu0 0.0
    %2915 = vmatprep.subr.mxu0 0.0
    %2916 = vmatpush1.msra.mxu0 0.0
    %2917 = vmatprep.subr.mxu0 0.0
    %2918 = vmatpush1.msra.mxu0 0.0
    %2919 = vmatprep.subr.mxu0 0.0
    %2920 = vmatpush1.msra.mxu0 0.0
    %2921 = vmatprep.mubr.f32.mxu0 0.0
    %2922 = vmatmul.mubr.f32.gmra.mrb[0].mxu0 %v2855
    %v2923 = vpop.f32.mrb[0].mxu0
    %v2924 = vadd.f32 0.0, %v2923
    %v2925 = vpop.f32.mrb[0].mxu0
    %2926 = vdwg.mxu0
    %2927 = vrot.lane.b32.xlu0 %v2504, 112
    %v2928 = vpop.permute.xlu0 %2927
    %2929 = vrot.lane.b32.xlu0 %v2589, 112
    %v2930 = vpop.permute.xlu0 %2929
    %v2931 = vsel %vm320, %v2928, 0
    %v2933 = vsel %vm320, %v2930, 0
    %2935 = vmatprep.subr.mxu0 0.0
    %2936 = vmatpush1.xpose.msra.mxu0 %v2933
    %2937 = vmatprep.subr.mxu0 0.0
    %2938 = vmatpush1.xpose.msra.mxu0 0.0
    %2939 = vmatprep.subr.mxu0 0.0
    %2940 = vmatpush1.xpose.msra.mxu0 0.0
    %2941 = vmatprep.subr.mxu0 0.0
    %2942 = vmatpush1.xpose.msra.mxu0 0.0
    %2943 = vmatprep.subr.mxu0 0.0
    %2944 = vmatpush1.xpose.msra.mxu0 0.0
    %2945 = vmatprep.subr.mxu0 0.0
    %2946 = vmatpush1.xpose.msra.mxu0 0.0
    %2947 = vmatprep.subr.mxu0 0.0
    %2948 = vmatpush1.xpose.msra.mxu0 0.0
    %2949 = vmatprep.subr.mxu0 0.0
    %2950 = vmatpush1.xpose.msra.mxu0 0.0
    %2951 = vmatprep.subr.mxu0 0.0
    %2952 = vmatpush1.xpose.msra.mxu0 0.0
    %2953 = vmatprep.subr.mxu0 0.0
    %2954 = vmatpush1.xpose.msra.mxu0 0.0
    %2955 = vmatprep.subr.mxu0 0.0
    %2956 = vmatpush1.xpose.msra.mxu0 0.0
    %2957 = vmatprep.subr.mxu0 0.0
    %2958 = vmatpush1.xpose.msra.mxu0 0.0
    %2959 = vmatprep.subr.mxu0 0.0
    %2960 = vmatpush1.xpose.msra.mxu0 0.0
    %2961 = vmatprep.subr.mxu0 0.0
    %2962 = vmatpush1.xpose.msra.mxu0 0.0
    %2963 = vmatprep.subr.mxu0 0.0
    %2964 = vmatpush1.xpose.msra.mxu0 0.0
    %2965 = vmatprep.subr.mxu0 0.0
    %2966 = vmatpush1.xpose.msra.mxu0 0.0
    %2967 = vmatprep.subr.mxu0 0.0
    %2968 = vmatpush1.xpose.msra.mxu0 0.0
    %2969 = vmatprep.subr.mxu0 0.0
    %2970 = vmatpush1.xpose.msra.mxu0 0.0
    %2971 = vmatprep.subr.mxu0 0.0
    %2972 = vmatpush1.xpose.msra.mxu0 0.0
    %2973 = vmatprep.subr.mxu0 0.0
    %2974 = vmatpush1.xpose.msra.mxu0 0.0
    %2975 = vmatprep.subr.mxu0 0.0
    %2976 = vmatpush1.xpose.msra.mxu0 0.0
    %2977 = vmatprep.subr.mxu0 0.0
    %2978 = vmatpush1.xpose.msra.mxu0 0.0
    %2979 = vmatprep.subr.mxu0 0.0
    %2980 = vmatpush1.xpose.msra.mxu0 0.0
    %2981 = vmatprep.subr.mxu0 0.0
    %2982 = vmatpush1.xpose.msra.mxu0 0.0
    %2983 = vmatprep.subr.mxu0 0.0
    %2984 = vmatpush1.xpose.msra.mxu0 0.0
    %2985 = vmatprep.subr.mxu0 0.0
    %2986 = vmatpush1.xpose.msra.mxu0 0.0
    %2987 = vmatprep.subr.mxu0 0.0
    %2988 = vmatpush1.xpose.msra.mxu0 0.0
    %2989 = vmatprep.subr.mxu0 0.0
    %2990 = vmatpush1.xpose.msra.mxu0 0.0
    %2991 = vmatprep.subr.mxu0 0.0
    %2992 = vmatpush1.xpose.msra.mxu0 0.0
    %2993 = vmatprep.subr.mxu0 0.0
    %2994 = vmatpush1.xpose.msra.mxu0 0.0
    %2995 = vmatprep.subr.mxu0 0.0
    %2996 = vmatpush1.xpose.msra.mxu0 0.0
    %2997 = vmatprep.subr.mxu0 0.0
    %2998 = vmatpush1.xpose.msra.mxu0 0.0
    %2999 = vmatprep.mubr.f32.mxu0 0.0
    %3000 = vmatmul.mubr.f32.gmra.mrb[0].mxu0 %v2931
    %v3001 = vpop.f32.mrb[0].mxu0
    %v3002 = vadd.f32 %v478, %v3001
    %v3003 = vpop.f32.mrb[0].mxu0
    %3004 = vdwg.mxu0
    %3005 = vrot.lane.b32.xlu0 %v2509, 112
    %v3006 = vpop.permute.xlu0 %3005
    %3007 = vrot.lane.b32.xlu0 %v2594, 112
    %v3008 = vpop.permute.xlu0 %3007
    %v3009 = vsel %vm320, %v3006, 0
    %v3011 = vsel %vm320, %v3008, 0
    %3013 = vmatprep.subr.mxu0 0.0
    %3014 = vmatpush1.xpose.msra.mxu0 %v3011
    %3015 = vmatprep.subr.mxu0 0.0
    %3016 = vmatpush1.xpose.msra.mxu0 0.0
    %3017 = vmatprep.subr.mxu0 0.0
    %3018 = vmatpush1.xpose.msra.mxu0 0.0
    %3019 = vmatprep.subr.mxu0 0.0
    %3020 = vmatpush1.xpose.msra.mxu0 0.0
    %3021 = vmatprep.subr.mxu0 0.0
    %3022 = vmatpush1.xpose.msra.mxu0 0.0
    %3023 = vmatprep.subr.mxu0 0.0
    %3024 = vmatpush1.xpose.msra.mxu0 0.0
    %3025 = vmatprep.subr.mxu0 0.0
    %3026 = vmatpush1.xpose.msra.mxu0 0.0
    %3027 = vmatprep.subr.mxu0 0.0
    %3028 = vmatpush1.xpose.msra.mxu0 0.0
    %3029 = vmatprep.subr.mxu0 0.0
    %3030 = vmatpush1.xpose.msra.mxu0 0.0
    %3031 = vmatprep.subr.mxu0 0.0
    %3032 = vmatpush1.xpose.msra.mxu0 0.0
    %3033 = vmatprep.subr.mxu0 0.0
    %3034 = vmatpush1.xpose.msra.mxu0 0.0
    %3035 = vmatprep.subr.mxu0 0.0
    %3036 = vmatpush1.xpose.msra.mxu0 0.0
    %3037 = vmatprep.subr.mxu0 0.0
    %3038 = vmatpush1.xpose.msra.mxu0 0.0
    %3039 = vmatprep.subr.mxu0 0.0
    %3040 = vmatpush1.xpose.msra.mxu0 0.0
    %3041 = vmatprep.subr.mxu0 0.0
    %3042 = vmatpush1.xpose.msra.mxu0 0.0
    %3043 = vmatprep.subr.mxu0 0.0
    %3044 = vmatpush1.xpose.msra.mxu0 0.0
    %3045 = vmatprep.subr.mxu0 0.0
    %3046 = vmatpush1.xpose.msra.mxu0 0.0
    %3047 = vmatprep.subr.mxu0 0.0
    %3048 = vmatpush1.xpose.msra.mxu0 0.0
    %3049 = vmatprep.subr.mxu0 0.0
    %3050 = vmatpush1.xpose.msra.mxu0 0.0
    %3051 = vmatprep.subr.mxu0 0.0
    %3052 = vmatpush1.xpose.msra.mxu0 0.0
    %3053 = vmatprep.subr.mxu0 0.0
    %3054 = vmatpush1.xpose.msra.mxu0 0.0
    %3055 = vmatprep.subr.mxu0 0.0
    %3056 = vmatpush1.xpose.msra.mxu0 0.0
    %3057 = vmatprep.subr.mxu0 0.0
    %3058 = vmatpush1.xpose.msra.mxu0 0.0
    %3059 = vmatprep.subr.mxu0 0.0
    %3060 = vmatpush1.xpose.msra.mxu0 0.0
    %3061 = vmatprep.subr.mxu0 0.0
    %3062 = vmatpush1.xpose.msra.mxu0 0.0
    %3063 = vmatprep.subr.mxu0 0.0
    %3064 = vmatpush1.xpose.msra.mxu0 0.0
    %3065 = vmatprep.subr.mxu0 0.0
    %3066 = vmatpush1.xpose.msra.mxu0 0.0
    %3067 = vmatprep.subr.mxu0 0.0
    %3068 = vmatpush1.xpose.msra.mxu0 0.0
    %3069 = vmatprep.subr.mxu0 0.0
    %3070 = vmatpush1.xpose.msra.mxu0 0.0
    %3071 = vmatprep.subr.mxu0 0.0
    %3072 = vmatpush1.xpose.msra.mxu0 0.0
    %3073 = vmatprep.subr.mxu0 0.0
    %3074 = vmatpush1.xpose.msra.mxu0 0.0
    %3075 = vmatprep.subr.mxu0 0.0
    %3076 = vmatpush1.xpose.msra.mxu0 0.0
    %3077 = vmatprep.mubr.f32.mxu0 0.0
    %3078 = vmatmul.mubr.f32.gmra.mrb[0].mxu0 %v3009
    %v3079 = vpop.f32.mrb[0].mxu0
    %v3080 = vadd.f32 %v482, %v3079
    %v3081 = vpop.f32.mrb[0].mxu0
    %3082 = vdwg.mxu0
    %v3083 = vsel %vm487, %v3002, -inf
    %3084 = vmax.xlane.f32.xlu0 %v3083
    %v3085 = vpop.xlane.xlu0 %3084
    %v3086 = vsel %vm487, %v3080, -inf
    %3087 = vmax.xlane.f32.xlu0 %v3086
    %v3088 = vpop.xlane.xlu0 %3087
    %v3089 = vsub.f32 %v3002, %v3085
    %v3090 = vsub.f32 %v3080, %v3088
    %v3091 = vmul.f32 %v3089, 1.442695
    %v3092 = vpow.pop %v3091
    %v3093 = vmul.f32 %v3090, 1.442695
    %v3094 = vpow.pop %v3093
    %v3095 = vsel %vm487, %v3092, 0.0
    %3096 = vadd.xlane.f32.xlu0 %v3095
    %v3097 = vpop.xlane.xlu0 %3096
    %v3098 = vsel %vm487, %v3094, 0.0
    %3099 = vadd.xlane.f32.xlu0 %v3098
    %v3100 = vpop.xlane.xlu0 %3099
    %v3101 = vrcp.pop %v3097
    %v3102 = vrcp.pop %v3100
    %v3103 = vmul.f32 %v3092, %v3101
    %v3104 = vmul.f32 %v3094, %v3102
    %3105 = vrot.lane.b32.xlu0 %v2589, 80
    %v3106 = vpop.permute.xlu0 %3105
    %v3109 = vsel %vm487, %v3103, 0
    %3111 = vmatprep.subr.mxu0 0.0
    %3112 = vmatpush1.msra.mxu0 %v3106
    %3113 = vmatprep.subr.mxu0 0.0
    %3114 = vmatpush1.msra.mxu0 0.0
    %3115 = vmatprep.subr.mxu0 0.0
    %3116 = vmatpush1.msra.mxu0 0.0
    %3117 = vmatprep.subr.mxu0 0.0
    %3118 = vmatpush1.msra.mxu0 0.0
    %3119 = vmatprep.subr.mxu0 0.0
    %3120 = vmatpush1.msra.mxu0 0.0
    %3121 = vmatprep.subr.mxu0 0.0
    %3122 = vmatpush1.msra.mxu0 0.0
    %3123 = vmatprep.subr.mxu0 0.0
    %3124 = vmatpush1.msra.mxu0 0.0
    %3125 = vmatprep.subr.mxu0 0.0
    %3126 = vmatpush1.msra.mxu0 0.0
    %3127 = vmatprep.subr.mxu0 0.0
    %3128 = vmatpush1.msra.mxu0 0.0
    %3129 = vmatprep.subr.mxu0 0.0
    %3130 = vmatpush1.msra.mxu0 0.0
    %3131 = vmatprep.subr.mxu0 0.0
    %3132 = vmatpush1.msra.mxu0 0.0
    %3133 = vmatprep.subr.mxu0 0.0
    %3134 = vmatpush1.msra.mxu0 0.0
    %3135 = vmatprep.subr.mxu0 0.0
    %3136 = vmatpush1.msra.mxu0 0.0
    %3137 = vmatprep.subr.mxu0 0.0
    %3138 = vmatpush1.msra.mxu0 0.0
    %3139 = vmatprep.subr.mxu0 0.0
    %3140 = vmatpush1.msra.mxu0 0.0
    %3141 = vmatprep.subr.mxu0 0.0
    %3142 = vmatpush1.msra.mxu0 0.0
    %3143 = vmatprep.subr.mxu0 0.0
    %3144 = vmatpush1.msra.mxu0 0.0
    %3145 = vmatprep.subr.mxu0 0.0
    %3146 = vmatpush1.msra.mxu0 0.0
    %3147 = vmatprep.subr.mxu0 0.0
    %3148 = vmatpush1.msra.mxu0 0.0
    %3149 = vmatprep.subr.mxu0 0.0
    %3150 = vmatpush1.msra.mxu0 0.0
    %3151 = vmatprep.subr.mxu0 0.0
    %3152 = vmatpush1.msra.mxu0 0.0
    %3153 = vmatprep.subr.mxu0 0.0
    %3154 = vmatpush1.msra.mxu0 0.0
    %3155 = vmatprep.subr.mxu0 0.0
    %3156 = vmatpush1.msra.mxu0 0.0
    %3157 = vmatprep.subr.mxu0 0.0
    %3158 = vmatpush1.msra.mxu0 0.0
    %3159 = vmatprep.subr.mxu0 0.0
    %3160 = vmatpush1.msra.mxu0 0.0
    %3161 = vmatprep.subr.mxu0 0.0
    %3162 = vmatpush1.msra.mxu0 0.0
    %3163 = vmatprep.subr.mxu0 0.0
    %3164 = vmatpush1.msra.mxu0 0.0
    %3165 = vmatprep.subr.mxu0 0.0
    %3166 = vmatpush1.msra.mxu0 0.0
    %3167 = vmatprep.subr.mxu0 0.0
    %3168 = vmatpush1.msra.mxu0 0.0
    %3169 = vmatprep.subr.mxu0 0.0
    %3170 = vmatpush1.msra.mxu0 0.0
    %3171 = vmatprep.subr.mxu0 0.0
    %3172 = vmatpush1.msra.mxu0 0.0
    %3173 = vmatprep.subr.mxu0 0.0
    %3174 = vmatpush1.msra.mxu0 0.0
    %3175 = vmatprep.mubr.f32.mxu0 0.0
    %3176 = vmatmul.mubr.f32.gmra.mrb[0].mxu0 %v3109
    %v3177 = vpop.f32.mrb[0].mxu0
    %v3178 = vadd.f32 0.0, %v3177
    %v3179 = vpop.f32.mrb[0].mxu0
    %3180 = vdwg.mxu0
    %3181 = vrot.lane.b32.xlu0 %v2594, 80
    %v3182 = vpop.permute.xlu0 %3181
    %v3185 = vsel %vm487, %v3104, 0
    %3187 = vmatprep.subr.mxu0 0.0
    %3188 = vmatpush1.msra.mxu0 %v3182
    %3189 = vmatprep.subr.mxu0 0.0
    %3190 = vmatpush1.msra.mxu0 0.0
    %3191 = vmatprep.subr.mxu0 0.0
    %3192 = vmatpush1.msra.mxu0 0.0
    %3193 = vmatprep.subr.mxu0 0.0
    %3194 = vmatpush1.msra.mxu0 0.0
    %3195 = vmatprep.subr.mxu0 0.0
    %3196 = vmatpush1.msra.mxu0 0.0
    %3197 = vmatprep.subr.mxu0 0.0
    %3198 = vmatpush1.msra.mxu0 0.0
    %3199 = vmatprep.subr.mxu0 0.0
    %3200 = vmatpush1.msra.mxu0 0.0
    %3201 = vmatprep.subr.mxu0 0.0
    %3202 = vmatpush1.msra.mxu0 0.0
    %3203 = vmatprep.subr.mxu0 0.0
    %3204 = vmatpush1.msra.mxu0 0.0
    %3205 = vmatprep.subr.mxu0 0.0
    %3206 = vmatpush1.msra.mxu0 0.0
    %3207 = vmatprep.subr.mxu0 0.0
    %3208 = vmatpush1.msra.mxu0 0.0
    %3209 = vmatprep.subr.mxu0 0.0
    %3210 = vmatpush1.msra.mxu0 0.0
    %3211 = vmatprep.subr.mxu0 0.0
    %3212 = vmatpush1.msra.mxu0 0.0
    %3213 = vmatprep.subr.mxu0 0.0
    %3214 = vmatpush1.msra.mxu0 0.0
    %3215 = vmatprep.subr.mxu0 0.0
    %3216 = vmatpush1.msra.mxu0 0.0
    %3217 = vmatprep.subr.mxu0 0.0
    %3218 = vmatpush1.msra.mxu0 0.0
    %3219 = vmatprep.subr.mxu0 0.0
    %3220 = vmatpush1.msra.mxu0 0.0
    %3221 = vmatprep.subr.mxu0 0.0
    %3222 = vmatpush1.msra.mxu0 0.0
    %3223 = vmatprep.subr.mxu0 0.0
    %3224 = vmatpush1.msra.mxu0 0.0
    %3225 = vmatprep.subr.mxu0 0.0
    %3226 = vmatpush1.msra.mxu0 0.0
    %3227 = vmatprep.subr.mxu0 0.0
    %3228 = vmatpush1.msra.mxu0 0.0
    %3229 = vmatprep.subr.mxu0 0.0
    %3230 = vmatpush1.msra.mxu0 0.0
    %3231 = vmatprep.subr.mxu0 0.0
    %3232 = vmatpush1.msra.mxu0 0.0
    %3233 = vmatprep.subr.mxu0 0.0
    %3234 = vmatpush1.msra.mxu0 0.0
    %3235 = vmatprep.subr.mxu0 0.0
    %3236 = vmatpush1.msra.mxu0 0.0
    %3237 = vmatprep.subr.mxu0 0.0
    %3238 = vmatpush1.msra.mxu0 0.0
    %3239 = vmatprep.subr.mxu0 0.0
    %3240 = vmatpush1.msra.mxu0 0.0
    %3241 = vmatprep.subr.mxu0 0.0
    %3242 = vmatpush1.msra.mxu0 0.0
    %3243 = vmatprep.subr.mxu0 0.0
    %3244 = vmatpush1.msra.mxu0 0.0
    %3245 = vmatprep.subr.mxu0 0.0
    %3246 = vmatpush1.msra.mxu0 0.0
    %3247 = vmatprep.subr.mxu0 0.0
    %3248 = vmatpush1.msra.mxu0 0.0
    %3249 = vmatprep.subr.mxu0 0.0
    %3250 = vmatpush1.msra.mxu0 0.0
    %3251 = vmatprep.mubr.f32.mxu0 0.0
    %3252 = vmatmul.mubr.f32.gmra.mrb[0].mxu0 %v3185
    %v3253 = vpop.f32.mrb[0].mxu0
    %v3254 = vadd.f32 0.0, %v3253
    %v3255 = vpop.f32.mrb[0].mxu0
    %3256 = vdwg.mxu0
    %v3258 = vsel %vm320, %v3178, 0
    %v3261 = vsel %vm320, %v3254, 0
    %3263 = vmatprep.subr.mxu0 0.0
    %3264 = vmatpush1.msra.mxu0 %v2599
    %3265 = vmatprep.subr.mxu0 0.0
    %3266 = vmatpush1.msra.mxu0 %v2600
    %3267 = vmatprep.subr.mxu0 0.0
    %3268 = vmatpush1.msra.mxu0 0.0
    %3269 = vmatprep.subr.mxu0 0.0
    %3270 = vmatpush1.msra.mxu0 0.0
    %3271 = vmatprep.subr.mxu0 0.0
    %3272 = vmatpush1.msra.mxu0 0.0
    %3273 = vmatprep.subr.mxu0 0.0
    %3274 = vmatpush1.msra.mxu0 0.0
    %3275 = vmatprep.subr.mxu0 0.0
    %3276 = vmatpush1.msra.mxu0 0.0
    %3277 = vmatprep.subr.mxu0 0.0
    %3278 = vmatpush1.msra.mxu0 0.0
    %3279 = vmatprep.subr.mxu0 0.0
    %3280 = vmatpush1.msra.mxu0 0.0
    %3281 = vmatprep.subr.mxu0 0.0
    %3282 = vmatpush1.msra.mxu0 0.0
    %3283 = vmatprep.subr.mxu0 0.0
    %3284 = vmatpush1.msra.mxu0 0.0
    %3285 = vmatprep.subr.mxu0 0.0
    %3286 = vmatpush1.msra.mxu0 0.0
    %3287 = vmatprep.subr.mxu0 0.0
    %3288 = vmatpush1.msra.mxu0 0.0
    %3289 = vmatprep.subr.mxu0 0.0
    %3290 = vmatpush1.msra.mxu0 0.0
    %3291 = vmatprep.subr.mxu0 0.0
    %3292 = vmatpush1.msra.mxu0 0.0
    %3293 = vmatprep.subr.mxu0 0.0
    %3294 = vmatpush1.msra.mxu0 0.0
    %3295 = vmatprep.subr.mxu0 0.0
    %3296 = vmatpush1.msra.mxu0 0.0
    %3297 = vmatprep.subr.mxu0 0.0
    %3298 = vmatpush1.msra.mxu0 0.0
    %3299 = vmatprep.subr.mxu0 0.0
    %3300 = vmatpush1.msra.mxu0 0.0
    %3301 = vmatprep.subr.mxu0 0.0
    %3302 = vmatpush1.msra.mxu0 0.0
    %3303 = vmatprep.subr.mxu0 0.0
    %3304 = vmatpush1.msra.mxu0 0.0
    %3305 = vmatprep.subr.mxu0 0.0
    %3306 = vmatpush1.msra.mxu0 0.0
    %3307 = vmatprep.subr.mxu0 0.0
    %3308 = vmatpush1.msra.mxu0 0.0
    %3309 = vmatprep.subr.mxu0 0.0
    %3310 = vmatpush1.msra.mxu0 0.0
    %3311 = vmatprep.subr.mxu0 0.0
    %3312 = vmatpush1.msra.mxu0 0.0
    %3313 = vmatprep.subr.mxu0 0.0
    %3314 = vmatpush1.msra.mxu0 0.0
    %3315 = vmatprep.subr.mxu0 0.0
    %3316 = vmatpush1.msra.mxu0 0.0
    %3317 = vmatprep.subr.mxu0 0.0
    %3318 = vmatpush1.msra.mxu0 0.0
    %3319 = vmatprep.subr.mxu0 0.0
    %3320 = vmatpush1.msra.mxu0 0.0
    %3321 = vmatprep.subr.mxu0 0.0
    %3322 = vmatpush1.msra.mxu0 0.0
    %3323 = vmatprep.subr.mxu0 0.0
    %3324 = vmatpush1.msra.mxu0 0.0
    %3325 = vmatprep.subr.mxu0 0.0
    %3326 = vmatpush1.msra.mxu0 0.0
    %3327 = vmatprep.mubr.f32.mxu0 0.0
    %3328 = vmatmul.mubr.f32.gmra.mrb[0].mxu0 %v3258
    %v3329 = vpop.f32.mrb[0].mxu0
    %v3330 = vadd.f32 0.0, %v3329
    %v3331 = vpop.f32.mrb[0].mxu0
    %3332 = vmatprep.mubr.f32.mxu0 0.0
    %3333 = vmatmul.mubr.f32.gmra.mrb[0].mxu0 %v3261
    %v3334 = vpop.f32.mrb[0].mxu0
    %v3335 = vadd.f32 0.0, %v3334
    %v3336 = vpop.f32.mrb[0].mxu0
    %3337 = vdwg.mxu0
    %v3339 = vsel %vm320, %v2848, 0
    %v3342 = vsel %vm320, %v2924, 0
    %3344 = vmatprep.subr.mxu0 0.0
    %3345 = vmatpush1.msra.mxu0 %v2597
    %3346 = vmatprep.subr.mxu0 0.0
    %3347 = vmatpush1.msra.mxu0 %v2598
    %3348 = vmatprep.subr.mxu0 0.0
    %3349 = vmatpush1.msra.mxu0 0.0
    %3350 = vmatprep.subr.mxu0 0.0
    %3351 = vmatpush1.msra.mxu0 0.0
    %3352 = vmatprep.subr.mxu0 0.0
    %3353 = vmatpush1.msra.mxu0 0.0
    %3354 = vmatprep.subr.mxu0 0.0
    %3355 = vmatpush1.msra.mxu0 0.0
    %3356 = vmatprep.subr.mxu0 0.0
    %3357 = vmatpush1.msra.mxu0 0.0
    %3358 = vmatprep.subr.mxu0 0.0
    %3359 = vmatpush1.msra.mxu0 0.0
    %3360 = vmatprep.subr.mxu0 0.0
    %3361 = vmatpush1.msra.mxu0 0.0
    %3362 = vmatprep.subr.mxu0 0.0
    %3363 = vmatpush1.msra.mxu0 0.0
    %3364 = vmatprep.subr.mxu0 0.0
    %3365 = vmatpush1.msra.mxu0 0.0
    %3366 = vmatprep.subr.mxu0 0.0
    %3367 = vmatpush1.msra.mxu0 0.0
    %3368 = vmatprep.subr.mxu0 0.0
    %3369 = vmatpush1.msra.mxu0 0.0
    %3370 = vmatprep.subr.mxu0 0.0
    %3371 = vmatpush1.msra.mxu0 0.0
    %3372 = vmatprep.subr.mxu0 0.0
    %3373 = vmatpush1.msra.mxu0 0.0
    %3374 = vmatprep.subr.mxu0 0.0
    %3375 = vmatpush1.msra.mxu0 0.0
    %3376 = vmatprep.subr.mxu0 0.0
    %3377 = vmatpush1.msra.mxu0 0.0
    %3378 = vmatprep.subr.mxu0 0.0
    %3379 = vmatpush1.msra.mxu0 0.0
    %3380 = vmatprep.subr.mxu0 0.0
    %3381 = vmatpush1.msra.mxu0 0.0
    %3382 = vmatprep.subr.mxu0 0.0
    %3383 = vmatpush1.msra.mxu0 0.0
    %3384 = vmatprep.subr.mxu0 0.0
    %3385 = vmatpush1.msra.mxu0 0.0
    %3386 = vmatprep.subr.mxu0 0.0
    %3387 = vmatpush1.msra.mxu0 0.0
    %3388 = vmatprep.subr.mxu0 0.0
    %3389 = vmatpush1.msra.mxu0 0.0
    %3390 = vmatprep.subr.mxu0 0.0
    %3391 = vmatpush1.msra.mxu0 0.0
    %3392 = vmatprep.subr.mxu0 0.0
    %3393 = vmatpush1.msra.mxu0 0.0
    %3394 = vmatprep.subr.mxu0 0.0
    %3395 = vmatpush1.msra.mxu0 0.0
    %3396 = vmatprep.subr.mxu0 0.0
    %3397 = vmatpush1.msra.mxu0 0.0
    %3398 = vmatprep.subr.mxu0 0.0
    %3399 = vmatpush1.msra.mxu0 0.0
    %3400 = vmatprep.subr.mxu0 0.0
    %3401 = vmatpush1.msra.mxu0 0.0
    %3402 = vmatprep.subr.mxu0 0.0
    %3403 = vmatpush1.msra.mxu0 0.0
    %3404 = vmatprep.subr.mxu0 0.0
    %3405 = vmatpush1.msra.mxu0 0.0
    %3406 = vmatprep.subr.mxu0 0.0
    %3407 = vmatpush1.msra.mxu0 0.0
    %3408 = vmatprep.mubr.f32.mxu0 0.0
    %3409 = vmatmul.mubr.f32.gmra.mrb[0].mxu0 %v3339
    %v3410 = vpop.f32.mrb[0].mxu0
    %v3411 = vadd.f32 %v3330, %v3410
    %v3412 = vpop.f32.mrb[0].mxu0
    %3413 = vmatprep.mubr.f32.mxu0 0.0
    %3414 = vmatmul.mubr.f32.gmra.mrb[0].mxu0 %v3342
    %v3415 = vpop.f32.mrb[0].mxu0
    %v3416 = vadd.f32 %v3335, %v3415
    %v3417 = vpop.f32.mrb[0].mxu0
    %3418 = vdwg.mxu0
    %v3419 = vadd.f32 %v2400, %v3411
    %v3420 = vadd.f32 %v2401, %v3416
    %v3421 = vmul.f32 %v3419, %v3419
    %v3422 = vmul.f32 %v3420, %v3420
    %v3423 = vsel %vm127, %v3421, 0.0
    %3424 = vadd.xlane.f32.xlu0 %v3423
    %v3425 = vpop.xlane.xlu0 %3424
    %v3426 = vsel %vm127, %v3422, 0.0
    %3427 = vadd.xlane.f32.xlu0 %v3426
    %v3428 = vpop.xlane.xlu0 %3427
    %v3429 = vmul.f32 %v3425, %v134
    %v3430 = vmul.f32 %v3428, %v134
    %v3431 = vadd.f32 %v3429, 1e-06
    %v3432 = vadd.f32 %v3430, 1e-06
    %v3433 = vrsqrt.pop %v3431
    %v3434 = vrsqrt.pop %v3432
    %v3435 = vmul.f32 %v3419, %v3433
    %v3436 = vmul.f32 %v3420, %v3434
    %v3437 = vld [vmem:[%s23] sm:$0x1]
    %v3439 = vlaneseq
    %v3440 = vshrl.u32 %v3439, 7
    %v3441 = vsub.s32 0, %v3440
    %v3442 = vrot.slane %v3437, %v3441
    %v3444 = vmul.f32 %v3435, %v3442
    %v3445 = vmul.f32 %v3436, %v3442
    %v3446 = vld [vmem:[%s24] sm:$0xff]
    %v3447 = vld [vmem:[%s24 + $0x8] sm:$0xff]
    %v3448 = vld [vmem:[%s24 + $0x10] sm:$0xff]
    %v3449 = vld [vmem:[%s24 + $0x18] sm:$0xff]
    %v3451 = vsel %vm127, %v3444, 0
    %v3454 = vsel %vm127, %v3445, 0
    %3456 = vmatprep.subr.mxu0 0.0
    %3457 = vmatpush1.msra.mxu0 %v3446
    %3458 = vmatprep.subr.mxu0 0.0
    %3459 = vmatpush1.msra.mxu0 %v3447
    %3460 = vmatprep.subr.mxu0 0.0
    %3461 = vmatpush1.msra.mxu0 %v3448
    %3462 = vmatprep.subr.mxu0 0.0
    %3463 = vmatpush1.msra.mxu0 %v3449
    %3464 = vmatprep.subr.mxu0 0.0
    %3465 = vmatpush1.msra.mxu0 0.0
    %3466 = vmatprep.subr.mxu0 0.0
    %3467 = vmatpush1.msra.mxu0 0.0
    %3468 = vmatprep.subr.mxu0 0.0
    %3469 = vmatpush1.msra.mxu0 0.0
    %3470 = vmatprep.subr.mxu0 0.0
    %3471 = vmatpush1.msra.mxu0 0.0
    %3472 = vmatprep.subr.mxu0 0.0
    %3473 = vmatpush1.msra.mxu0 0.0
    %3474 = vmatprep.subr.mxu0 0.0
    %3475 = vmatpush1.msra.mxu0 0.0
    %3476 = vmatprep.subr.mxu0 0.0
    %3477 = vmatpush1.msra.mxu0 0.0
    %3478 = vmatprep.subr.mxu0 0.0
    %3479 = vmatpush1.msra.mxu0 0.0
    %3480 = vmatprep.subr.mxu0 0.0
    %3481 = vmatpush1.msra.mxu0 0.0
    %3482 = vmatprep.subr.mxu0 0.0
    %3483 = vmatpush1.msra.mxu0 0.0
    %3484 = vmatprep.subr.mxu0 0.0
    %3485 = vmatpush1.msra.mxu0 0.0
    %3486 = vmatprep.subr.mxu0 0.0
    %3487 = vmatpush1.msra.mxu0 0.0
    %3488 = vmatprep.subr.mxu0 0.0
    %3489 = vmatpush1.msra.mxu0 0.0
    %3490 = vmatprep.subr.mxu0 0.0
    %3491 = vmatpush1.msra.mxu0 0.0
    %3492 = vmatprep.subr.mxu0 0.0
    %3493 = vmatpush1.msra.mxu0 0.0
    %3494 = vmatprep.subr.mxu0 0.0
    %3495 = vmatpush1.msra.mxu0 0.0
    %3496 = vmatprep.subr.mxu0 0.0
    %3497 = vmatpush1.msra.mxu0 0.0
    %3498 = vmatprep.subr.mxu0 0.0
    %3499 = vmatpush1.msra.mxu0 0.0
    %3500 = vmatprep.subr.mxu0 0.0
    %3501 = vmatpush1.msra.mxu0 0.0
    %3502 = vmatprep.subr.mxu0 0.0
    %3503 = vmatpush1.msra.mxu0 0.0
    %3504 = vmatprep.subr.mxu0 0.0
    %3505 = vmatpush1.msra.mxu0 0.0
    %3506 = vmatprep.subr.mxu0 0.0
    %3507 = vmatpush1.msra.mxu0 0.0
    %3508 = vmatprep.subr.mxu0 0.0
    %3509 = vmatpush1.msra.mxu0 0.0
    %3510 = vmatprep.subr.mxu0 0.0
    %3511 = vmatpush1.msra.mxu0 0.0
    %3512 = vmatprep.subr.mxu0 0.0
    %3513 = vmatpush1.msra.mxu0 0.0
    %3514 = vmatprep.subr.mxu0 0.0
    %3515 = vmatpush1.msra.mxu0 0.0
    %3516 = vmatprep.subr.mxu0 0.0
    %3517 = vmatpush1.msra.mxu0 0.0
    %3518 = vmatprep.subr.mxu0 0.0
    %3519 = vmatpush1.msra.mxu0 0.0
    %3520 = vmatprep.mubr.f32.mxu0 0.0
    %3521 = vmatmul.mubr.f32.gmra.mrb[0].mxu0 %v3451
    %v3522 = vpop.f32.mrb[0].mxu0
    %v3523 = vadd.f32 0.0, %v3522
    %v3524 = vpop.f32.mrb[0].mxu0
    %3525 = vmatprep.mubr.f32.mxu0 0.0
    %3526 = vmatmul.mubr.f32.gmra.mrb[0].mxu0 %v3454
    %v3527 = vpop.f32.mrb[0].mxu0
    %v3528 = vadd.f32 0.0, %v3527
    %v3529 = vpop.f32.mrb[0].mxu0
    %3530 = vdwg.mxu0
    %v3531 = vmax.f32 %v3523, 0.0
    %v3532 = vmax.f32 %v3528, 0.0
    %v3533 = vld [vmem:[%s25] sm:$0xff]
    %v3534 = vld [vmem:[%s25 + $0x8] sm:$0xff]
    %v3535 = vld [vmem:[%s25 + $0x10] sm:$0xff]
    %v3536 = vld [vmem:[%s25 + $0x18] sm:$0xff]
    %v3537 = vld [vmem:[%s25 + $0x20] sm:$0xff]
    %v3538 = vld [vmem:[%s25 + $0x28] sm:$0xff]
    %v3539 = vld [vmem:[%s25 + $0x30] sm:$0xff]
    %v3540 = vld [vmem:[%s25 + $0x38] sm:$0xff]
    %v3542 = vsel %vm1278, %v3531, 0
    %v3545 = vsel %vm1278, %v3532, 0
    %3547 = vmatprep.subr.mxu0 0.0
    %3548 = vmatpush1.msra.mxu0 %v3533
    %3549 = vmatprep.subr.mxu0 0.0
    %3550 = vmatpush1.msra.mxu0 %v3534
    %3551 = vmatprep.subr.mxu0 0.0
    %3552 = vmatpush1.msra.mxu0 %v3535
    %3553 = vmatprep.subr.mxu0 0.0
    %3554 = vmatpush1.msra.mxu0 %v3536
    %3555 = vmatprep.subr.mxu0 0.0
    %3556 = vmatpush1.msra.mxu0 %v3537
    %3557 = vmatprep.subr.mxu0 0.0
    %3558 = vmatpush1.msra.mxu0 %v3538
    %3559 = vmatprep.subr.mxu0 0.0
    %3560 = vmatpush1.msra.mxu0 %v3539
    %3561 = vmatprep.subr.mxu0 0.0
    %3562 = vmatpush1.msra.mxu0 %v3540
    %3563 = vmatprep.subr.mxu0 0.0
    %3564 = vmatpush1.msra.mxu0 0.0
    %3565 = vmatprep.subr.mxu0 0.0
    %3566 = vmatpush1.msra.mxu0 0.0
    %3567 = vmatprep.subr.mxu0 0.0
    %3568 = vmatpush1.msra.mxu0 0.0
    %3569 = vmatprep.subr.mxu0 0.0
    %3570 = vmatpush1.msra.mxu0 0.0
    %3571 = vmatprep.subr.mxu0 0.0
    %3572 = vmatpush1.msra.mxu0 0.0
    %3573 = vmatprep.subr.mxu0 0.0
    %3574 = vmatpush1.msra.mxu0 0.0
    %3575 = vmatprep.subr.mxu0 0.0
    %3576 = vmatpush1.msra.mxu0 0.0
    %3577 = vmatprep.subr.mxu0 0.0
    %3578 = vmatpush1.msra.mxu0 0.0
    %3579 = vmatprep.subr.mxu0 0.0
    %3580 = vmatpush1.msra.mxu0 0.0
    %3581 = vmatprep.subr.mxu0 0.0
    %3582 = vmatpush1.msra.mxu0 0.0
    %3583 = vmatprep.subr.mxu0 0.0
    %3584 = vmatpush1.msra.mxu0 0.0
    %3585 = vmatprep.subr.mxu0 0.0
    %3586 = vmatpush1.msra.mxu0 0.0
    %3587 = vmatprep.subr.mxu0 0.0
    %3588 = vmatpush1.msra.mxu0 0.0
    %3589 = vmatprep.subr.mxu0 0.0
    %3590 = vmatpush1.msra.mxu0 0.0
    %3591 = vmatprep.subr.mxu0 0.0
    %3592 = vmatpush1.msra.mxu0 0.0
    %3593 = vmatprep.subr.mxu0 0.0
    %3594 = vmatpush1.msra.mxu0 0.0
    %3595 = vmatprep.subr.mxu0 0.0
    %3596 = vmatpush1.msra.mxu0 0.0
    %3597 = vmatprep.subr.mxu0 0.0
    %3598 = vmatpush1.msra.mxu0 0.0
    %3599 = vmatprep.subr.mxu0 0.0
    %3600 = vmatpush1.msra.mxu0 0.0
    %3601 = vmatprep.subr.mxu0 0.0
    %3602 = vmatpush1.msra.mxu0 0.0
    %3603 = vmatprep.subr.mxu0 0.0
    %3604 = vmatpush1.msra.mxu0 0.0
    %3605 = vmatprep.subr.mxu0 0.0
    %3606 = vmatpush1.msra.mxu0 0.0
    %3607 = vmatprep.subr.mxu0 0.0
    %3608 = vmatpush1.msra.mxu0 0.0
    %3609 = vmatprep.subr.mxu0 0.0
    %3610 = vmatpush1.msra.mxu0 0.0
    %3611 = vmatprep.mubr.f32.mxu0 0.0
    %3612 = vmatmul.mubr.f32.gmra.mrb[0].mxu0 %v3542
    %v3613 = vpop.f32.mrb[0].mxu0
    %v3614 = vadd.f32 0.0, %v3613
    %v3615 = vpop.f32.mrb[0].mxu0
    %3616 = vmatprep.mubr.f32.mxu0 0.0
    %3617 = vmatmul.mubr.f32.gmra.mrb[0].mxu0 %v3545
    %v3618 = vpop.f32.mrb[0].mxu0
    %v3619 = vadd.f32 0.0, %v3618
    %v3620 = vpop.f32.mrb[0].mxu0
    %3621 = vdwg.mxu0
    %v3622 = vadd.f32 %v3419, %v3614
    %v3623 = vadd.f32 %v3420, %v3619
    %v3624 = vmul.f32 %v3622, %v3622
    %v3625 = vmul.f32 %v3623, %v3623
    %v3626 = vsel %vm127, %v3624, 0.0
    %3627 = vadd.xlane.f32.xlu0 %v3626
    %v3628 = vpop.xlane.xlu0 %3627
    %v3629 = vsel %vm127, %v3625, 0.0
    %3630 = vadd.xlane.f32.xlu0 %v3629
    %v3631 = vpop.xlane.xlu0 %3630
    %v3632 = vmul.f32 %v3628, %v134
    %v3633 = vmul.f32 %v3631, %v134
    %v3634 = vadd.f32 %v3632, 1e-06
    %v3635 = vadd.f32 %v3633, 1e-06
    %v3636 = vrsqrt.pop %v3634
    %v3637 = vrsqrt.pop %v3635
    %v3638 = vmul.f32 %v3622, %v3636
    %v3639 = vmul.f32 %v3623, %v3637
    %v3640 = vld [vmem:[%s26] sm:$0x1]
    %v3642 = vlaneseq
    %v3643 = vshrl.u32 %v3642, 7
    %v3644 = vsub.s32 0, %v3643
    %v3645 = vrot.slane %v3640, %v3644
    %v3647 = vmul.f32 %v3638, %v3645
    %v3648 = vmul.f32 %v3639, %v3645
    %v3649 = vmul.f32 %v3647, 0.17677669
    %v3650 = vmul.f32 %v3648, 0.17677669
    %v3651 = vld [vmem:[%s6] sm:$0xff]
    %v3652 = vld [vmem:[%s6 + $0x8] sm:$0xff]
    %v3653 = vld [vmem:[%s6 + $0x10] sm:$0xff]
    %v3654 = vld [vmem:[%s6 + $0x18] sm:$0xff]
    %v3655 = vld [vmem:[%s6 + $0x20] sm:$0xff]
    %v3656 = vld [vmem:[%s6 + $0x28] sm:$0xff]
    %v3657 = vld [vmem:[%s6 + $0x30] sm:$0xff]
    %v3658 = vld [vmem:[%s6 + $0x38] sm:$0xff]
    %v3659 = vld [vmem:[%s6 + $0x40] sm:$0xff]
    %v3660 = vld [vmem:[%s6 + $0x48] sm:$0xff]
    %v3661 = vld [vmem:[%s6 + $0x50] sm:$0xff]
    %v3662 = vld [vmem:[%s6 + $0x58] sm:$0xff]
    %v3663 = vld [vmem:[%s6 + $0x60] sm:$0xff]
    %v3664 = vld [vmem:[%s6 + $0x68] sm:$0xff]
    %v3665 = vld [vmem:[%s6 + $0x70] sm:$0xff]
    %v3666 = vld [vmem:[%s6 + $0x78] sm:$0xff]
    %v3668 = vsel %vm127, %v3649, 0
    %v3671 = vsel %vm127, %v3650, 0
    %v3674 = vsel %vm127, %v3651, 0
    %v3677 = vsel %vm127, %v3652, 0
    %v3680 = vsel %vm127, %v3653, 0
    %v3683 = vsel %vm127, %v3654, 0
    %v3686 = vsel %vm127, %v3655, 0
    %v3689 = vsel %vm127, %v3656, 0
    %v3692 = vsel %vm127, %v3657, 0
    %v3695 = vsel %vm127, %v3658, 0
    %v3698 = vsel %vm127, %v3659, 0
    %v3701 = vsel %vm127, %v3660, 0
    %v3704 = vsel %vm127, %v3661, 0
    %v3707 = vsel %vm127, %v3662, 0
    %v3710 = vsel %vm127, %v3663, 0
    %v3713 = vsel %vm127, %v3664, 0
    %v3716 = vsel %vm127, %v3665, 0
    %v3719 = vsel %vm127, %v3666, 0
    %3721 = vmatprep.subr.mxu0 0.0
    %3722 = vmatpush1.xpose.msra.mxu0 %v3674
    %3723 = vmatprep.subr.mxu0 0.0
    %3724 = vmatpush1.xpose.msra.mxu0 %v3677
    %3725 = vmatprep.subr.mxu0 0.0
    %3726 = vmatpush1.xpose.msra.mxu0 %v3680
    %3727 = vmatprep.subr.mxu0 0.0
    %3728 = vmatpush1.xpose.msra.mxu0 %v3683
    %3729 = vmatprep.subr.mxu0 0.0
    %3730 = vmatpush1.xpose.msra.mxu0 %v3686
    %3731 = vmatprep.subr.mxu0 0.0
    %3732 = vmatpush1.xpose.msra.mxu0 %v3689
    %3733 = vmatprep.subr.mxu0 0.0
    %3734 = vmatpush1.xpose.msra.mxu0 %v3692
    %3735 = vmatprep.subr.mxu0 0.0
    %3736 = vmatpush1.xpose.msra.mxu0 %v3695
    %3737 = vmatprep.subr.mxu0 0.0
    %3738 = vmatpush1.xpose.msra.mxu0 %v3698
    %3739 = vmatprep.subr.mxu0 0.0
    %3740 = vmatpush1.xpose.msra.mxu0 %v3701
    %3741 = vmatprep.subr.mxu0 0.0
    %3742 = vmatpush1.xpose.msra.mxu0 %v3704
    %3743 = vmatprep.subr.mxu0 0.0
    %3744 = vmatpush1.xpose.msra.mxu0 %v3707
    %3745 = vmatprep.subr.mxu0 0.0
    %3746 = vmatpush1.xpose.msra.mxu0 %v3710
    %3747 = vmatprep.subr.mxu0 0.0
    %3748 = vmatpush1.xpose.msra.mxu0 %v3713
    %3749 = vmatprep.subr.mxu0 0.0
    %3750 = vmatpush1.xpose.msra.mxu0 %v3716
    %3751 = vmatprep.subr.mxu0 0.0
    %3752 = vmatpush1.xpose.msra.mxu0 %v3719
    %3753 = vmatprep.subr.mxu0 0.0
    %3754 = vmatpush1.xpose.msra.mxu0 0.0
    %3755 = vmatprep.subr.mxu0 0.0
    %3756 = vmatpush1.xpose.msra.mxu0 0.0
    %3757 = vmatprep.subr.mxu0 0.0
    %3758 = vmatpush1.xpose.msra.mxu0 0.0
    %3759 = vmatprep.subr.mxu0 0.0
    %3760 = vmatpush1.xpose.msra.mxu0 0.0
    %3761 = vmatprep.subr.mxu0 0.0
    %3762 = vmatpush1.xpose.msra.mxu0 0.0
    %3763 = vmatprep.subr.mxu0 0.0
    %3764 = vmatpush1.xpose.msra.mxu0 0.0
    %3765 = vmatprep.subr.mxu0 0.0
    %3766 = vmatpush1.xpose.msra.mxu0 0.0
    %3767 = vmatprep.subr.mxu0 0.0
    %3768 = vmatpush1.xpose.msra.mxu0 0.0
    %3769 = vmatprep.subr.mxu0 0.0
    %3770 = vmatpush1.xpose.msra.mxu0 0.0
    %3771 = vmatprep.subr.mxu0 0.0
    %3772 = vmatpush1.xpose.msra.mxu0 0.0
    %3773 = vmatprep.subr.mxu0 0.0
    %3774 = vmatpush1.xpose.msra.mxu0 0.0
    %3775 = vmatprep.subr.mxu0 0.0
    %3776 = vmatpush1.xpose.msra.mxu0 0.0
    %3777 = vmatprep.subr.mxu0 0.0
    %3778 = vmatpush1.xpose.msra.mxu0 0.0
    %3779 = vmatprep.subr.mxu0 0.0
    %3780 = vmatpush1.xpose.msra.mxu0 0.0
    %3781 = vmatprep.subr.mxu0 0.0
    %3782 = vmatpush1.xpose.msra.mxu0 0.0
    %3783 = vmatprep.subr.mxu0 0.0
    %3784 = vmatpush1.xpose.msra.mxu0 0.0
    %3785 = vmatprep.mubr.f32.mxu0 0.0
    %3786 = vmatmul.mubr.f32.gmra.mrb[0].mxu0 %v3668
    %v3787 = vpop.f32.mrb[0].mxu0
    %v3788 = vadd.f32 0.0, %v3787
    %v3789 = vpop.f32.mrb[0].mxu0
    %3790 = vmatprep.mubr.f32.mxu0 0.0
    %3791 = vmatmul.mubr.f32.gmra.mrb[0].mxu0 %v3671
    %v3792 = vpop.f32.mrb[0].mxu0
    %v3793 = vadd.f32 0.0, %v3792
    %v3794 = vpop.f32.mrb[0].mxu0
    %3795 = vdwg.mxu0
    %3796 = vst [vmem:[#allocation2] sm:$0xff] %v3788
    %3797 = vst [vmem:[#allocation2 + $0x8] sm:$0xff] %v3793
    %v3798 = vld [vmem:[%s5] sm:$0xff]
    %v3799 = vld [vmem:[%s5 + $0x8] sm:$0xff]
    %3800 = vmax.xlane.f32.xlu0 %v3788
    %v3801 = vpop.xlane.xlu0 %3800
    %3802 = vmax.xlane.f32.xlu0 %v3793
    %v3803 = vpop.xlane.xlu0 %3802
    %v3804 = vsub.f32 %v3788, %v3801
    %v3805 = vsub.f32 %v3793, %v3803
    %v3806 = vmul.f32 %v3804, 1.442695
    %v3807 = vpow.pop %v3806
    %v3808 = vmul.f32 %v3805, 1.442695
    %v3809 = vpow.pop %v3808
    %3810 = vadd.xlane.f32.xlu0 %v3807
    %v3811 = vpop.xlane.xlu0 %3810
    %3812 = vadd.xlane.f32.xlu0 %v3809
    %v3813 = vpop.xlane.xlu0 %3812
    %v3814 = vlog2.pop %v3811
    %v3815 = vmul.f32 %v3814, 0.6931472
    %v3816 = vlog2.pop %v3813
    %v3817 = vmul.f32 %v3816, 0.6931472
    %v3818 = vadd.f32 %v3815, %v3801
    %v3819 = vadd.f32 %v3817, %v3803
    %v3820 = vlaneseq
    %v3821 = vand.u32 %v3820, 127
    %3822 = vset.pattern.permute.xlu0 0
    %3823 = vperm.xlu0 %3822, %v3798
    %v3824 = vpop.permute.xlu0 %3823
    %3825 = vset.pattern.permute.xlu0 0
    %3826 = vperm.xlu0 %3825, %v3799
    %v3827 = vpop.permute.xlu0 %3826
    %vm3828 = vcmp.eq.s32.totalorder %v3821, %v3824
    %vm3829 = vcmp.eq.s32.totalorder %v3821, %v3827
    %v3830 = vsel %vm3828, %v3788, 0.0
    %v3831 = vsel %vm3829, %v3793, 0.0
    %3832 = vadd.xlane.f32.xlu0 %v3830
    %v3833 = vpop.xlane.xlu0 %3832
    %3834 = vadd.xlane.f32.xlu0 %v3831
    %v3835 = vpop.xlane.xlu0 %3834
    %vm3836 = vcmp.ge.s32.totalorder %v3798, 0
    %vm3837 = vcmp.ge.s32.totalorder %v3799, 0
    %v3838 = vsel %vm3836, 1, 0
    %v3839 = vsel %vm3837, 1, 0
    %v3840 = vcvt.s32.f32 %v3838
    %v3841 = vcvt.s32.f32 %v3839
    %v3842 = vsub.f32 %v3818, %v3833
    %v3843 = vsub.f32 %v3819, %v3835
    %v3844 = vmul.f32 %v3842, %v3840
    %v3845 = vmul.f32 %v3843, %v3841
    %vm3846 = vcmask 7168
    %v3847 = vsel %vm3846, %v3844, 0.0
    %v3848 = vsel %vm3846, %v3845, 0.0
    %v3849 = vadd.f32 %v3847, %v3848
    %v3850 = vrot.slane %v3849, 4
    %v3851 = vadd.f32 %v3849, %v3850
    %v3852 = vrot.slane %v3851, 2
    %v3853 = vadd.f32 %v3851, %v3852
    %v3854 = vrot.slane %v3853, 1
    %v3855 = vadd.f32 %v3853, %v3854
    %v3856 = vsel %vm3846, %v3840, 0.0
    %v3857 = vsel %vm3846, %v3841, 0.0
    %v3858 = vadd.f32 %v3856, %v3857
    %v3859 = vrot.slane %v3858, 4
    %v3860 = vadd.f32 %v3858, %v3859
    %v3861 = vrot.slane %v3860, 2
    %v3862 = vadd.f32 %v3860, %v3861
    %v3863 = vrot.slane %v3862, 1
    %v3864 = vadd.f32 %v3862, %v3863
    %v3865 = vmax.f32 %v3864, 1.0
    %v3866 = vrcp.pop %v3865
    %v3867 = vmul.f32 %v3855, %v3866
    %vm3868 = vcmask 0
    %3869 = vst.msk [vmem:[#allocation4] sm:$0x1] %vm3868, %v3867
    // Predicated region
    $region110: #{t5_forward.1} parent=1 // pred_check
      _
    $region111: #{t5_forward.1} parent=1 // pred_check_branch
      %3871 = sbr.rel (0) target = $region113
    $region112: #{t5_forward.1} parent=1 // pred_region
      %s3873 = ssub.s32 256, 256
      %3874 = vsyncadd [#allocation3], %s3873
      %s3875 = sshll.u32 [#allocation2], 4
      %s3876 = int_to_ptr.vmem [resolvable:$true] %s3875
      %3881 = dma.vmem_to_hbm [thread:$0]  %s3876, 256, %s27, [#allocation3], 128, 128, 8
    $region113: #{t5_forward.1} parent=1 // pred_fallthru
      _
    // Predicated region
    $region114: #{t5_forward.1} parent=1 // pred_check
      _
    $region115: #{t5_forward.1} parent=1 // pred_check_branch
      %3883 = sbr.rel (0) target = $region117
    $region116: #{t5_forward.1} parent=1 // pred_region
      %s3885 = ssub.s32 16, 16
      %3886 = vsyncadd [#allocation5], %s3885
      %s3888 = sshll.u32 [#allocation4], 4
      %s3889 = int_to_ptr.vmem [resolvable:$true] %s3888
      %3891 = dma.vmem_to_hbm [thread:$0]  %s3889, 16, %s28, [#allocation5]
    $region117: #{t5_forward.1} parent=1 // pred_fallthru
      _
    // Predicated region
    $region118: #{t5_forward.1} parent=1 // pred_check
      _
    $region119: #{t5_forward.1} parent=1 // pred_check_branch
      %3893 = sbr.rel (0) target = $region121
    $region120: #{t5_forward.1} parent=1 // pred_region
      %3894 = dma.done [#allocation3], 256
    $region121: #{t5_forward.1} parent=1 // pred_fallthru
      _
    // Predicated region
    $region122: #{t5_forward.1} parent=1 // pred_check
      _
    $region123: #{t5_forward.1} parent=1 // pred_check_branch
      %3896 = sbr.rel (0) target = $region125
    $region124: #{t5_forward.1} parent=1 // pred_region
      %3897 = dma.done [#allocation5], 16
    $region125: #{t5_forward.1} parent=1 // pred_fallthru
      _
    %3898 = vsyncpa [#allocation3], 1
    %3899 = vsyncpa [#allocation5], 1

</llo_original>
